<compile_context>
chip_gen: v5e
topology: v5e:2x2
jax: 0.10.0
libtpu: 0.0.40
codegen_flags: <defaults>
</compile_context>

<pallas_src>
import functools
import math

import jax
import jax.numpy as jnp
from jax.experimental import pallas as pl
from jax.experimental.pallas import tpu as pltpu

# ---------------------------------------------------------------------------
# Model hyper-parameters (small, consistent with a ViT patch encoder)
# ---------------------------------------------------------------------------
B, C, H, W = 2, 3, 16, 16        # input image (NCHW, like the torch module)
P = 4                            # patch size
NP = (H // P) * (W // P)         # 16 patches
T = NP + 1                       # +1 CLS token -> 17 tokens
D = 32                           # hidden size
NH = 2                           # attention heads
HD = D // NH                     # head dim = 16
L = 2                            # transformer depth
MLP = 4 * D                      # MLP hidden = 128
PD = C * P * P                   # flattened patch dim = 48
LN_EPS = 1e-6

# vector-slab row layout (all rows are width D, f32)
R_TOKBIAS = 0                    # rows 0 .. T-1 : pos(+b_patch), row0 = cls+pos0
R_LNF = T                        # row T: final-LN gamma, row T+1: final-LN beta
R_LAYER = 24                     # per-layer rows start (8-aligned)
LAYER_STRIDE = 8                 # ln1_g, ln1_b, b_o, ln2_g, ln2_b, b_2, pad, pad
N_VEC_ROWS = R_LAYER + L * LAYER_STRIDE   # 40

# per-(layer, head) attention-weight slots in the stacked weight slab
W_Q, W_K, W_V, W_OT = 0, 1, 2, 3


# ---------------------------------------------------------------------------
# Pallas kernel: full ViT encoder forward for BB images per grid step
# ---------------------------------------------------------------------------
def vit_encoder_kernel(
    patches_ref,       # [BB, T, PD] bf16  (row 0 of each image is zeros -> CLS)
    w_patch_ref,       # [PD, D]     bf16
    w_attn_ref,        # [L*NH*4, D, HD] bf16 : Wq, Wk, Wv, Wo^T per (layer, head)
    b_attn_ref,        # [L*NH, 3, HD]   f32  : bq, bk, bv per (layer, head)
    w_mlp1_ref,        # [L, D, MLP] bf16
    b_mlp1_ref,        # [L, 1, MLP] f32
    w_mlp2_ref,        # [L, MLP, D] bf16
    vecs_ref,          # [N_VEC_ROWS, D] f32
    feat_ref,          # out: [BB, T, D] f32  (last_hidden_state)
    pooled_ref,        # out: [BB, 1, D] f32  (mean-pooled feature)
):
    bb = patches_ref.shape[0]
    scale = 1.0 / math.sqrt(HD)

    def layer_norm(x, g, b):
        mu = jnp.mean(x, axis=-1, keepdims=True)
        var = jnp.mean(jnp.square(x - mu), axis=-1, keepdims=True)
        return (x - mu) * jax.lax.rsqrt(var + LN_EPS) * g + b

    # weights / vectors shared by every image in this step (hoisted once)
    w_patch = w_patch_ref[...]
    tok_bias = vecs_ref[R_TOKBIAS:R_TOKBIAS + T, :]          # [T, D]
    lnf_g = vecs_ref[R_LNF:R_LNF + 1, :]
    lnf_b = vecs_ref[R_LNF + 1:R_LNF + 2, :]

    for b in range(bb):                       # static unroll over folded images
        # ---- patch embedding + CLS + positional embedding (no scratch) ----
        # row 0 of patches is zeros, so tok_bias row 0 supplies cls + pos[0];
        # rows 1..T-1 of tok_bias supply b_patch + pos[k].
        h = jnp.dot(patches_ref[b], w_patch,
                    preferred_element_type=jnp.float32) + tok_bias   # [T, D] f32

        # ---- transformer blocks (static unroll over depth) ----
        for l in range(L):
            base = R_LAYER + l * LAYER_STRIDE
            ln1_g = vecs_ref[base + 0:base + 1, :]
            ln1_b = vecs_ref[base + 1:base + 2, :]
            b_o   = vecs_ref[base + 2:base + 3, :]
            ln2_g = vecs_ref[base + 3:base + 4, :]
            ln2_b = vecs_ref[base + 4:base + 5, :]
            b_2   = vecs_ref[base + 5:base + 6, :]

            # --- multi-head self-attention, per-head weights, no lane slicing ---
            hn = layer_norm(h, ln1_g, ln1_b).astype(jnp.bfloat16)    # [T, D]
            attn = None
            for hh in range(NH):
                wbase = (l * NH + hh) * 4
                b_qkv_h = b_attn_ref[l * NH + hh]                    # [3, HD] f32
                qh = jnp.dot(hn, w_attn_ref[wbase + W_Q],
                             preferred_element_type=jnp.float32) + b_qkv_h[0:1, :]
                kh = jnp.dot(hn, w_attn_ref[wbase + W_K],
                             preferred_element_type=jnp.float32) + b_qkv_h[1:2, :]
                vh = jnp.dot(hn, w_attn_ref[wbase + W_V],
                             preferred_element_type=jnp.float32) + b_qkv_h[2:3, :]
                # scores = qh @ kh^T (contract last dims; no explicit transpose)
                s = jax.lax.dot_general(
                    qh.astype(jnp.bfloat16), kh.astype(jnp.bfloat16),
                    (((1,), (1,)), ((), ())),
                    preferred_element_type=jnp.float32) * scale      # [T, T]
                s = s - jnp.max(s, axis=-1, keepdims=True)
                e = jnp.exp(s)
                p = e * pl.reciprocal(jnp.sum(e, axis=-1, keepdims=True),
                                      approx=True)
                oh = jnp.dot(p.astype(jnp.bfloat16), vh.astype(jnp.bfloat16),
                             preferred_element_type=jnp.float32)     # [T, HD]
                # per-head output projection (W_o slice stored transposed
                # as [D, HD]); heads recombine by summation, not concat.
                contrib = jax.lax.dot_general(
                    oh.astype(jnp.bfloat16), w_attn_ref[wbase + W_OT],
                    (((1,), (1,)), ((), ())),
                    preferred_element_type=jnp.float32)              # [T, D]
                attn = contrib if attn is None else attn + contrib
            h = h + attn + b_o

            # --- MLP ---
            hn2 = layer_norm(h, ln2_g, ln2_b).astype(jnp.bfloat16)
            m = jnp.dot(hn2, w_mlp1_ref[l],
                        preferred_element_type=jnp.float32) + b_mlp1_ref[l]
            m = jax.nn.gelu(m, approximate=True)
            m = jnp.dot(m.astype(jnp.bfloat16), w_mlp2_ref[l],
                        preferred_element_type=jnp.float32) + b_2
            h = h + m

        # ---- final layernorm -> last_hidden_state, fused mean pooling ----
        h = layer_norm(h, lnf_g, lnf_b)
        feat_ref[b] = h
        pooled_ref[b] = jnp.mean(h, axis=0, keepdims=True)


# ---------------------------------------------------------------------------
# Wrapper glue: patchify, weight packing, BlockSpecs, feature_reduce dispatch
# ---------------------------------------------------------------------------
def extract_patches(x):
    """NCHW image -> [B, N_patches, C*P*P] (ViT conv patch-embed flattening)."""
    b, c, h, w = x.shape
    x = x.reshape(b, c, h // P, P, w // P, P)
    x = x.transpose(0, 2, 4, 1, 3, 5)                 # [B, nH, nW, C, P, P]
    return x.reshape(b, (h // P) * (w // P), c * P * P)


def _full_spec(shape):
    nd = len(shape)
    return pl.BlockSpec(shape, lambda i, _nd=nd: (0,) * _nd)


def _images_per_step(batch):
    """v5e/v6e (single TensorCore): fold the whole batch into one grid step to
    amortize per-step overhead. v7x (2 TCs): keep a parallel batch axis."""
    kind = ""
    try:
        kind = jax.devices()[0].device_kind.lower()
    except Exception:
        pass
    n_cores = 2 if ("v7" in kind or "7x" in kind) else 1
    if n_cores > 1 and batch % n_cores == 0:
        return batch // n_cores
    return batch


def pack_params(params):
    """One-time repack of the module weights into a few stacked slabs
    (bf16 matmul operands, f32 bias/vector rows)."""
    bf16 = jnp.bfloat16

    # per-(layer, head) attention weights: Wq, Wk, Wv [D, HD] and Wo^T [D, HD]
    wblocks, bblocks = [], []
    for l in range(L):
        wq_full = params["w_qkv"][l][:, 0:D]
        wk_full = params["w_qkv"][l][:, D:2 * D]
        wv_full = params["w_qkv"][l][:, 2 * D:3 * D]
        wo_full = params["w_o"][l]
        bq_full = params["b_qkv"][l][0, 0:D]
        bk_full = params["b_qkv"][l][0, D:2 * D]
        bv_full = params["b_qkv"][l][0, 2 * D:3 * D]
        for hh in range(NH):
            sl = slice(hh * HD, (hh + 1) * HD)
            wblocks += [wq_full[:, sl], wk_full[:, sl], wv_full[:, sl],
                        wo_full[sl, :].T]
            bblocks.append(jnp.stack([bq_full[sl], bk_full[sl], bv_full[sl]], 0))
    w_attn = jnp.stack(wblocks, axis=0).astype(bf16)           # [L*NH*4, D, HD]
    b_attn = jnp.stack(bblocks, axis=0).astype(jnp.float32)    # [L*NH, 3, HD]

    # token-bias slab: row 0 = cls + pos[0]; rows 1.. = b_patch + pos[k]
    tok_bias = params["pos"] + params["b_patch"]
    tok_bias = tok_bias.at[0].set(params["cls"][0] + params["pos"][0])

    vecs = jnp.zeros((N_VEC_ROWS, D), jnp.float32)
    vecs = vecs.at[R_TOKBIAS:R_TOKBIAS + T].set(tok_bias)
    vecs = vecs.at[R_LNF].set(params["lnf_g"][0])
    vecs = vecs.at[R_LNF + 1].set(params["lnf_b"][0])
    for l in range(L):
        base = R_LAYER + l * LAYER_STRIDE
        vecs = vecs.at[base + 0].set(params["ln1_g"][l, 0])
        vecs = vecs.at[base + 1].set(params["ln1_b"][l, 0])
        vecs = vecs.at[base + 2].set(params["b_o"][l, 0])
        vecs = vecs.at[base + 3].set(params["ln2_g"][l, 0])
        vecs = vecs.at[base + 4].set(params["ln2_b"][l, 0])
        vecs = vecs.at[base + 5].set(params["b_2"][l, 0])

    return {
        "w_patch": params["w_patch"].astype(bf16),     # [PD, D]
        "w_attn": w_attn,
        "b_attn": b_attn,
        "w_mlp1": params["w_1"].astype(bf16),          # [L, D, MLP]
        "b_mlp1": params["b_1"].astype(jnp.float32),   # [L, 1, MLP]
        "w_mlp2": params["w_2"].astype(bf16),          # [L, MLP, D]
        "vecs": vecs,                                  # [N_VEC_ROWS, D]
    }


@functools.partial(jax.jit, static_argnames=("feature_reduce_method",
                                             "images_per_step"))
def _forward(x, packed, feature_reduce_method, images_per_step):
    batch = x.shape[0]
    bb = images_per_step
    assert batch % bb == 0

    # patchify and prepend a zero row per image (the CLS slot); bf16 for MXU.
    patches = extract_patches(x)                                   # [B, NP, PD]
    patches_ext = jnp.pad(patches, ((0, 0), (1, 0), (0, 0)))       # [B, T, PD]
    patches_ext = patches_ext.astype(jnp.bfloat16)

    operands = [patches_ext, packed["w_patch"], packed["w_attn"],
                packed["b_attn"], packed["w_mlp1"], packed["b_mlp1"],
                packed["w_mlp2"], packed["vecs"]]

    in_specs = [pl.BlockSpec((bb, T, PD), lambda i: (i, 0, 0))]
    in_specs += [_full_spec(op.shape) for op in operands[1:]]

    out_shapes = (
        jax.ShapeDtypeStruct((batch, T, D), jnp.float32),   # last_hidden_state
        jax.ShapeDtypeStruct((batch, 1, D), jnp.float32),   # mean-pooled feature
    )
    out_specs = (
        pl.BlockSpec((bb, T, D), lambda i: (i, 0, 0)),
        pl.BlockSpec((bb, 1, D), lambda i: (i, 0, 0)),
    )

    feat, pooled = pl.pallas_call(
        vit_encoder_kernel,
        out_shape=out_shapes,
        grid_spec=pltpu.PrefetchScalarGridSpec(
            num_scalar_prefetch=0,
            grid=(batch // bb,),
            in_specs=in_specs,
            out_specs=out_specs,
        ),
        compiler_params=pltpu.CompilerParams(dimension_semantics=("parallel",)),
    )(*operands)

    # handle_feature_output(feature, feature_reduce_method)
    if feature_reduce_method is None or feature_reduce_method == "identity":
        return feat                                     # [B, T, D]
    elif feature_reduce_method == "mean_pooling":
        return pooled[:, 0, :]                          # [B, D]
    elif feature_reduce_method == "max_pooling":
        return jnp.max(feat, axis=1)                    # [B, D]
    elif feature_reduce_method == "flatten":
        return feat.reshape(feat.shape[0], -1)          # [B, T*D]
    else:
        raise NotImplementedError(feature_reduce_method)


def vfm_encoder_forward(x, packed, feature_reduce_method=None):
    return _forward(x, packed,
                    feature_reduce_method=feature_reduce_method,
                    images_per_step=_images_per_step(x.shape[0]))


# ---------------------------------------------------------------------------
# Deterministic parameter init (shapes implied by the synthetic ViT encoder)
# ---------------------------------------------------------------------------
def init_params(key):
    ks = jax.random.split(key, 8)
    s = 0.02
    return {
        "w_patch": s * jax.random.normal(ks[0], (PD, D), jnp.float32),
        "b_patch": jnp.zeros((1, D), jnp.float32),
        "cls":     s * jax.random.normal(ks[1], (1, D), jnp.float32),
        "pos":     s * jax.random.normal(ks[2], (T, D), jnp.float32),
        "ln1_g":   jnp.ones((L, 1, D), jnp.float32),
        "ln1_b":   jnp.zeros((L, 1, D), jnp.float32),
        "w_qkv":   s * jax.random.normal(ks[3], (L, D, 3 * D), jnp.float32),
        "b_qkv":   jnp.zeros((L, 1, 3 * D), jnp.float32),
        "w_o":     s * jax.random.normal(ks[4], (L, D, D), jnp.float32),
        "b_o":     jnp.zeros((L, 1, D), jnp.float32),
        "ln2_g":   jnp.ones((L, 1, D), jnp.float32),
        "ln2_b":   jnp.zeros((L, 1, D), jnp.float32),
        "w_1":     s * jax.random.normal(ks[5], (L, D, MLP), jnp.float32),
        "b_1":     jnp.zeros((L, 1, MLP), jnp.float32),
        "w_2":     s * jax.random.normal(ks[6], (L, MLP, D), jnp.float32),
        "b_2":     jnp.zeros((L, 1, D), jnp.float32),
        "lnf_g":   jnp.ones((1, D), jnp.float32),
        "lnf_b":   jnp.zeros((1, D), jnp.float32),
    }


# ---------------------------------------------------------------------------
# Pure-JAX reference (same bf16-operand / f32-accumulate numerics as kernel)
# ---------------------------------------------------------------------------
def reference_forward(x, params, feature_reduce_method=None):
    f32, bf16 = jnp.float32, jnp.bfloat16

    def ln(v, g, b):
        mu = jnp.mean(v, axis=-1, keepdims=True)
        var = jnp.mean(jnp.square(v - mu), axis=-1, keepdims=True)
        return (v - mu) * jax.lax.rsqrt(var + LN_EPS) * g + b

    def mm(a, w):   # bf16 operands, f32 accumulation (matches the kernel MXU use)
        return jnp.einsum("...td,de->...te", a.astype(bf16), w.astype(bf16),
                          preferred_element_type=f32)

    patches = extract_patches(x)                                     # [B, NP, PD]
    emb = mm(patches, params["w_patch"]) + params["b_patch"]
    cls = jnp.broadcast_to(params["cls"][None], (x.shape[0], 1, D))
    h = jnp.concatenate([cls, emb], axis=1) + params["pos"][None]    # [B, T, D]

    scale = 1.0 / math.sqrt(HD)
    for l in range(L):
        hn = ln(h, params["ln1_g"][l], params["ln1_b"][l])
        qkv = mm(hn, params["w_qkv"][l]) + params["b_qkv"][l]
        q, k, v = qkv[..., :D], qkv[..., D:2 * D], qkv[..., 2 * D:]
        outs = []
        for hh in range(NH):
            sl = slice(hh * HD, (hh + 1) * HD)
            qh, kh, vh = q[..., sl], k[..., sl], v[..., sl]
            s = jnp.einsum("bqd,bkd->bqk", qh.astype(bf16), kh.astype(bf16),
                           preferred_element_type=f32) * scale
            p = jax.nn.softmax(s, axis=-1)
            outs.append(jnp.einsum("bqk,bkd->bqd", p.astype(bf16),
                                   vh.astype(bf16), preferred_element_type=f32))
        attn = jnp.concatenate(outs, axis=-1)
        h = h + mm(attn, params["w_o"][l]) + params["b_o"][l]

        hn2 = ln(h, params["ln2_g"][l], params["ln2_b"][l])
        m = mm(hn2, params["w_1"][l]) + params["b_1"][l]
        m = jax.nn.gelu(m, approximate=True)
        m = mm(m, params["w_2"][l]) + params["b_2"][l]
        h = h + m

    h = ln(h, params["lnf_g"], params["lnf_b"])
    if feature_reduce_method == "mean_pooling":
        return jnp.mean(h, axis=1)
    return h


# ---------------------------------------------------------------------------
if __name__ == "__main__":
    key = jax.random.PRNGKey(0)
    k_img, k_par = jax.random.split(key)
    x = jax.random.uniform(k_img, (B, C, H, W), jnp.float32)   # NCHW image
    params = init_params(k_par)
    packed = pack_params(params)                               # one-time repack

    # last_hidden_state (feature_reduce_method=None, the module default)
    feat = vfm_encoder_forward(x, packed, feature_reduce_method=None)
    feat = jax.block_until_ready(feat)

    # mean-pooled feature (feature_reduce_method="mean_pooling")
    pooled = vfm_encoder_forward(x, packed, feature_reduce_method="mean_pooling")
    pooled = jax.block_until_ready(pooled)

    # Correctness check vs a pure-JAX reference using the same bf16-operand /
    # f32-accumulate matmul numerics. Residual differences: MXU vs XLA
    # accumulation order (~1e-6), approx EUP reciprocal in softmax (~2^-12
    # relative), layernorm rsqrt rounding — comfortably inside 2e-2 on O(1)
    # outputs.
    ref_feat = reference_forward(x, params, None)
    ref_pool = reference_forward(x, params, "mean_pooling")
    assert feat.shape == (B, T, D) and pooled.shape == (B, D)
    assert jnp.allclose(feat, ref_feat, atol=2e-2, rtol=2e-2)
    assert jnp.allclose(pooled, ref_pool, atol=2e-2, rtol=2e-2)

    print("KERNEL_OK")
</pallas_src>

<mosaic_0001>
module attributes {stable_mosaic.version = 11 : i64} {
  func.func @vit_encoder_kernel(%arg0: i32, %arg1: memref<2x17x48xbf16, #tpu.memory_space<vmem>>, %arg2: memref<48x32xbf16, #tpu.memory_space<vmem>>, %arg3: memref<16x32x16xbf16, #tpu.memory_space<vmem>>, %arg4: memref<4x3x16xf32, #tpu.memory_space<vmem>>, %arg5: memref<2x32x128xbf16, #tpu.memory_space<vmem>>, %arg6: memref<2x1x128xf32, #tpu.memory_space<vmem>>, %arg7: memref<2x128x32xbf16, #tpu.memory_space<vmem>>, %arg8: memref<40x32xf32, #tpu.memory_space<vmem>>, %arg9: memref<2x17x32xf32, #tpu.memory_space<vmem>>, %arg10: memref<2x1x32xf32, #tpu.memory_space<vmem>>) attributes {dimension_semantics = [#tpu.dimension_semantics<parallel>], iteration_bounds = array<i64: 1>, scalar_prefetch = 0 : i64, scratch_operands = 0 : i64, tpu.core_type = #tpu.core_type<tc>, window_params = [{transform_indices = @transform_0, window_bounds = array<i64: 2, 17, 48>}, {pipeline_mode = #tpu.pipeline_mode<synchronous>, transform_indices = @transform_1, window_bounds = array<i64: 48, 32>}, {pipeline_mode = #tpu.pipeline_mode<synchronous>, transform_indices = @transform_2, window_bounds = array<i64: 16, 32, 16>}, {pipeline_mode = #tpu.pipeline_mode<synchronous>, transform_indices = @transform_3, window_bounds = array<i64: 4, 3, 16>}, {pipeline_mode = #tpu.pipeline_mode<synchronous>, transform_indices = @transform_4, window_bounds = array<i64: 2, 32, 128>}, {pipeline_mode = #tpu.pipeline_mode<synchronous>, transform_indices = @transform_5, window_bounds = array<i64: 2, 1, 128>}, {pipeline_mode = #tpu.pipeline_mode<synchronous>, transform_indices = @transform_6, window_bounds = array<i64: 2, 128, 32>}, {pipeline_mode = #tpu.pipeline_mode<synchronous>, transform_indices = @transform_7, window_bounds = array<i64: 40, 32>}, {transform_indices = @transform_8, window_bounds = array<i64: 2, 17, 32>}, {transform_indices = @transform_9, window_bounds = array<i64: 2, 1, 32>}]} {
    %c0 = arith.constant 0 : index
    %c0_0 = arith.constant 0 : index
    %0 = vector.load %arg2[%c0, %c0_0] : memref<48x32xbf16, #tpu.memory_space<vmem>>, vector<48x32xbf16>
    %c0_1 = arith.constant 0 : index
    %c0_2 = arith.constant 0 : index
    %1 = vector.load %arg8[%c0_1, %c0_2] : memref<40x32xf32, #tpu.memory_space<vmem>>, vector<17x32xf32>
    %c17 = arith.constant 17 : index
    %c0_3 = arith.constant 0 : index
    %2 = vector.load %arg8[%c17, %c0_3] : memref<40x32xf32, #tpu.memory_space<vmem>>, vector<1x32xf32>
    %c18 = arith.constant 18 : index
    %c0_4 = arith.constant 0 : index
    %3 = vector.load %arg8[%c18, %c0_4] : memref<40x32xf32, #tpu.memory_space<vmem>>, vector<1x32xf32>
    %c0_5 = arith.constant 0 : index
    %c0_6 = arith.constant 0 : index
    %c0_7 = arith.constant 0 : index
    %4 = vector.load %arg1[%c0_5, %c0_6, %c0_7] : memref<2x17x48xbf16, #tpu.memory_space<vmem>>, vector<1x17x48xbf16>
    %5 = vector.shape_cast %4 : vector<1x17x48xbf16> to vector<17x48xbf16>
    %cst = arith.constant dense<0.000000e+00> : vector<17x32xf32>
    %6 = tpu.matmul %5, %0, %cst {dimension_numbers = #tpu.dot_dimension_numbers<[1], [0], [0], [1], [0, 0, 1, 1], [], []>} : vector<17x48xbf16>, vector<48x32xbf16>, vector<17x32xf32> -> vector<17x32xf32>
    %7 = arith.addf %6, %1 : vector<17x32xf32>
    %c24 = arith.constant 24 : index
    %c0_8 = arith.constant 0 : index
    %8 = vector.load %arg8[%c24, %c0_8] : memref<40x32xf32, #tpu.memory_space<vmem>>, vector<1x32xf32>
    %c25 = arith.constant 25 : index
    %c0_9 = arith.constant 0 : index
    %9 = vector.load %arg8[%c25, %c0_9] : memref<40x32xf32, #tpu.memory_space<vmem>>, vector<1x32xf32>
    %c26 = arith.constant 26 : index
    %c0_10 = arith.constant 0 : index
    %10 = vector.load %arg8[%c26, %c0_10] : memref<40x32xf32, #tpu.memory_space<vmem>>, vector<1x32xf32>
    %c27 = arith.constant 27 : index
    %c0_11 = arith.constant 0 : index
    %11 = vector.load %arg8[%c27, %c0_11] : memref<40x32xf32, #tpu.memory_space<vmem>>, vector<1x32xf32>
    %c28 = arith.constant 28 : index
    %c0_12 = arith.constant 0 : index
    %12 = vector.load %arg8[%c28, %c0_12] : memref<40x32xf32, #tpu.memory_space<vmem>>, vector<1x32xf32>
    %c29 = arith.constant 29 : index
    %c0_13 = arith.constant 0 : index
    %13 = vector.load %arg8[%c29, %c0_13] : memref<40x32xf32, #tpu.memory_space<vmem>>, vector<1x32xf32>
    %cst_14 = arith.constant dense<0.000000e+00> : vector<17xf32>
    %14 = vector.multi_reduction <add>, %7, %cst_14 [1] : vector<17x32xf32> to vector<17xf32>
    %15 = vector.shape_cast %14 : vector<17xf32> to vector<17x1xf32>
    %cst_15 = arith.constant 3.200000e+01 : f32
    %16 = vector.broadcast %cst_15 : f32 to vector<17x1xf32>
    %17 = arith.divf %15, %16 : vector<17x1xf32>
    %18 = vector.broadcast %17 : vector<17x1xf32> to vector<17x32xf32>
    %19 = arith.subf %7, %18 : vector<17x32xf32>
    %20 = arith.mulf %19, %19 : vector<17x32xf32>
    %cst_16 = arith.constant dense<0.000000e+00> : vector<17xf32>
    %21 = vector.multi_reduction <add>, %20, %cst_16 [1] : vector<17x32xf32> to vector<17xf32>
    %22 = vector.shape_cast %21 : vector<17xf32> to vector<17x1xf32>
    %cst_17 = arith.constant 3.200000e+01 : f32
    %23 = vector.broadcast %cst_17 : f32 to vector<17x1xf32>
    %24 = arith.divf %22, %23 : vector<17x1xf32>
    %25 = vector.broadcast %17 : vector<17x1xf32> to vector<17x32xf32>
    %26 = arith.subf %7, %25 : vector<17x32xf32>
    %cst_18 = arith.constant 9.99999997E-7 : f32
    %27 = vector.broadcast %cst_18 : f32 to vector<17x1xf32>
    %28 = arith.addf %24, %27 : vector<17x1xf32>
    %29 = math.rsqrt %28 : vector<17x1xf32>
    %30 = vector.broadcast %29 : vector<17x1xf32> to vector<17x32xf32>
    %31 = arith.mulf %26, %30 : vector<17x32xf32>
    %32 = vector.broadcast %8 : vector<1x32xf32> to vector<17x32xf32>
    %33 = arith.mulf %31, %32 : vector<17x32xf32>
    %34 = vector.broadcast %9 : vector<1x32xf32> to vector<17x32xf32>
    %35 = arith.addf %33, %34 : vector<17x32xf32>
    %36 = arith.truncf %35 : vector<17x32xf32> to vector<17x32xbf16>
    %c0_19 = arith.constant 0 : index
    %c0_20 = arith.constant 0 : index
    %c0_21 = arith.constant 0 : index
    %37 = vector.load %arg4[%c0_19, %c0_20, %c0_21] : memref<4x3x16xf32, #tpu.memory_space<vmem>>, vector<1x3x16xf32>
    %38 = vector.shape_cast %37 : vector<1x3x16xf32> to vector<3x16xf32>
    %c0_22 = arith.constant 0 : index
    %c0_23 = arith.constant 0 : index
    %c0_24 = arith.constant 0 : index
    %39 = vector.load %arg3[%c0_22, %c0_23, %c0_24] : memref<16x32x16xbf16, #tpu.memory_space<vmem>>, vector<1x32x16xbf16>
    %40 = vector.shape_cast %39 : vector<1x32x16xbf16> to vector<32x16xbf16>
    %cst_25 = arith.constant dense<0.000000e+00> : vector<17x16xf32>
    %41 = tpu.matmul %36, %40, %cst_25 {dimension_numbers = #tpu.dot_dimension_numbers<[1], [0], [0], [1], [0, 0, 1, 1], [], []>} : vector<17x32xbf16>, vector<32x16xbf16>, vector<17x16xf32> -> vector<17x16xf32>
    %42 = vector.extract_strided_slice %38 {offsets = [0, 0], sizes = [1, 16], strides = [1, 1]} : vector<3x16xf32> to vector<1x16xf32>
    %43 = vector.broadcast %42 : vector<1x16xf32> to vector<17x16xf32>
    %44 = arith.addf %41, %43 : vector<17x16xf32>
    %c1 = arith.constant 1 : index
    %c0_26 = arith.constant 0 : index
    %c0_27 = arith.constant 0 : index
    %45 = vector.load %arg3[%c1, %c0_26, %c0_27] : memref<16x32x16xbf16, #tpu.memory_space<vmem>>, vector<1x32x16xbf16>
    %46 = vector.shape_cast %45 : vector<1x32x16xbf16> to vector<32x16xbf16>
    %cst_28 = arith.constant dense<0.000000e+00> : vector<17x16xf32>
    %47 = tpu.matmul %36, %46, %cst_28 {dimension_numbers = #tpu.dot_dimension_numbers<[1], [0], [0], [1], [0, 0, 1, 1], [], []>} : vector<17x32xbf16>, vector<32x16xbf16>, vector<17x16xf32> -> vector<17x16xf32>
    %48 = vector.extract_strided_slice %38 {offsets = [1, 0], sizes = [1, 16], strides = [1, 1]} : vector<3x16xf32> to vector<1x16xf32>
    %49 = vector.broadcast %48 : vector<1x16xf32> to vector<17x16xf32>
    %50 = arith.addf %47, %49 : vector<17x16xf32>
    %c2 = arith.constant 2 : index
    %c0_29 = arith.constant 0 : index
    %c0_30 = arith.constant 0 : index
    %51 = vector.load %arg3[%c2, %c0_29, %c0_30] : memref<16x32x16xbf16, #tpu.memory_space<vmem>>, vector<1x32x16xbf16>
    %52 = vector.shape_cast %51 : vector<1x32x16xbf16> to vector<32x16xbf16>
    %cst_31 = arith.constant dense<0.000000e+00> : vector<17x16xf32>
    %53 = tpu.matmul %36, %52, %cst_31 {dimension_numbers = #tpu.dot_dimension_numbers<[1], [0], [0], [1], [0, 0, 1, 1], [], []>} : vector<17x32xbf16>, vector<32x16xbf16>, vector<17x16xf32> -> vector<17x16xf32>
    %54 = vector.extract_strided_slice %38 {offsets = [2, 0], sizes = [1, 16], strides = [1, 1]} : vector<3x16xf32> to vector<1x16xf32>
    %55 = vector.broadcast %54 : vector<1x16xf32> to vector<17x16xf32>
    %56 = arith.addf %53, %55 : vector<17x16xf32>
    %57 = arith.truncf %44 : vector<17x16xf32> to vector<17x16xbf16>
    %58 = arith.truncf %50 : vector<17x16xf32> to vector<17x16xbf16>
    %cst_32 = arith.constant dense<0.000000e+00> : vector<17x17xf32>
    %59 = tpu.matmul %57, %58, %cst_32 {dimension_numbers = #tpu.dot_dimension_numbers<[1], [1], [0], [0], [0, 0, 1, 0], [], []>} : vector<17x16xbf16>, vector<17x16xbf16>, vector<17x17xf32> -> vector<17x17xf32>
    %cst_33 = arith.constant 2.500000e-01 : f32
    %60 = vector.broadcast %cst_33 : f32 to vector<17x17xf32>
    %61 = arith.mulf %59, %60 : vector<17x17xf32>
    %cst_34 = arith.constant dense<0xFF800000> : vector<17xf32>
    %62 = vector.multi_reduction <maximumf>, %61, %cst_34 [1] : vector<17x17xf32> to vector<17xf32>
    %63 = vector.shape_cast %62 : vector<17xf32> to vector<17x1xf32>
    %64 = vector.broadcast %63 : vector<17x1xf32> to vector<17x17xf32>
    %65 = arith.subf %61, %64 : vector<17x17xf32>
    %66 = math.exp %65 : vector<17x17xf32>
    %cst_35 = arith.constant dense<0.000000e+00> : vector<17xf32>
    %67 = vector.multi_reduction <add>, %66, %cst_35 [1] : vector<17x17xf32> to vector<17xf32>
    %68 = vector.shape_cast %67 : vector<17xf32> to vector<17x1xf32>
    %69 = tpu.reciprocal %68 {approx = true} : vector<17x1xf32> -> vector<17x1xf32>
    %70 = vector.broadcast %69 : vector<17x1xf32> to vector<17x17xf32>
    %71 = arith.mulf %66, %70 : vector<17x17xf32>
    %72 = arith.truncf %71 : vector<17x17xf32> to vector<17x17xbf16>
    %73 = arith.truncf %56 : vector<17x16xf32> to vector<17x16xbf16>
    %cst_36 = arith.constant dense<0.000000e+00> : vector<17x16xf32>
    %74 = tpu.matmul %72, %73, %cst_36 {dimension_numbers = #tpu.dot_dimension_numbers<[1], [0], [0], [1], [0, 0, 1, 1], [], []>} : vector<17x17xbf16>, vector<17x16xbf16>, vector<17x16xf32> -> vector<17x16xf32>
    %75 = arith.truncf %74 : vector<17x16xf32> to vector<17x16xbf16>
    %c3 = arith.constant 3 : index
    %c0_37 = arith.constant 0 : index
    %c0_38 = arith.constant 0 : index
    %76 = vector.load %arg3[%c3, %c0_37, %c0_38] : memref<16x32x16xbf16, #tpu.memory_space<vmem>>, vector<1x32x16xbf16>
    %77 = vector.shape_cast %76 : vector<1x32x16xbf16> to vector<32x16xbf16>
    %cst_39 = arith.constant dense<0.000000e+00> : vector<17x32xf32>
    %78 = tpu.matmul %75, %77, %cst_39 {dimension_numbers = #tpu.dot_dimension_numbers<[1], [1], [0], [0], [0, 0, 1, 0], [], []>} : vector<17x16xbf16>, vector<32x16xbf16>, vector<17x32xf32> -> vector<17x32xf32>
    %c1_40 = arith.constant 1 : index
    %c0_41 = arith.constant 0 : index
    %c0_42 = arith.constant 0 : index
    %79 = vector.load %arg4[%c1_40, %c0_41, %c0_42] : memref<4x3x16xf32, #tpu.memory_space<vmem>>, vector<1x3x16xf32>
    %80 = vector.shape_cast %79 : vector<1x3x16xf32> to vector<3x16xf32>
    %c4 = arith.constant 4 : index
    %c0_43 = arith.constant 0 : index
    %c0_44 = arith.constant 0 : index
    %81 = vector.load %arg3[%c4, %c0_43, %c0_44] : memref<16x32x16xbf16, #tpu.memory_space<vmem>>, vector<1x32x16xbf16>
    %82 = vector.shape_cast %81 : vector<1x32x16xbf16> to vector<32x16xbf16>
    %cst_45 = arith.constant dense<0.000000e+00> : vector<17x16xf32>
    %83 = tpu.matmul %36, %82, %cst_45 {dimension_numbers = #tpu.dot_dimension_numbers<[1], [0], [0], [1], [0, 0, 1, 1], [], []>} : vector<17x32xbf16>, vector<32x16xbf16>, vector<17x16xf32> -> vector<17x16xf32>
    %84 = vector.extract_strided_slice %80 {offsets = [0, 0], sizes = [1, 16], strides = [1, 1]} : vector<3x16xf32> to vector<1x16xf32>
    %85 = vector.broadcast %84 : vector<1x16xf32> to vector<17x16xf32>
    %86 = arith.addf %83, %85 : vector<17x16xf32>
    %c5 = arith.constant 5 : index
    %c0_46 = arith.constant 0 : index
    %c0_47 = arith.constant 0 : index
    %87 = vector.load %arg3[%c5, %c0_46, %c0_47] : memref<16x32x16xbf16, #tpu.memory_space<vmem>>, vector<1x32x16xbf16>
    %88 = vector.shape_cast %87 : vector<1x32x16xbf16> to vector<32x16xbf16>
    %cst_48 = arith.constant dense<0.000000e+00> : vector<17x16xf32>
    %89 = tpu.matmul %36, %88, %cst_48 {dimension_numbers = #tpu.dot_dimension_numbers<[1], [0], [0], [1], [0, 0, 1, 1], [], []>} : vector<17x32xbf16>, vector<32x16xbf16>, vector<17x16xf32> -> vector<17x16xf32>
    %90 = vector.extract_strided_slice %80 {offsets = [1, 0], sizes = [1, 16], strides = [1, 1]} : vector<3x16xf32> to vector<1x16xf32>
    %91 = vector.broadcast %90 : vector<1x16xf32> to vector<17x16xf32>
    %92 = arith.addf %89, %91 : vector<17x16xf32>
    %c6 = arith.constant 6 : index
    %c0_49 = arith.constant 0 : index
    %c0_50 = arith.constant 0 : index
    %93 = vector.load %arg3[%c6, %c0_49, %c0_50] : memref<16x32x16xbf16, #tpu.memory_space<vmem>>, vector<1x32x16xbf16>
    %94 = vector.shape_cast %93 : vector<1x32x16xbf16> to vector<32x16xbf16>
    %cst_51 = arith.constant dense<0.000000e+00> : vector<17x16xf32>
    %95 = tpu.matmul %36, %94, %cst_51 {dimension_numbers = #tpu.dot_dimension_numbers<[1], [0], [0], [1], [0, 0, 1, 1], [], []>} : vector<17x32xbf16>, vector<32x16xbf16>, vector<17x16xf32> -> vector<17x16xf32>
    %96 = vector.extract_strided_slice %80 {offsets = [2, 0], sizes = [1, 16], strides = [1, 1]} : vector<3x16xf32> to vector<1x16xf32>
    %97 = vector.broadcast %96 : vector<1x16xf32> to vector<17x16xf32>
    %98 = arith.addf %95, %97 : vector<17x16xf32>
    %99 = arith.truncf %86 : vector<17x16xf32> to vector<17x16xbf16>
    %100 = arith.truncf %92 : vector<17x16xf32> to vector<17x16xbf16>
    %cst_52 = arith.constant dense<0.000000e+00> : vector<17x17xf32>
    %101 = tpu.matmul %99, %100, %cst_52 {dimension_numbers = #tpu.dot_dimension_numbers<[1], [1], [0], [0], [0, 0, 1, 0], [], []>} : vector<17x16xbf16>, vector<17x16xbf16>, vector<17x17xf32> -> vector<17x17xf32>
    %cst_53 = arith.constant 2.500000e-01 : f32
    %102 = vector.broadcast %cst_53 : f32 to vector<17x17xf32>
    %103 = arith.mulf %101, %102 : vector<17x17xf32>
    %cst_54 = arith.constant dense<0xFF800000> : vector<17xf32>
    %104 = vector.multi_reduction <maximumf>, %103, %cst_54 [1] : vector<17x17xf32> to vector<17xf32>
    %105 = vector.shape_cast %104 : vector<17xf32> to vector<17x1xf32>
    %106 = vector.broadcast %105 : vector<17x1xf32> to vector<17x17xf32>
    %107 = arith.subf %103, %106 : vector<17x17xf32>
    %108 = math.exp %107 : vector<17x17xf32>
    %cst_55 = arith.constant dense<0.000000e+00> : vector<17xf32>
    %109 = vector.multi_reduction <add>, %108, %cst_55 [1] : vector<17x17xf32> to vector<17xf32>
    %110 = vector.shape_cast %109 : vector<17xf32> to vector<17x1xf32>
    %111 = tpu.reciprocal %110 {approx = true} : vector<17x1xf32> -> vector<17x1xf32>
    %112 = vector.broadcast %111 : vector<17x1xf32> to vector<17x17xf32>
    %113 = arith.mulf %108, %112 : vector<17x17xf32>
    %114 = arith.truncf %113 : vector<17x17xf32> to vector<17x17xbf16>
    %115 = arith.truncf %98 : vector<17x16xf32> to vector<17x16xbf16>
    %cst_56 = arith.constant dense<0.000000e+00> : vector<17x16xf32>
    %116 = tpu.matmul %114, %115, %cst_56 {dimension_numbers = #tpu.dot_dimension_numbers<[1], [0], [0], [1], [0, 0, 1, 1], [], []>} : vector<17x17xbf16>, vector<17x16xbf16>, vector<17x16xf32> -> vector<17x16xf32>
    %117 = arith.truncf %116 : vector<17x16xf32> to vector<17x16xbf16>
    %c7 = arith.constant 7 : index
    %c0_57 = arith.constant 0 : index
    %c0_58 = arith.constant 0 : index
    %118 = vector.load %arg3[%c7, %c0_57, %c0_58] : memref<16x32x16xbf16, #tpu.memory_space<vmem>>, vector<1x32x16xbf16>
    %119 = vector.shape_cast %118 : vector<1x32x16xbf16> to vector<32x16xbf16>
    %cst_59 = arith.constant dense<0.000000e+00> : vector<17x32xf32>
    %120 = tpu.matmul %117, %119, %cst_59 {dimension_numbers = #tpu.dot_dimension_numbers<[1], [1], [0], [0], [0, 0, 1, 0], [], []>} : vector<17x16xbf16>, vector<32x16xbf16>, vector<17x32xf32> -> vector<17x32xf32>
    %121 = arith.addf %78, %120 : vector<17x32xf32>
    %122 = arith.addf %7, %121 : vector<17x32xf32>
    %123 = vector.broadcast %10 : vector<1x32xf32> to vector<17x32xf32>
    %124 = arith.addf %122, %123 : vector<17x32xf32>
    %cst_60 = arith.constant dense<0.000000e+00> : vector<17xf32>
    %125 = vector.multi_reduction <add>, %124, %cst_60 [1] : vector<17x32xf32> to vector<17xf32>
    %126 = vector.shape_cast %125 : vector<17xf32> to vector<17x1xf32>
    %cst_61 = arith.constant 3.200000e+01 : f32
    %127 = vector.broadcast %cst_61 : f32 to vector<17x1xf32>
    %128 = arith.divf %126, %127 : vector<17x1xf32>
    %129 = vector.broadcast %128 : vector<17x1xf32> to vector<17x32xf32>
    %130 = arith.subf %124, %129 : vector<17x32xf32>
    %131 = arith.mulf %130, %130 : vector<17x32xf32>
    %cst_62 = arith.constant dense<0.000000e+00> : vector<17xf32>
    %132 = vector.multi_reduction <add>, %131, %cst_62 [1] : vector<17x32xf32> to vector<17xf32>
    %133 = vector.shape_cast %132 : vector<17xf32> to vector<17x1xf32>
    %cst_63 = arith.constant 3.200000e+01 : f32
    %134 = vector.broadcast %cst_63 : f32 to vector<17x1xf32>
    %135 = arith.divf %133, %134 : vector<17x1xf32>
    %136 = vector.broadcast %128 : vector<17x1xf32> to vector<17x32xf32>
    %137 = arith.subf %124, %136 : vector<17x32xf32>
    %cst_64 = arith.constant 9.99999997E-7 : f32
    %138 = vector.broadcast %cst_64 : f32 to vector<17x1xf32>
    %139 = arith.addf %135, %138 : vector<17x1xf32>
    %140 = math.rsqrt %139 : vector<17x1xf32>
    %141 = vector.broadcast %140 : vector<17x1xf32> to vector<17x32xf32>
    %142 = arith.mulf %137, %141 : vector<17x32xf32>
    %143 = vector.broadcast %11 : vector<1x32xf32> to vector<17x32xf32>
    %144 = arith.mulf %142, %143 : vector<17x32xf32>
    %145 = vector.broadcast %12 : vector<1x32xf32> to vector<17x32xf32>
    %146 = arith.addf %144, %145 : vector<17x32xf32>
    %147 = arith.truncf %146 : vector<17x32xf32> to vector<17x32xbf16>
    %c0_65 = arith.constant 0 : index
    %c0_66 = arith.constant 0 : index
    %c0_67 = arith.constant 0 : index
    %148 = vector.load %arg5[%c0_65, %c0_66, %c0_67] : memref<2x32x128xbf16, #tpu.memory_space<vmem>>, vector<1x32x128xbf16>
    %149 = vector.shape_cast %148 : vector<1x32x128xbf16> to vector<32x128xbf16>
    %cst_68 = arith.constant dense<0.000000e+00> : vector<17x128xf32>
    %150 = tpu.matmul %147, %149, %cst_68 {dimension_numbers = #tpu.dot_dimension_numbers<[1], [0], [0], [1], [0, 0, 1, 1], [], []>} : vector<17x32xbf16>, vector<32x128xbf16>, vector<17x128xf32> -> vector<17x128xf32>
    %c0_69 = arith.constant 0 : index
    %c0_70 = arith.constant 0 : index
    %c0_71 = arith.constant 0 : index
    %151 = vector.load %arg6[%c0_69, %c0_70, %c0_71] : memref<2x1x128xf32, #tpu.memory_space<vmem>>, vector<1x1x128xf32>
    %152 = vector.shape_cast %151 : vector<1x1x128xf32> to vector<1x128xf32>
    %153 = vector.broadcast %152 : vector<1x128xf32> to vector<17x128xf32>
    %154 = arith.addf %150, %153 : vector<17x128xf32>
    %155 = arith.mulf %154, %154 : vector<17x128xf32>
    %156 = arith.mulf %154, %155 : vector<17x128xf32>
    %cst_72 = arith.constant 4.471500e-02 : f32
    %157 = vector.broadcast %cst_72 : f32 to vector<17x128xf32>
    %158 = arith.mulf %157, %156 : vector<17x128xf32>
    %159 = arith.addf %154, %158 : vector<17x128xf32>
    %cst_73 = arith.constant 0.797884583 : f32
    %160 = vector.broadcast %cst_73 : f32 to vector<17x128xf32>
    %161 = arith.mulf %160, %159 : vector<17x128xf32>
    %162 = math.tanh %161 : vector<17x128xf32>
    %cst_74 = arith.constant 1.000000e+00 : f32
    %163 = vector.broadcast %cst_74 : f32 to vector<17x128xf32>
    %164 = arith.addf %163, %162 : vector<17x128xf32>
    %cst_75 = arith.constant 5.000000e-01 : f32
    %165 = vector.broadcast %cst_75 : f32 to vector<17x128xf32>
    %166 = arith.mulf %165, %164 : vector<17x128xf32>
    %167 = arith.mulf %154, %166 : vector<17x128xf32>
    %168 = arith.truncf %167 : vector<17x128xf32> to vector<17x128xbf16>
    %c0_76 = arith.constant 0 : index
    %c0_77 = arith.constant 0 : index
    %c0_78 = arith.constant 0 : index
    %169 = vector.load %arg7[%c0_76, %c0_77, %c0_78] : memref<2x128x32xbf16, #tpu.memory_space<vmem>>, vector<1x128x32xbf16>
    %170 = vector.shape_cast %169 : vector<1x128x32xbf16> to vector<128x32xbf16>
    %cst_79 = arith.constant dense<0.000000e+00> : vector<17x32xf32>
    %171 = tpu.matmul %168, %170, %cst_79 {dimension_numbers = #tpu.dot_dimension_numbers<[1], [0], [0], [1], [0, 0, 1, 1], [], []>} : vector<17x128xbf16>, vector<128x32xbf16>, vector<17x32xf32> -> vector<17x32xf32>
    %172 = vector.broadcast %13 : vector<1x32xf32> to vector<17x32xf32>
    %173 = arith.addf %171, %172 : vector<17x32xf32>
    %174 = arith.addf %124, %173 : vector<17x32xf32>
    %c32 = arith.constant 32 : index
    %c0_80 = arith.constant 0 : index
    %175 = vector.load %arg8[%c32, %c0_80] : memref<40x32xf32, #tpu.memory_space<vmem>>, vector<1x32xf32>
    %c33 = arith.constant 33 : index
    %c0_81 = arith.constant 0 : index
    %176 = vector.load %arg8[%c33, %c0_81] : memref<40x32xf32, #tpu.memory_space<vmem>>, vector<1x32xf32>
    %c34 = arith.constant 34 : index
    %c0_82 = arith.constant 0 : index
    %177 = vector.load %arg8[%c34, %c0_82] : memref<40x32xf32, #tpu.memory_space<vmem>>, vector<1x32xf32>
    %c35 = arith.constant 35 : index
    %c0_83 = arith.constant 0 : index
    %178 = vector.load %arg8[%c35, %c0_83] : memref<40x32xf32, #tpu.memory_space<vmem>>, vector<1x32xf32>
    %c36 = arith.constant 36 : index
    %c0_84 = arith.constant 0 : index
    %179 = vector.load %arg8[%c36, %c0_84] : memref<40x32xf32, #tpu.memory_space<vmem>>, vector<1x32xf32>
    %c37 = arith.constant 37 : index
    %c0_85 = arith.constant 0 : index
    %180 = vector.load %arg8[%c37, %c0_85] : memref<40x32xf32, #tpu.memory_space<vmem>>, vector<1x32xf32>
    %cst_86 = arith.constant dense<0.000000e+00> : vector<17xf32>
    %181 = vector.multi_reduction <add>, %174, %cst_86 [1] : vector<17x32xf32> to vector<17xf32>
    %182 = vector.shape_cast %181 : vector<17xf32> to vector<17x1xf32>
    %cst_87 = arith.constant 3.200000e+01 : f32
    %183 = vector.broadcast %cst_87 : f32 to vector<17x1xf32>
    %184 = arith.divf %182, %183 : vector<17x1xf32>
    %185 = vector.broadcast %184 : vector<17x1xf32> to vector<17x32xf32>
    %186 = arith.subf %174, %185 : vector<17x32xf32>
    %187 = arith.mulf %186, %186 : vector<17x32xf32>
    %cst_88 = arith.constant dense<0.000000e+00> : vector<17xf32>
    %188 = vector.multi_reduction <add>, %187, %cst_88 [1] : vector<17x32xf32> to vector<17xf32>
    %189 = vector.shape_cast %188 : vector<17xf32> to vector<17x1xf32>
    %cst_89 = arith.constant 3.200000e+01 : f32
    %190 = vector.broadcast %cst_89 : f32 to vector<17x1xf32>
    %191 = arith.divf %189, %190 : vector<17x1xf32>
    %192 = vector.broadcast %184 : vector<17x1xf32> to vector<17x32xf32>
    %193 = arith.subf %174, %192 : vector<17x32xf32>
    %cst_90 = arith.constant 9.99999997E-7 : f32
    %194 = vector.broadcast %cst_90 : f32 to vector<17x1xf32>
    %195 = arith.addf %191, %194 : vector<17x1xf32>
    %196 = math.rsqrt %195 : vector<17x1xf32>
    %197 = vector.broadcast %196 : vector<17x1xf32> to vector<17x32xf32>
    %198 = arith.mulf %193, %197 : vector<17x32xf32>
    %199 = vector.broadcast %175 : vector<1x32xf32> to vector<17x32xf32>
    %200 = arith.mulf %198, %199 : vector<17x32xf32>
    %201 = vector.broadcast %176 : vector<1x32xf32> to vector<17x32xf32>
    %202 = arith.addf %200, %201 : vector<17x32xf32>
    %203 = arith.truncf %202 : vector<17x32xf32> to vector<17x32xbf16>
    %c2_91 = arith.constant 2 : index
    %c0_92 = arith.constant 0 : index
    %c0_93 = arith.constant 0 : index
    %204 = vector.load %arg4[%c2_91, %c0_92, %c0_93] : memref<4x3x16xf32, #tpu.memory_space<vmem>>, vector<1x3x16xf32>
    %205 = vector.shape_cast %204 : vector<1x3x16xf32> to vector<3x16xf32>
    %c8 = arith.constant 8 : index
    %c0_94 = arith.constant 0 : index
    %c0_95 = arith.constant 0 : index
    %206 = vector.load %arg3[%c8, %c0_94, %c0_95] : memref<16x32x16xbf16, #tpu.memory_space<vmem>>, vector<1x32x16xbf16>
    %207 = vector.shape_cast %206 : vector<1x32x16xbf16> to vector<32x16xbf16>
    %cst_96 = arith.constant dense<0.000000e+00> : vector<17x16xf32>
    %208 = tpu.matmul %203, %207, %cst_96 {dimension_numbers = #tpu.dot_dimension_numbers<[1], [0], [0], [1], [0, 0, 1, 1], [], []>} : vector<17x32xbf16>, vector<32x16xbf16>, vector<17x16xf32> -> vector<17x16xf32>
    %209 = vector.extract_strided_slice %205 {offsets = [0, 0], sizes = [1, 16], strides = [1, 1]} : vector<3x16xf32> to vector<1x16xf32>
    %210 = vector.broadcast %209 : vector<1x16xf32> to vector<17x16xf32>
    %211 = arith.addf %208, %210 : vector<17x16xf32>
    %c9 = arith.constant 9 : index
    %c0_97 = arith.constant 0 : index
    %c0_98 = arith.constant 0 : index
    %212 = vector.load %arg3[%c9, %c0_97, %c0_98] : memref<16x32x16xbf16, #tpu.memory_space<vmem>>, vector<1x32x16xbf16>
    %213 = vector.shape_cast %212 : vector<1x32x16xbf16> to vector<32x16xbf16>
    %cst_99 = arith.constant dense<0.000000e+00> : vector<17x16xf32>
    %214 = tpu.matmul %203, %213, %cst_99 {dimension_numbers = #tpu.dot_dimension_numbers<[1], [0], [0], [1], [0, 0, 1, 1], [], []>} : vector<17x32xbf16>, vector<32x16xbf16>, vector<17x16xf32> -> vector<17x16xf32>
    %215 = vector.extract_strided_slice %205 {offsets = [1, 0], sizes = [1, 16], strides = [1, 1]} : vector<3x16xf32> to vector<1x16xf32>
    %216 = vector.broadcast %215 : vector<1x16xf32> to vector<17x16xf32>
    %217 = arith.addf %214, %216 : vector<17x16xf32>
    %c10 = arith.constant 10 : index
    %c0_100 = arith.constant 0 : index
    %c0_101 = arith.constant 0 : index
    %218 = vector.load %arg3[%c10, %c0_100, %c0_101] : memref<16x32x16xbf16, #tpu.memory_space<vmem>>, vector<1x32x16xbf16>
    %219 = vector.shape_cast %218 : vector<1x32x16xbf16> to vector<32x16xbf16>
    %cst_102 = arith.constant dense<0.000000e+00> : vector<17x16xf32>
    %220 = tpu.matmul %203, %219, %cst_102 {dimension_numbers = #tpu.dot_dimension_numbers<[1], [0], [0], [1], [0, 0, 1, 1], [], []>} : vector<17x32xbf16>, vector<32x16xbf16>, vector<17x16xf32> -> vector<17x16xf32>
    %221 = vector.extract_strided_slice %205 {offsets = [2, 0], sizes = [1, 16], strides = [1, 1]} : vector<3x16xf32> to vector<1x16xf32>
    %222 = vector.broadcast %221 : vector<1x16xf32> to vector<17x16xf32>
    %223 = arith.addf %220, %222 : vector<17x16xf32>
    %224 = arith.truncf %211 : vector<17x16xf32> to vector<17x16xbf16>
    %225 = arith.truncf %217 : vector<17x16xf32> to vector<17x16xbf16>
    %cst_103 = arith.constant dense<0.000000e+00> : vector<17x17xf32>
    %226 = tpu.matmul %224, %225, %cst_103 {dimension_numbers = #tpu.dot_dimension_numbers<[1], [1], [0], [0], [0, 0, 1, 0], [], []>} : vector<17x16xbf16>, vector<17x16xbf16>, vector<17x17xf32> -> vector<17x17xf32>
    %cst_104 = arith.constant 2.500000e-01 : f32
    %227 = vector.broadcast %cst_104 : f32 to vector<17x17xf32>
    %228 = arith.mulf %226, %227 : vector<17x17xf32>
    %cst_105 = arith.constant dense<0xFF800000> : vector<17xf32>
    %229 = vector.multi_reduction <maximumf>, %228, %cst_105 [1] : vector<17x17xf32> to vector<17xf32>
    %230 = vector.shape_cast %229 : vector<17xf32> to vector<17x1xf32>
    %231 = vector.broadcast %230 : vector<17x1xf32> to vector<17x17xf32>
    %232 = arith.subf %228, %231 : vector<17x17xf32>
    %233 = math.exp %232 : vector<17x17xf32>
    %cst_106 = arith.constant dense<0.000000e+00> : vector<17xf32>
    %234 = vector.multi_reduction <add>, %233, %cst_106 [1] : vector<17x17xf32> to vector<17xf32>
    %235 = vector.shape_cast %234 : vector<17xf32> to vector<17x1xf32>
    %236 = tpu.reciprocal %235 {approx = true} : vector<17x1xf32> -> vector<17x1xf32>
    %237 = vector.broadcast %236 : vector<17x1xf32> to vector<17x17xf32>
    %238 = arith.mulf %233, %237 : vector<17x17xf32>
    %239 = arith.truncf %238 : vector<17x17xf32> to vector<17x17xbf16>
    %240 = arith.truncf %223 : vector<17x16xf32> to vector<17x16xbf16>
    %cst_107 = arith.constant dense<0.000000e+00> : vector<17x16xf32>
    %241 = tpu.matmul %239, %240, %cst_107 {dimension_numbers = #tpu.dot_dimension_numbers<[1], [0], [0], [1], [0, 0, 1, 1], [], []>} : vector<17x17xbf16>, vector<17x16xbf16>, vector<17x16xf32> -> vector<17x16xf32>
    %242 = arith.truncf %241 : vector<17x16xf32> to vector<17x16xbf16>
    %c11 = arith.constant 11 : index
    %c0_108 = arith.constant 0 : index
    %c0_109 = arith.constant 0 : index
    %243 = vector.load %arg3[%c11, %c0_108, %c0_109] : memref<16x32x16xbf16, #tpu.memory_space<vmem>>, vector<1x32x16xbf16>
    %244 = vector.shape_cast %243 : vector<1x32x16xbf16> to vector<32x16xbf16>
    %cst_110 = arith.constant dense<0.000000e+00> : vector<17x32xf32>
    %245 = tpu.matmul %242, %244, %cst_110 {dimension_numbers = #tpu.dot_dimension_numbers<[1], [1], [0], [0], [0, 0, 1, 0], [], []>} : vector<17x16xbf16>, vector<32x16xbf16>, vector<17x32xf32> -> vector<17x32xf32>
    %c3_111 = arith.constant 3 : index
    %c0_112 = arith.constant 0 : index
    %c0_113 = arith.constant 0 : index
    %246 = vector.load %arg4[%c3_111, %c0_112, %c0_113] : memref<4x3x16xf32, #tpu.memory_space<vmem>>, vector<1x3x16xf32>
    %247 = vector.shape_cast %246 : vector<1x3x16xf32> to vector<3x16xf32>
    %c12 = arith.constant 12 : index
    %c0_114 = arith.constant 0 : index
    %c0_115 = arith.constant 0 : index
    %248 = vector.load %arg3[%c12, %c0_114, %c0_115] : memref<16x32x16xbf16, #tpu.memory_space<vmem>>, vector<1x32x16xbf16>
    %249 = vector.shape_cast %248 : vector<1x32x16xbf16> to vector<32x16xbf16>
    %cst_116 = arith.constant dense<0.000000e+00> : vector<17x16xf32>
    %250 = tpu.matmul %203, %249, %cst_116 {dimension_numbers = #tpu.dot_dimension_numbers<[1], [0], [0], [1], [0, 0, 1, 1], [], []>} : vector<17x32xbf16>, vector<32x16xbf16>, vector<17x16xf32> -> vector<17x16xf32>
    %251 = vector.extract_strided_slice %247 {offsets = [0, 0], sizes = [1, 16], strides = [1, 1]} : vector<3x16xf32> to vector<1x16xf32>
    %252 = vector.broadcast %251 : vector<1x16xf32> to vector<17x16xf32>
    %253 = arith.addf %250, %252 : vector<17x16xf32>
    %c13 = arith.constant 13 : index
    %c0_117 = arith.constant 0 : index
    %c0_118 = arith.constant 0 : index
    %254 = vector.load %arg3[%c13, %c0_117, %c0_118] : memref<16x32x16xbf16, #tpu.memory_space<vmem>>, vector<1x32x16xbf16>
    %255 = vector.shape_cast %254 : vector<1x32x16xbf16> to vector<32x16xbf16>
    %cst_119 = arith.constant dense<0.000000e+00> : vector<17x16xf32>
    %256 = tpu.matmul %203, %255, %cst_119 {dimension_numbers = #tpu.dot_dimension_numbers<[1], [0], [0], [1], [0, 0, 1, 1], [], []>} : vector<17x32xbf16>, vector<32x16xbf16>, vector<17x16xf32> -> vector<17x16xf32>
    %257 = vector.extract_strided_slice %247 {offsets = [1, 0], sizes = [1, 16], strides = [1, 1]} : vector<3x16xf32> to vector<1x16xf32>
    %258 = vector.broadcast %257 : vector<1x16xf32> to vector<17x16xf32>
    %259 = arith.addf %256, %258 : vector<17x16xf32>
    %c14 = arith.constant 14 : index
    %c0_120 = arith.constant 0 : index
    %c0_121 = arith.constant 0 : index
    %260 = vector.load %arg3[%c14, %c0_120, %c0_121] : memref<16x32x16xbf16, #tpu.memory_space<vmem>>, vector<1x32x16xbf16>
    %261 = vector.shape_cast %260 : vector<1x32x16xbf16> to vector<32x16xbf16>
    %cst_122 = arith.constant dense<0.000000e+00> : vector<17x16xf32>
    %262 = tpu.matmul %203, %261, %cst_122 {dimension_numbers = #tpu.dot_dimension_numbers<[1], [0], [0], [1], [0, 0, 1, 1], [], []>} : vector<17x32xbf16>, vector<32x16xbf16>, vector<17x16xf32> -> vector<17x16xf32>
    %263 = vector.extract_strided_slice %247 {offsets = [2, 0], sizes = [1, 16], strides = [1, 1]} : vector<3x16xf32> to vector<1x16xf32>
    %264 = vector.broadcast %263 : vector<1x16xf32> to vector<17x16xf32>
    %265 = arith.addf %262, %264 : vector<17x16xf32>
    %266 = arith.truncf %253 : vector<17x16xf32> to vector<17x16xbf16>
    %267 = arith.truncf %259 : vector<17x16xf32> to vector<17x16xbf16>
    %cst_123 = arith.constant dense<0.000000e+00> : vector<17x17xf32>
    %268 = tpu.matmul %266, %267, %cst_123 {dimension_numbers = #tpu.dot_dimension_numbers<[1], [1], [0], [0], [0, 0, 1, 0], [], []>} : vector<17x16xbf16>, vector<17x16xbf16>, vector<17x17xf32> -> vector<17x17xf32>
    %cst_124 = arith.constant 2.500000e-01 : f32
    %269 = vector.broadcast %cst_124 : f32 to vector<17x17xf32>
    %270 = arith.mulf %268, %269 : vector<17x17xf32>
    %cst_125 = arith.constant dense<0xFF800000> : vector<17xf32>
    %271 = vector.multi_reduction <maximumf>, %270, %cst_125 [1] : vector<17x17xf32> to vector<17xf32>
    %272 = vector.shape_cast %271 : vector<17xf32> to vector<17x1xf32>
    %273 = vector.broadcast %272 : vector<17x1xf32> to vector<17x17xf32>
    %274 = arith.subf %270, %273 : vector<17x17xf32>
    %275 = math.exp %274 : vector<17x17xf32>
    %cst_126 = arith.constant dense<0.000000e+00> : vector<17xf32>
    %276 = vector.multi_reduction <add>, %275, %cst_126 [1] : vector<17x17xf32> to vector<17xf32>
    %277 = vector.shape_cast %276 : vector<17xf32> to vector<17x1xf32>
    %278 = tpu.reciprocal %277 {approx = true} : vector<17x1xf32> -> vector<17x1xf32>
    %279 = vector.broadcast %278 : vector<17x1xf32> to vector<17x17xf32>
    %280 = arith.mulf %275, %279 : vector<17x17xf32>
    %281 = arith.truncf %280 : vector<17x17xf32> to vector<17x17xbf16>
    %282 = arith.truncf %265 : vector<17x16xf32> to vector<17x16xbf16>
    %cst_127 = arith.constant dense<0.000000e+00> : vector<17x16xf32>
    %283 = tpu.matmul %281, %282, %cst_127 {dimension_numbers = #tpu.dot_dimension_numbers<[1], [0], [0], [1], [0, 0, 1, 1], [], []>} : vector<17x17xbf16>, vector<17x16xbf16>, vector<17x16xf32> -> vector<17x16xf32>
    %284 = arith.truncf %283 : vector<17x16xf32> to vector<17x16xbf16>
    %c15 = arith.constant 15 : index
    %c0_128 = arith.constant 0 : index
    %c0_129 = arith.constant 0 : index
    %285 = vector.load %arg3[%c15, %c0_128, %c0_129] : memref<16x32x16xbf16, #tpu.memory_space<vmem>>, vector<1x32x16xbf16>
    %286 = vector.shape_cast %285 : vector<1x32x16xbf16> to vector<32x16xbf16>
    %cst_130 = arith.constant dense<0.000000e+00> : vector<17x32xf32>
    %287 = tpu.matmul %284, %286, %cst_130 {dimension_numbers = #tpu.dot_dimension_numbers<[1], [1], [0], [0], [0, 0, 1, 0], [], []>} : vector<17x16xbf16>, vector<32x16xbf16>, vector<17x32xf32> -> vector<17x32xf32>
    %288 = arith.addf %245, %287 : vector<17x32xf32>
    %289 = arith.addf %174, %288 : vector<17x32xf32>
    %290 = vector.broadcast %177 : vector<1x32xf32> to vector<17x32xf32>
    %291 = arith.addf %289, %290 : vector<17x32xf32>
    %cst_131 = arith.constant dense<0.000000e+00> : vector<17xf32>
    %292 = vector.multi_reduction <add>, %291, %cst_131 [1] : vector<17x32xf32> to vector<17xf32>
    %293 = vector.shape_cast %292 : vector<17xf32> to vector<17x1xf32>
    %cst_132 = arith.constant 3.200000e+01 : f32
    %294 = vector.broadcast %cst_132 : f32 to vector<17x1xf32>
    %295 = arith.divf %293, %294 : vector<17x1xf32>
    %296 = vector.broadcast %295 : vector<17x1xf32> to vector<17x32xf32>
    %297 = arith.subf %291, %296 : vector<17x32xf32>
    %298 = arith.mulf %297, %297 : vector<17x32xf32>
    %cst_133 = arith.constant dense<0.000000e+00> : vector<17xf32>
    %299 = vector.multi_reduction <add>, %298, %cst_133 [1] : vector<17x32xf32> to vector<17xf32>
    %300 = vector.shape_cast %299 : vector<17xf32> to vector<17x1xf32>
    %cst_134 = arith.constant 3.200000e+01 : f32
    %301 = vector.broadcast %cst_134 : f32 to vector<17x1xf32>
    %302 = arith.divf %300, %301 : vector<17x1xf32>
    %303 = vector.broadcast %295 : vector<17x1xf32> to vector<17x32xf32>
    %304 = arith.subf %291, %303 : vector<17x32xf32>
    %cst_135 = arith.constant 9.99999997E-7 : f32
    %305 = vector.broadcast %cst_135 : f32 to vector<17x1xf32>
    %306 = arith.addf %302, %305 : vector<17x1xf32>
    %307 = math.rsqrt %306 : vector<17x1xf32>
    %308 = vector.broadcast %307 : vector<17x1xf32> to vector<17x32xf32>
    %309 = arith.mulf %304, %308 : vector<17x32xf32>
    %310 = vector.broadcast %178 : vector<1x32xf32> to vector<17x32xf32>
    %311 = arith.mulf %309, %310 : vector<17x32xf32>
    %312 = vector.broadcast %179 : vector<1x32xf32> to vector<17x32xf32>
    %313 = arith.addf %311, %312 : vector<17x32xf32>
    %314 = arith.truncf %313 : vector<17x32xf32> to vector<17x32xbf16>
    %c1_136 = arith.constant 1 : index
    %c0_137 = arith.constant 0 : index
    %c0_138 = arith.constant 0 : index
    %315 = vector.load %arg5[%c1_136, %c0_137, %c0_138] : memref<2x32x128xbf16, #tpu.memory_space<vmem>>, vector<1x32x128xbf16>
    %316 = vector.shape_cast %315 : vector<1x32x128xbf16> to vector<32x128xbf16>
    %cst_139 = arith.constant dense<0.000000e+00> : vector<17x128xf32>
    %317 = tpu.matmul %314, %316, %cst_139 {dimension_numbers = #tpu.dot_dimension_numbers<[1], [0], [0], [1], [0, 0, 1, 1], [], []>} : vector<17x32xbf16>, vector<32x128xbf16>, vector<17x128xf32> -> vector<17x128xf32>
    %c1_140 = arith.constant 1 : index
    %c0_141 = arith.constant 0 : index
    %c0_142 = arith.constant 0 : index
    %318 = vector.load %arg6[%c1_140, %c0_141, %c0_142] : memref<2x1x128xf32, #tpu.memory_space<vmem>>, vector<1x1x128xf32>
    %319 = vector.shape_cast %318 : vector<1x1x128xf32> to vector<1x128xf32>
    %320 = vector.broadcast %319 : vector<1x128xf32> to vector<17x128xf32>
    %321 = arith.addf %317, %320 : vector<17x128xf32>
    %322 = arith.mulf %321, %321 : vector<17x128xf32>
    %323 = arith.mulf %321, %322 : vector<17x128xf32>
    %cst_143 = arith.constant 4.471500e-02 : f32
    %324 = vector.broadcast %cst_143 : f32 to vector<17x128xf32>
    %325 = arith.mulf %324, %323 : vector<17x128xf32>
    %326 = arith.addf %321, %325 : vector<17x128xf32>
    %cst_144 = arith.constant 0.797884583 : f32
    %327 = vector.broadcast %cst_144 : f32 to vector<17x128xf32>
    %328 = arith.mulf %327, %326 : vector<17x128xf32>
    %329 = math.tanh %328 : vector<17x128xf32>
    %cst_145 = arith.constant 1.000000e+00 : f32
    %330 = vector.broadcast %cst_145 : f32 to vector<17x128xf32>
    %331 = arith.addf %330, %329 : vector<17x128xf32>
    %cst_146 = arith.constant 5.000000e-01 : f32
    %332 = vector.broadcast %cst_146 : f32 to vector<17x128xf32>
    %333 = arith.mulf %332, %331 : vector<17x128xf32>
    %334 = arith.mulf %321, %333 : vector<17x128xf32>
    %335 = arith.truncf %334 : vector<17x128xf32> to vector<17x128xbf16>
    %c1_147 = arith.constant 1 : index
    %c0_148 = arith.constant 0 : index
    %c0_149 = arith.constant 0 : index
    %336 = vector.load %arg7[%c1_147, %c0_148, %c0_149] : memref<2x128x32xbf16, #tpu.memory_space<vmem>>, vector<1x128x32xbf16>
    %337 = vector.shape_cast %336 : vector<1x128x32xbf16> to vector<128x32xbf16>
    %cst_150 = arith.constant dense<0.000000e+00> : vector<17x32xf32>
    %338 = tpu.matmul %335, %337, %cst_150 {dimension_numbers = #tpu.dot_dimension_numbers<[1], [0], [0], [1], [0, 0, 1, 1], [], []>} : vector<17x128xbf16>, vector<128x32xbf16>, vector<17x32xf32> -> vector<17x32xf32>
    %339 = vector.broadcast %180 : vector<1x32xf32> to vector<17x32xf32>
    %340 = arith.addf %338, %339 : vector<17x32xf32>
    %341 = arith.addf %291, %340 : vector<17x32xf32>
    %cst_151 = arith.constant dense<0.000000e+00> : vector<17xf32>
    %342 = vector.multi_reduction <add>, %341, %cst_151 [1] : vector<17x32xf32> to vector<17xf32>
    %343 = vector.shape_cast %342 : vector<17xf32> to vector<17x1xf32>
    %cst_152 = arith.constant 3.200000e+01 : f32
    %344 = vector.broadcast %cst_152 : f32 to vector<17x1xf32>
    %345 = arith.divf %343, %344 : vector<17x1xf32>
    %346 = vector.broadcast %345 : vector<17x1xf32> to vector<17x32xf32>
    %347 = arith.subf %341, %346 : vector<17x32xf32>
    %348 = arith.mulf %347, %347 : vector<17x32xf32>
    %cst_153 = arith.constant dense<0.000000e+00> : vector<17xf32>
    %349 = vector.multi_reduction <add>, %348, %cst_153 [1] : vector<17x32xf32> to vector<17xf32>
    %350 = vector.shape_cast %349 : vector<17xf32> to vector<17x1xf32>
    %cst_154 = arith.constant 3.200000e+01 : f32
    %351 = vector.broadcast %cst_154 : f32 to vector<17x1xf32>
    %352 = arith.divf %350, %351 : vector<17x1xf32>
    %353 = vector.broadcast %345 : vector<17x1xf32> to vector<17x32xf32>
    %354 = arith.subf %341, %353 : vector<17x32xf32>
    %cst_155 = arith.constant 9.99999997E-7 : f32
    %355 = vector.broadcast %cst_155 : f32 to vector<17x1xf32>
    %356 = arith.addf %352, %355 : vector<17x1xf32>
    %357 = math.rsqrt %356 : vector<17x1xf32>
    %358 = vector.broadcast %357 : vector<17x1xf32> to vector<17x32xf32>
    %359 = arith.mulf %354, %358 : vector<17x32xf32>
    %360 = vector.broadcast %2 : vector<1x32xf32> to vector<17x32xf32>
    %361 = arith.mulf %359, %360 : vector<17x32xf32>
    %362 = vector.broadcast %3 : vector<1x32xf32> to vector<17x32xf32>
    %363 = arith.addf %361, %362 : vector<17x32xf32>
    %c0_156 = arith.constant 0 : index
    %c0_157 = arith.constant 0 : index
    %c0_158 = arith.constant 0 : index
    %364 = vector.load %arg9[%c0_156, %c0_157, %c0_158] : memref<2x17x32xf32, #tpu.memory_space<vmem>>, vector<1x17x32xf32>
    %365 = vector.shape_cast %364 : vector<1x17x32xf32> to vector<17x32xf32>
    %366 = vector.shape_cast %363 : vector<17x32xf32> to vector<1x17x32xf32>
    tpu.vector_store %arg9[%c0_156, %c0_157, %c0_158], %366 {strides = array<i32>} : memref<2x17x32xf32, #tpu.memory_space<vmem>>, vector<1x17x32xf32>,
    %cst_159 = arith.constant dense<0.000000e+00> : vector<32xf32>
    %367 = vector.multi_reduction <add>, %363, %cst_159 [0] : vector<17x32xf32> to vector<32xf32>
    %368 = vector.shape_cast %367 : vector<32xf32> to vector<1x32xf32>
    %cst_160 = arith.constant 1.700000e+01 : f32
    %369 = vector.broadcast %cst_160 : f32 to vector<1x32xf32>
    %370 = arith.divf %368, %369 : vector<1x32xf32>
    %c0_161 = arith.constant 0 : index
    %c0_162 = arith.constant 0 : index
    %c0_163 = arith.constant 0 : index
    %371 = vector.load %arg10[%c0_161, %c0_162, %c0_163] : memref<2x1x32xf32, #tpu.memory_space<vmem>>, vector<1x1x32xf32>
    %372 = vector.shape_cast %371 : vector<1x1x32xf32> to vector<1x32xf32>
    %373 = vector.shape_cast %370 : vector<1x32xf32> to vector<1x1x32xf32>
    tpu.vector_store %arg10[%c0_161, %c0_162, %c0_163], %373 {strides = array<i32>} : memref<2x1x32xf32, #tpu.memory_space<vmem>>, vector<1x1x32xf32>,
    %c1_164 = arith.constant 1 : index
    %c0_165 = arith.constant 0 : index
    %c0_166 = arith.constant 0 : index
    %374 = vector.load %arg1[%c1_164, %c0_165, %c0_166] : memref<2x17x48xbf16, #tpu.memory_space<vmem>>, vector<1x17x48xbf16>
    %375 = vector.shape_cast %374 : vector<1x17x48xbf16> to vector<17x48xbf16>
    %cst_167 = arith.constant dense<0.000000e+00> : vector<17x32xf32>
    %376 = tpu.matmul %375, %0, %cst_167 {dimension_numbers = #tpu.dot_dimension_numbers<[1], [0], [0], [1], [0, 0, 1, 1], [], []>} : vector<17x48xbf16>, vector<48x32xbf16>, vector<17x32xf32> -> vector<17x32xf32>
    %377 = arith.addf %376, %1 : vector<17x32xf32>
    %c24_168 = arith.constant 24 : index
    %c0_169 = arith.constant 0 : index
    %378 = vector.load %arg8[%c24_168, %c0_169] : memref<40x32xf32, #tpu.memory_space<vmem>>, vector<1x32xf32>
    %c25_170 = arith.constant 25 : index
    %c0_171 = arith.constant 0 : index
    %379 = vector.load %arg8[%c25_170, %c0_171] : memref<40x32xf32, #tpu.memory_space<vmem>>, vector<1x32xf32>
    %c26_172 = arith.constant 26 : index
    %c0_173 = arith.constant 0 : index
    %380 = vector.load %arg8[%c26_172, %c0_173] : memref<40x32xf32, #tpu.memory_space<vmem>>, vector<1x32xf32>
    %c27_174 = arith.constant 27 : index
    %c0_175 = arith.constant 0 : index
    %381 = vector.load %arg8[%c27_174, %c0_175] : memref<40x32xf32, #tpu.memory_space<vmem>>, vector<1x32xf32>
    %c28_176 = arith.constant 28 : index
    %c0_177 = arith.constant 0 : index
    %382 = vector.load %arg8[%c28_176, %c0_177] : memref<40x32xf32, #tpu.memory_space<vmem>>, vector<1x32xf32>
    %c29_178 = arith.constant 29 : index
    %c0_179 = arith.constant 0 : index
    %383 = vector.load %arg8[%c29_178, %c0_179] : memref<40x32xf32, #tpu.memory_space<vmem>>, vector<1x32xf32>
    %cst_180 = arith.constant dense<0.000000e+00> : vector<17xf32>
    %384 = vector.multi_reduction <add>, %377, %cst_180 [1] : vector<17x32xf32> to vector<17xf32>
    %385 = vector.shape_cast %384 : vector<17xf32> to vector<17x1xf32>
    %cst_181 = arith.constant 3.200000e+01 : f32
    %386 = vector.broadcast %cst_181 : f32 to vector<17x1xf32>
    %387 = arith.divf %385, %386 : vector<17x1xf32>
    %388 = vector.broadcast %387 : vector<17x1xf32> to vector<17x32xf32>
    %389 = arith.subf %377, %388 : vector<17x32xf32>
    %390 = arith.mulf %389, %389 : vector<17x32xf32>
    %cst_182 = arith.constant dense<0.000000e+00> : vector<17xf32>
    %391 = vector.multi_reduction <add>, %390, %cst_182 [1] : vector<17x32xf32> to vector<17xf32>
    %392 = vector.shape_cast %391 : vector<17xf32> to vector<17x1xf32>
    %cst_183 = arith.constant 3.200000e+01 : f32
    %393 = vector.broadcast %cst_183 : f32 to vector<17x1xf32>
    %394 = arith.divf %392, %393 : vector<17x1xf32>
    %395 = vector.broadcast %387 : vector<17x1xf32> to vector<17x32xf32>
    %396 = arith.subf %377, %395 : vector<17x32xf32>
    %cst_184 = arith.constant 9.99999997E-7 : f32
    %397 = vector.broadcast %cst_184 : f32 to vector<17x1xf32>
    %398 = arith.addf %394, %397 : vector<17x1xf32>
    %399 = math.rsqrt %398 : vector<17x1xf32>
    %400 = vector.broadcast %399 : vector<17x1xf32> to vector<17x32xf32>
    %401 = arith.mulf %396, %400 : vector<17x32xf32>
    %402 = vector.broadcast %378 : vector<1x32xf32> to vector<17x32xf32>
    %403 = arith.mulf %401, %402 : vector<17x32xf32>
    %404 = vector.broadcast %379 : vector<1x32xf32> to vector<17x32xf32>
    %405 = arith.addf %403, %404 : vector<17x32xf32>
    %406 = arith.truncf %405 : vector<17x32xf32> to vector<17x32xbf16>
    %c0_185 = arith.constant 0 : index
    %c0_186 = arith.constant 0 : index
    %c0_187 = arith.constant 0 : index
    %407 = vector.load %arg4[%c0_185, %c0_186, %c0_187] : memref<4x3x16xf32, #tpu.memory_space<vmem>>, vector<1x3x16xf32>
    %408 = vector.shape_cast %407 : vector<1x3x16xf32> to vector<3x16xf32>
    %c0_188 = arith.constant 0 : index
    %c0_189 = arith.constant 0 : index
    %c0_190 = arith.constant 0 : index
    %409 = vector.load %arg3[%c0_188, %c0_189, %c0_190] : memref<16x32x16xbf16, #tpu.memory_space<vmem>>, vector<1x32x16xbf16>
    %410 = vector.shape_cast %409 : vector<1x32x16xbf16> to vector<32x16xbf16>
    %cst_191 = arith.constant dense<0.000000e+00> : vector<17x16xf32>
    %411 = tpu.matmul %406, %410, %cst_191 {dimension_numbers = #tpu.dot_dimension_numbers<[1], [0], [0], [1], [0, 0, 1, 1], [], []>} : vector<17x32xbf16>, vector<32x16xbf16>, vector<17x16xf32> -> vector<17x16xf32>
    %412 = vector.extract_strided_slice %408 {offsets = [0, 0], sizes = [1, 16], strides = [1, 1]} : vector<3x16xf32> to vector<1x16xf32>
    %413 = vector.broadcast %412 : vector<1x16xf32> to vector<17x16xf32>
    %414 = arith.addf %411, %413 : vector<17x16xf32>
    %c1_192 = arith.constant 1 : index
    %c0_193 = arith.constant 0 : index
    %c0_194 = arith.constant 0 : index
    %415 = vector.load %arg3[%c1_192, %c0_193, %c0_194] : memref<16x32x16xbf16, #tpu.memory_space<vmem>>, vector<1x32x16xbf16>
    %416 = vector.shape_cast %415 : vector<1x32x16xbf16> to vector<32x16xbf16>
    %cst_195 = arith.constant dense<0.000000e+00> : vector<17x16xf32>
    %417 = tpu.matmul %406, %416, %cst_195 {dimension_numbers = #tpu.dot_dimension_numbers<[1], [0], [0], [1], [0, 0, 1, 1], [], []>} : vector<17x32xbf16>, vector<32x16xbf16>, vector<17x16xf32> -> vector<17x16xf32>
    %418 = vector.extract_strided_slice %408 {offsets = [1, 0], sizes = [1, 16], strides = [1, 1]} : vector<3x16xf32> to vector<1x16xf32>
    %419 = vector.broadcast %418 : vector<1x16xf32> to vector<17x16xf32>
    %420 = arith.addf %417, %419 : vector<17x16xf32>
    %c2_196 = arith.constant 2 : index
    %c0_197 = arith.constant 0 : index
    %c0_198 = arith.constant 0 : index
    %421 = vector.load %arg3[%c2_196, %c0_197, %c0_198] : memref<16x32x16xbf16, #tpu.memory_space<vmem>>, vector<1x32x16xbf16>
    %422 = vector.shape_cast %421 : vector<1x32x16xbf16> to vector<32x16xbf16>
    %cst_199 = arith.constant dense<0.000000e+00> : vector<17x16xf32>
    %423 = tpu.matmul %406, %422, %cst_199 {dimension_numbers = #tpu.dot_dimension_numbers<[1], [0], [0], [1], [0, 0, 1, 1], [], []>} : vector<17x32xbf16>, vector<32x16xbf16>, vector<17x16xf32> -> vector<17x16xf32>
    %424 = vector.extract_strided_slice %408 {offsets = [2, 0], sizes = [1, 16], strides = [1, 1]} : vector<3x16xf32> to vector<1x16xf32>
    %425 = vector.broadcast %424 : vector<1x16xf32> to vector<17x16xf32>
    %426 = arith.addf %423, %425 : vector<17x16xf32>
    %427 = arith.truncf %414 : vector<17x16xf32> to vector<17x16xbf16>
    %428 = arith.truncf %420 : vector<17x16xf32> to vector<17x16xbf16>
    %cst_200 = arith.constant dense<0.000000e+00> : vector<17x17xf32>
    %429 = tpu.matmul %427, %428, %cst_200 {dimension_numbers = #tpu.dot_dimension_numbers<[1], [1], [0], [0], [0, 0, 1, 0], [], []>} : vector<17x16xbf16>, vector<17x16xbf16>, vector<17x17xf32> -> vector<17x17xf32>
    %cst_201 = arith.constant 2.500000e-01 : f32
    %430 = vector.broadcast %cst_201 : f32 to vector<17x17xf32>
    %431 = arith.mulf %429, %430 : vector<17x17xf32>
    %cst_202 = arith.constant dense<0xFF800000> : vector<17xf32>
    %432 = vector.multi_reduction <maximumf>, %431, %cst_202 [1] : vector<17x17xf32> to vector<17xf32>
    %433 = vector.shape_cast %432 : vector<17xf32> to vector<17x1xf32>
    %434 = vector.broadcast %433 : vector<17x1xf32> to vector<17x17xf32>
    %435 = arith.subf %431, %434 : vector<17x17xf32>
    %436 = math.exp %435 : vector<17x17xf32>
    %cst_203 = arith.constant dense<0.000000e+00> : vector<17xf32>
    %437 = vector.multi_reduction <add>, %436, %cst_203 [1] : vector<17x17xf32> to vector<17xf32>
    %438 = vector.shape_cast %437 : vector<17xf32> to vector<17x1xf32>
    %439 = tpu.reciprocal %438 {approx = true} : vector<17x1xf32> -> vector<17x1xf32>
    %440 = vector.broadcast %439 : vector<17x1xf32> to vector<17x17xf32>
    %441 = arith.mulf %436, %440 : vector<17x17xf32>
    %442 = arith.truncf %441 : vector<17x17xf32> to vector<17x17xbf16>
    %443 = arith.truncf %426 : vector<17x16xf32> to vector<17x16xbf16>
    %cst_204 = arith.constant dense<0.000000e+00> : vector<17x16xf32>
    %444 = tpu.matmul %442, %443, %cst_204 {dimension_numbers = #tpu.dot_dimension_numbers<[1], [0], [0], [1], [0, 0, 1, 1], [], []>} : vector<17x17xbf16>, vector<17x16xbf16>, vector<17x16xf32> -> vector<17x16xf32>
    %445 = arith.truncf %444 : vector<17x16xf32> to vector<17x16xbf16>
    %c3_205 = arith.constant 3 : index
    %c0_206 = arith.constant 0 : index
    %c0_207 = arith.constant 0 : index
    %446 = vector.load %arg3[%c3_205, %c0_206, %c0_207] : memref<16x32x16xbf16, #tpu.memory_space<vmem>>, vector<1x32x16xbf16>
    %447 = vector.shape_cast %446 : vector<1x32x16xbf16> to vector<32x16xbf16>
    %cst_208 = arith.constant dense<0.000000e+00> : vector<17x32xf32>
    %448 = tpu.matmul %445, %447, %cst_208 {dimension_numbers = #tpu.dot_dimension_numbers<[1], [1], [0], [0], [0, 0, 1, 0], [], []>} : vector<17x16xbf16>, vector<32x16xbf16>, vector<17x32xf32> -> vector<17x32xf32>
    %c1_209 = arith.constant 1 : index
    %c0_210 = arith.constant 0 : index
    %c0_211 = arith.constant 0 : index
    %449 = vector.load %arg4[%c1_209, %c0_210, %c0_211] : memref<4x3x16xf32, #tpu.memory_space<vmem>>, vector<1x3x16xf32>
    %450 = vector.shape_cast %449 : vector<1x3x16xf32> to vector<3x16xf32>
    %c4_212 = arith.constant 4 : index
    %c0_213 = arith.constant 0 : index
    %c0_214 = arith.constant 0 : index
    %451 = vector.load %arg3[%c4_212, %c0_213, %c0_214] : memref<16x32x16xbf16, #tpu.memory_space<vmem>>, vector<1x32x16xbf16>
    %452 = vector.shape_cast %451 : vector<1x32x16xbf16> to vector<32x16xbf16>
    %cst_215 = arith.constant dense<0.000000e+00> : vector<17x16xf32>
    %453 = tpu.matmul %406, %452, %cst_215 {dimension_numbers = #tpu.dot_dimension_numbers<[1], [0], [0], [1], [0, 0, 1, 1], [], []>} : vector<17x32xbf16>, vector<32x16xbf16>, vector<17x16xf32> -> vector<17x16xf32>
    %454 = vector.extract_strided_slice %450 {offsets = [0, 0], sizes = [1, 16], strides = [1, 1]} : vector<3x16xf32> to vector<1x16xf32>
    %455 = vector.broadcast %454 : vector<1x16xf32> to vector<17x16xf32>
    %456 = arith.addf %453, %455 : vector<17x16xf32>
    %c5_216 = arith.constant 5 : index
    %c0_217 = arith.constant 0 : index
    %c0_218 = arith.constant 0 : index
    %457 = vector.load %arg3[%c5_216, %c0_217, %c0_218] : memref<16x32x16xbf16, #tpu.memory_space<vmem>>, vector<1x32x16xbf16>
    %458 = vector.shape_cast %457 : vector<1x32x16xbf16> to vector<32x16xbf16>
    %cst_219 = arith.constant dense<0.000000e+00> : vector<17x16xf32>
    %459 = tpu.matmul %406, %458, %cst_219 {dimension_numbers = #tpu.dot_dimension_numbers<[1], [0], [0], [1], [0, 0, 1, 1], [], []>} : vector<17x32xbf16>, vector<32x16xbf16>, vector<17x16xf32> -> vector<17x16xf32>
    %460 = vector.extract_strided_slice %450 {offsets = [1, 0], sizes = [1, 16], strides = [1, 1]} : vector<3x16xf32> to vector<1x16xf32>
    %461 = vector.broadcast %460 : vector<1x16xf32> to vector<17x16xf32>
    %462 = arith.addf %459, %461 : vector<17x16xf32>
    %c6_220 = arith.constant 6 : index
    %c0_221 = arith.constant 0 : index
    %c0_222 = arith.constant 0 : index
    %463 = vector.load %arg3[%c6_220, %c0_221, %c0_222] : memref<16x32x16xbf16, #tpu.memory_space<vmem>>, vector<1x32x16xbf16>
    %464 = vector.shape_cast %463 : vector<1x32x16xbf16> to vector<32x16xbf16>
    %cst_223 = arith.constant dense<0.000000e+00> : vector<17x16xf32>
    %465 = tpu.matmul %406, %464, %cst_223 {dimension_numbers = #tpu.dot_dimension_numbers<[1], [0], [0], [1], [0, 0, 1, 1], [], []>} : vector<17x32xbf16>, vector<32x16xbf16>, vector<17x16xf32> -> vector<17x16xf32>
    %466 = vector.extract_strided_slice %450 {offsets = [2, 0], sizes = [1, 16], strides = [1, 1]} : vector<3x16xf32> to vector<1x16xf32>
    %467 = vector.broadcast %466 : vector<1x16xf32> to vector<17x16xf32>
    %468 = arith.addf %465, %467 : vector<17x16xf32>
    %469 = arith.truncf %456 : vector<17x16xf32> to vector<17x16xbf16>
    %470 = arith.truncf %462 : vector<17x16xf32> to vector<17x16xbf16>
    %cst_224 = arith.constant dense<0.000000e+00> : vector<17x17xf32>
    %471 = tpu.matmul %469, %470, %cst_224 {dimension_numbers = #tpu.dot_dimension_numbers<[1], [1], [0], [0], [0, 0, 1, 0], [], []>} : vector<17x16xbf16>, vector<17x16xbf16>, vector<17x17xf32> -> vector<17x17xf32>
    %cst_225 = arith.constant 2.500000e-01 : f32
    %472 = vector.broadcast %cst_225 : f32 to vector<17x17xf32>
    %473 = arith.mulf %471, %472 : vector<17x17xf32>
    %cst_226 = arith.constant dense<0xFF800000> : vector<17xf32>
    %474 = vector.multi_reduction <maximumf>, %473, %cst_226 [1] : vector<17x17xf32> to vector<17xf32>
    %475 = vector.shape_cast %474 : vector<17xf32> to vector<17x1xf32>
    %476 = vector.broadcast %475 : vector<17x1xf32> to vector<17x17xf32>
    %477 = arith.subf %473, %476 : vector<17x17xf32>
    %478 = math.exp %477 : vector<17x17xf32>
    %cst_227 = arith.constant dense<0.000000e+00> : vector<17xf32>
    %479 = vector.multi_reduction <add>, %478, %cst_227 [1] : vector<17x17xf32> to vector<17xf32>
    %480 = vector.shape_cast %479 : vector<17xf32> to vector<17x1xf32>
    %481 = tpu.reciprocal %480 {approx = true} : vector<17x1xf32> -> vector<17x1xf32>
    %482 = vector.broadcast %481 : vector<17x1xf32> to vector<17x17xf32>
    %483 = arith.mulf %478, %482 : vector<17x17xf32>
    %484 = arith.truncf %483 : vector<17x17xf32> to vector<17x17xbf16>
    %485 = arith.truncf %468 : vector<17x16xf32> to vector<17x16xbf16>
    %cst_228 = arith.constant dense<0.000000e+00> : vector<17x16xf32>
    %486 = tpu.matmul %484, %485, %cst_228 {dimension_numbers = #tpu.dot_dimension_numbers<[1], [0], [0], [1], [0, 0, 1, 1], [], []>} : vector<17x17xbf16>, vector<17x16xbf16>, vector<17x16xf32> -> vector<17x16xf32>
    %487 = arith.truncf %486 : vector<17x16xf32> to vector<17x16xbf16>
    %c7_229 = arith.constant 7 : index
    %c0_230 = arith.constant 0 : index
    %c0_231 = arith.constant 0 : index
    %488 = vector.load %arg3[%c7_229, %c0_230, %c0_231] : memref<16x32x16xbf16, #tpu.memory_space<vmem>>, vector<1x32x16xbf16>
    %489 = vector.shape_cast %488 : vector<1x32x16xbf16> to vector<32x16xbf16>
    %cst_232 = arith.constant dense<0.000000e+00> : vector<17x32xf32>
    %490 = tpu.matmul %487, %489, %cst_232 {dimension_numbers = #tpu.dot_dimension_numbers<[1], [1], [0], [0], [0, 0, 1, 0], [], []>} : vector<17x16xbf16>, vector<32x16xbf16>, vector<17x32xf32> -> vector<17x32xf32>
    %491 = arith.addf %448, %490 : vector<17x32xf32>
    %492 = arith.addf %377, %491 : vector<17x32xf32>
    %493 = vector.broadcast %380 : vector<1x32xf32> to vector<17x32xf32>
    %494 = arith.addf %492, %493 : vector<17x32xf32>
    %cst_233 = arith.constant dense<0.000000e+00> : vector<17xf32>
    %495 = vector.multi_reduction <add>, %494, %cst_233 [1] : vector<17x32xf32> to vector<17xf32>
    %496 = vector.shape_cast %495 : vector<17xf32> to vector<17x1xf32>
    %cst_234 = arith.constant 3.200000e+01 : f32
    %497 = vector.broadcast %cst_234 : f32 to vector<17x1xf32>
    %498 = arith.divf %496, %497 : vector<17x1xf32>
    %499 = vector.broadcast %498 : vector<17x1xf32> to vector<17x32xf32>
    %500 = arith.subf %494, %499 : vector<17x32xf32>
    %501 = arith.mulf %500, %500 : vector<17x32xf32>
    %cst_235 = arith.constant dense<0.000000e+00> : vector<17xf32>
    %502 = vector.multi_reduction <add>, %501, %cst_235 [1] : vector<17x32xf32> to vector<17xf32>
    %503 = vector.shape_cast %502 : vector<17xf32> to vector<17x1xf32>
    %cst_236 = arith.constant 3.200000e+01 : f32
    %504 = vector.broadcast %cst_236 : f32 to vector<17x1xf32>
    %505 = arith.divf %503, %504 : vector<17x1xf32>
    %506 = vector.broadcast %498 : vector<17x1xf32> to vector<17x32xf32>
    %507 = arith.subf %494, %506 : vector<17x32xf32>
    %cst_237 = arith.constant 9.99999997E-7 : f32
    %508 = vector.broadcast %cst_237 : f32 to vector<17x1xf32>
    %509 = arith.addf %505, %508 : vector<17x1xf32>
    %510 = math.rsqrt %509 : vector<17x1xf32>
    %511 = vector.broadcast %510 : vector<17x1xf32> to vector<17x32xf32>
    %512 = arith.mulf %507, %511 : vector<17x32xf32>
    %513 = vector.broadcast %381 : vector<1x32xf32> to vector<17x32xf32>
    %514 = arith.mulf %512, %513 : vector<17x32xf32>
    %515 = vector.broadcast %382 : vector<1x32xf32> to vector<17x32xf32>
    %516 = arith.addf %514, %515 : vector<17x32xf32>
    %517 = arith.truncf %516 : vector<17x32xf32> to vector<17x32xbf16>
    %c0_238 = arith.constant 0 : index
    %c0_239 = arith.constant 0 : index
    %c0_240 = arith.constant 0 : index
    %518 = vector.load %arg5[%c0_238, %c0_239, %c0_240] : memref<2x32x128xbf16, #tpu.memory_space<vmem>>, vector<1x32x128xbf16>
    %519 = vector.shape_cast %518 : vector<1x32x128xbf16> to vector<32x128xbf16>
    %cst_241 = arith.constant dense<0.000000e+00> : vector<17x128xf32>
    %520 = tpu.matmul %517, %519, %cst_241 {dimension_numbers = #tpu.dot_dimension_numbers<[1], [0], [0], [1], [0, 0, 1, 1], [], []>} : vector<17x32xbf16>, vector<32x128xbf16>, vector<17x128xf32> -> vector<17x128xf32>
    %c0_242 = arith.constant 0 : index
    %c0_243 = arith.constant 0 : index
    %c0_244 = arith.constant 0 : index
    %521 = vector.load %arg6[%c0_242, %c0_243, %c0_244] : memref<2x1x128xf32, #tpu.memory_space<vmem>>, vector<1x1x128xf32>
    %522 = vector.shape_cast %521 : vector<1x1x128xf32> to vector<1x128xf32>
    %523 = vector.broadcast %522 : vector<1x128xf32> to vector<17x128xf32>
    %524 = arith.addf %520, %523 : vector<17x128xf32>
    %525 = arith.mulf %524, %524 : vector<17x128xf32>
    %526 = arith.mulf %524, %525 : vector<17x128xf32>
    %cst_245 = arith.constant 4.471500e-02 : f32
    %527 = vector.broadcast %cst_245 : f32 to vector<17x128xf32>
    %528 = arith.mulf %527, %526 : vector<17x128xf32>
    %529 = arith.addf %524, %528 : vector<17x128xf32>
    %cst_246 = arith.constant 0.797884583 : f32
    %530 = vector.broadcast %cst_246 : f32 to vector<17x128xf32>
    %531 = arith.mulf %530, %529 : vector<17x128xf32>
    %532 = math.tanh %531 : vector<17x128xf32>
    %cst_247 = arith.constant 1.000000e+00 : f32
    %533 = vector.broadcast %cst_247 : f32 to vector<17x128xf32>
    %534 = arith.addf %533, %532 : vector<17x128xf32>
    %cst_248 = arith.constant 5.000000e-01 : f32
    %535 = vector.broadcast %cst_248 : f32 to vector<17x128xf32>
    %536 = arith.mulf %535, %534 : vector<17x128xf32>
    %537 = arith.mulf %524, %536 : vector<17x128xf32>
    %538 = arith.truncf %537 : vector<17x128xf32> to vector<17x128xbf16>
    %c0_249 = arith.constant 0 : index
    %c0_250 = arith.constant 0 : index
    %c0_251 = arith.constant 0 : index
    %539 = vector.load %arg7[%c0_249, %c0_250, %c0_251] : memref<2x128x32xbf16, #tpu.memory_space<vmem>>, vector<1x128x32xbf16>
    %540 = vector.shape_cast %539 : vector<1x128x32xbf16> to vector<128x32xbf16>
    %cst_252 = arith.constant dense<0.000000e+00> : vector<17x32xf32>
    %541 = tpu.matmul %538, %540, %cst_252 {dimension_numbers = #tpu.dot_dimension_numbers<[1], [0], [0], [1], [0, 0, 1, 1], [], []>} : vector<17x128xbf16>, vector<128x32xbf16>, vector<17x32xf32> -> vector<17x32xf32>
    %542 = vector.broadcast %383 : vector<1x32xf32> to vector<17x32xf32>
    %543 = arith.addf %541, %542 : vector<17x32xf32>
    %544 = arith.addf %494, %543 : vector<17x32xf32>
    %c32_253 = arith.constant 32 : index
    %c0_254 = arith.constant 0 : index
    %545 = vector.load %arg8[%c32_253, %c0_254] : memref<40x32xf32, #tpu.memory_space<vmem>>, vector<1x32xf32>
    %c33_255 = arith.constant 33 : index
    %c0_256 = arith.constant 0 : index
    %546 = vector.load %arg8[%c33_255, %c0_256] : memref<40x32xf32, #tpu.memory_space<vmem>>, vector<1x32xf32>
    %c34_257 = arith.constant 34 : index
    %c0_258 = arith.constant 0 : index
    %547 = vector.load %arg8[%c34_257, %c0_258] : memref<40x32xf32, #tpu.memory_space<vmem>>, vector<1x32xf32>
    %c35_259 = arith.constant 35 : index
    %c0_260 = arith.constant 0 : index
    %548 = vector.load %arg8[%c35_259, %c0_260] : memref<40x32xf32, #tpu.memory_space<vmem>>, vector<1x32xf32>
    %c36_261 = arith.constant 36 : index
    %c0_262 = arith.constant 0 : index
    %549 = vector.load %arg8[%c36_261, %c0_262] : memref<40x32xf32, #tpu.memory_space<vmem>>, vector<1x32xf32>
    %c37_263 = arith.constant 37 : index
    %c0_264 = arith.constant 0 : index
    %550 = vector.load %arg8[%c37_263, %c0_264] : memref<40x32xf32, #tpu.memory_space<vmem>>, vector<1x32xf32>
    %cst_265 = arith.constant dense<0.000000e+00> : vector<17xf32>
    %551 = vector.multi_reduction <add>, %544, %cst_265 [1] : vector<17x32xf32> to vector<17xf32>
    %552 = vector.shape_cast %551 : vector<17xf32> to vector<17x1xf32>
    %cst_266 = arith.constant 3.200000e+01 : f32
    %553 = vector.broadcast %cst_266 : f32 to vector<17x1xf32>
    %554 = arith.divf %552, %553 : vector<17x1xf32>
    %555 = vector.broadcast %554 : vector<17x1xf32> to vector<17x32xf32>
    %556 = arith.subf %544, %555 : vector<17x32xf32>
    %557 = arith.mulf %556, %556 : vector<17x32xf32>
    %cst_267 = arith.constant dense<0.000000e+00> : vector<17xf32>
    %558 = vector.multi_reduction <add>, %557, %cst_267 [1] : vector<17x32xf32> to vector<17xf32>
    %559 = vector.shape_cast %558 : vector<17xf32> to vector<17x1xf32>
    %cst_268 = arith.constant 3.200000e+01 : f32
    %560 = vector.broadcast %cst_268 : f32 to vector<17x1xf32>
    %561 = arith.divf %559, %560 : vector<17x1xf32>
    %562 = vector.broadcast %554 : vector<17x1xf32> to vector<17x32xf32>
    %563 = arith.subf %544, %562 : vector<17x32xf32>
    %cst_269 = arith.constant 9.99999997E-7 : f32
    %564 = vector.broadcast %cst_269 : f32 to vector<17x1xf32>
    %565 = arith.addf %561, %564 : vector<17x1xf32>
    %566 = math.rsqrt %565 : vector<17x1xf32>
    %567 = vector.broadcast %566 : vector<17x1xf32> to vector<17x32xf32>
    %568 = arith.mulf %563, %567 : vector<17x32xf32>
    %569 = vector.broadcast %545 : vector<1x32xf32> to vector<17x32xf32>
    %570 = arith.mulf %568, %569 : vector<17x32xf32>
    %571 = vector.broadcast %546 : vector<1x32xf32> to vector<17x32xf32>
    %572 = arith.addf %570, %571 : vector<17x32xf32>
    %573 = arith.truncf %572 : vector<17x32xf32> to vector<17x32xbf16>
    %c2_270 = arith.constant 2 : index
    %c0_271 = arith.constant 0 : index
    %c0_272 = arith.constant 0 : index
    %574 = vector.load %arg4[%c2_270, %c0_271, %c0_272] : memref<4x3x16xf32, #tpu.memory_space<vmem>>, vector<1x3x16xf32>
    %575 = vector.shape_cast %574 : vector<1x3x16xf32> to vector<3x16xf32>
    %c8_273 = arith.constant 8 : index
    %c0_274 = arith.constant 0 : index
    %c0_275 = arith.constant 0 : index
    %576 = vector.load %arg3[%c8_273, %c0_274, %c0_275] : memref<16x32x16xbf16, #tpu.memory_space<vmem>>, vector<1x32x16xbf16>
    %577 = vector.shape_cast %576 : vector<1x32x16xbf16> to vector<32x16xbf16>
    %cst_276 = arith.constant dense<0.000000e+00> : vector<17x16xf32>
    %578 = tpu.matmul %573, %577, %cst_276 {dimension_numbers = #tpu.dot_dimension_numbers<[1], [0], [0], [1], [0, 0, 1, 1], [], []>} : vector<17x32xbf16>, vector<32x16xbf16>, vector<17x16xf32> -> vector<17x16xf32>
    %579 = vector.extract_strided_slice %575 {offsets = [0, 0], sizes = [1, 16], strides = [1, 1]} : vector<3x16xf32> to vector<1x16xf32>
    %580 = vector.broadcast %579 : vector<1x16xf32> to vector<17x16xf32>
    %581 = arith.addf %578, %580 : vector<17x16xf32>
    %c9_277 = arith.constant 9 : index
    %c0_278 = arith.constant 0 : index
    %c0_279 = arith.constant 0 : index
    %582 = vector.load %arg3[%c9_277, %c0_278, %c0_279] : memref<16x32x16xbf16, #tpu.memory_space<vmem>>, vector<1x32x16xbf16>
    %583 = vector.shape_cast %582 : vector<1x32x16xbf16> to vector<32x16xbf16>
    %cst_280 = arith.constant dense<0.000000e+00> : vector<17x16xf32>
    %584 = tpu.matmul %573, %583, %cst_280 {dimension_numbers = #tpu.dot_dimension_numbers<[1], [0], [0], [1], [0, 0, 1, 1], [], []>} : vector<17x32xbf16>, vector<32x16xbf16>, vector<17x16xf32> -> vector<17x16xf32>
    %585 = vector.extract_strided_slice %575 {offsets = [1, 0], sizes = [1, 16], strides = [1, 1]} : vector<3x16xf32> to vector<1x16xf32>
    %586 = vector.broadcast %585 : vector<1x16xf32> to vector<17x16xf32>
    %587 = arith.addf %584, %586 : vector<17x16xf32>
    %c10_281 = arith.constant 10 : index
    %c0_282 = arith.constant 0 : index
    %c0_283 = arith.constant 0 : index
    %588 = vector.load %arg3[%c10_281, %c0_282, %c0_283] : memref<16x32x16xbf16, #tpu.memory_space<vmem>>, vector<1x32x16xbf16>
    %589 = vector.shape_cast %588 : vector<1x32x16xbf16> to vector<32x16xbf16>
    %cst_284 = arith.constant dense<0.000000e+00> : vector<17x16xf32>
    %590 = tpu.matmul %573, %589, %cst_284 {dimension_numbers = #tpu.dot_dimension_numbers<[1], [0], [0], [1], [0, 0, 1, 1], [], []>} : vector<17x32xbf16>, vector<32x16xbf16>, vector<17x16xf32> -> vector<17x16xf32>
    %591 = vector.extract_strided_slice %575 {offsets = [2, 0], sizes = [1, 16], strides = [1, 1]} : vector<3x16xf32> to vector<1x16xf32>
    %592 = vector.broadcast %591 : vector<1x16xf32> to vector<17x16xf32>
    %593 = arith.addf %590, %592 : vector<17x16xf32>
    %594 = arith.truncf %581 : vector<17x16xf32> to vector<17x16xbf16>
    %595 = arith.truncf %587 : vector<17x16xf32> to vector<17x16xbf16>
    %cst_285 = arith.constant dense<0.000000e+00> : vector<17x17xf32>
    %596 = tpu.matmul %594, %595, %cst_285 {dimension_numbers = #tpu.dot_dimension_numbers<[1], [1], [0], [0], [0, 0, 1, 0], [], []>} : vector<17x16xbf16>, vector<17x16xbf16>, vector<17x17xf32> -> vector<17x17xf32>
    %cst_286 = arith.constant 2.500000e-01 : f32
    %597 = vector.broadcast %cst_286 : f32 to vector<17x17xf32>
    %598 = arith.mulf %596, %597 : vector<17x17xf32>
    %cst_287 = arith.constant dense<0xFF800000> : vector<17xf32>
    %599 = vector.multi_reduction <maximumf>, %598, %cst_287 [1] : vector<17x17xf32> to vector<17xf32>
    %600 = vector.shape_cast %599 : vector<17xf32> to vector<17x1xf32>
    %601 = vector.broadcast %600 : vector<17x1xf32> to vector<17x17xf32>
    %602 = arith.subf %598, %601 : vector<17x17xf32>
    %603 = math.exp %602 : vector<17x17xf32>
    %cst_288 = arith.constant dense<0.000000e+00> : vector<17xf32>
    %604 = vector.multi_reduction <add>, %603, %cst_288 [1] : vector<17x17xf32> to vector<17xf32>
    %605 = vector.shape_cast %604 : vector<17xf32> to vector<17x1xf32>
    %606 = tpu.reciprocal %605 {approx = true} : vector<17x1xf32> -> vector<17x1xf32>
    %607 = vector.broadcast %606 : vector<17x1xf32> to vector<17x17xf32>
    %608 = arith.mulf %603, %607 : vector<17x17xf32>
    %609 = arith.truncf %608 : vector<17x17xf32> to vector<17x17xbf16>
    %610 = arith.truncf %593 : vector<17x16xf32> to vector<17x16xbf16>
    %cst_289 = arith.constant dense<0.000000e+00> : vector<17x16xf32>
    %611 = tpu.matmul %609, %610, %cst_289 {dimension_numbers = #tpu.dot_dimension_numbers<[1], [0], [0], [1], [0, 0, 1, 1], [], []>} : vector<17x17xbf16>, vector<17x16xbf16>, vector<17x16xf32> -> vector<17x16xf32>
    %612 = arith.truncf %611 : vector<17x16xf32> to vector<17x16xbf16>
    %c11_290 = arith.constant 11 : index
    %c0_291 = arith.constant 0 : index
    %c0_292 = arith.constant 0 : index
    %613 = vector.load %arg3[%c11_290, %c0_291, %c0_292] : memref<16x32x16xbf16, #tpu.memory_space<vmem>>, vector<1x32x16xbf16>
    %614 = vector.shape_cast %613 : vector<1x32x16xbf16> to vector<32x16xbf16>
    %cst_293 = arith.constant dense<0.000000e+00> : vector<17x32xf32>
    %615 = tpu.matmul %612, %614, %cst_293 {dimension_numbers = #tpu.dot_dimension_numbers<[1], [1], [0], [0], [0, 0, 1, 0], [], []>} : vector<17x16xbf16>, vector<32x16xbf16>, vector<17x32xf32> -> vector<17x32xf32>
    %c3_294 = arith.constant 3 : index
    %c0_295 = arith.constant 0 : index
    %c0_296 = arith.constant 0 : index
    %616 = vector.load %arg4[%c3_294, %c0_295, %c0_296] : memref<4x3x16xf32, #tpu.memory_space<vmem>>, vector<1x3x16xf32>
    %617 = vector.shape_cast %616 : vector<1x3x16xf32> to vector<3x16xf32>
    %c12_297 = arith.constant 12 : index
    %c0_298 = arith.constant 0 : index
    %c0_299 = arith.constant 0 : index
    %618 = vector.load %arg3[%c12_297, %c0_298, %c0_299] : memref<16x32x16xbf16, #tpu.memory_space<vmem>>, vector<1x32x16xbf16>
    %619 = vector.shape_cast %618 : vector<1x32x16xbf16> to vector<32x16xbf16>
    %cst_300 = arith.constant dense<0.000000e+00> : vector<17x16xf32>
    %620 = tpu.matmul %573, %619, %cst_300 {dimension_numbers = #tpu.dot_dimension_numbers<[1], [0], [0], [1], [0, 0, 1, 1], [], []>} : vector<17x32xbf16>, vector<32x16xbf16>, vector<17x16xf32> -> vector<17x16xf32>
    %621 = vector.extract_strided_slice %617 {offsets = [0, 0], sizes = [1, 16], strides = [1, 1]} : vector<3x16xf32> to vector<1x16xf32>
    %622 = vector.broadcast %621 : vector<1x16xf32> to vector<17x16xf32>
    %623 = arith.addf %620, %622 : vector<17x16xf32>
    %c13_301 = arith.constant 13 : index
    %c0_302 = arith.constant 0 : index
    %c0_303 = arith.constant 0 : index
    %624 = vector.load %arg3[%c13_301, %c0_302, %c0_303] : memref<16x32x16xbf16, #tpu.memory_space<vmem>>, vector<1x32x16xbf16>
    %625 = vector.shape_cast %624 : vector<1x32x16xbf16> to vector<32x16xbf16>
    %cst_304 = arith.constant dense<0.000000e+00> : vector<17x16xf32>
    %626 = tpu.matmul %573, %625, %cst_304 {dimension_numbers = #tpu.dot_dimension_numbers<[1], [0], [0], [1], [0, 0, 1, 1], [], []>} : vector<17x32xbf16>, vector<32x16xbf16>, vector<17x16xf32> -> vector<17x16xf32>
    %627 = vector.extract_strided_slice %617 {offsets = [1, 0], sizes = [1, 16], strides = [1, 1]} : vector<3x16xf32> to vector<1x16xf32>
    %628 = vector.broadcast %627 : vector<1x16xf32> to vector<17x16xf32>
    %629 = arith.addf %626, %628 : vector<17x16xf32>
    %c14_305 = arith.constant 14 : index
    %c0_306 = arith.constant 0 : index
    %c0_307 = arith.constant 0 : index
    %630 = vector.load %arg3[%c14_305, %c0_306, %c0_307] : memref<16x32x16xbf16, #tpu.memory_space<vmem>>, vector<1x32x16xbf16>
    %631 = vector.shape_cast %630 : vector<1x32x16xbf16> to vector<32x16xbf16>
    %cst_308 = arith.constant dense<0.000000e+00> : vector<17x16xf32>
    %632 = tpu.matmul %573, %631, %cst_308 {dimension_numbers = #tpu.dot_dimension_numbers<[1], [0], [0], [1], [0, 0, 1, 1], [], []>} : vector<17x32xbf16>, vector<32x16xbf16>, vector<17x16xf32> -> vector<17x16xf32>
    %633 = vector.extract_strided_slice %617 {offsets = [2, 0], sizes = [1, 16], strides = [1, 1]} : vector<3x16xf32> to vector<1x16xf32>
    %634 = vector.broadcast %633 : vector<1x16xf32> to vector<17x16xf32>
    %635 = arith.addf %632, %634 : vector<17x16xf32>
    %636 = arith.truncf %623 : vector<17x16xf32> to vector<17x16xbf16>
    %637 = arith.truncf %629 : vector<17x16xf32> to vector<17x16xbf16>
    %cst_309 = arith.constant dense<0.000000e+00> : vector<17x17xf32>
    %638 = tpu.matmul %636, %637, %cst_309 {dimension_numbers = #tpu.dot_dimension_numbers<[1], [1], [0], [0], [0, 0, 1, 0], [], []>} : vector<17x16xbf16>, vector<17x16xbf16>, vector<17x17xf32> -> vector<17x17xf32>
    %cst_310 = arith.constant 2.500000e-01 : f32
    %639 = vector.broadcast %cst_310 : f32 to vector<17x17xf32>
    %640 = arith.mulf %638, %639 : vector<17x17xf32>
    %cst_311 = arith.constant dense<0xFF800000> : vector<17xf32>
    %641 = vector.multi_reduction <maximumf>, %640, %cst_311 [1] : vector<17x17xf32> to vector<17xf32>
    %642 = vector.shape_cast %641 : vector<17xf32> to vector<17x1xf32>
    %643 = vector.broadcast %642 : vector<17x1xf32> to vector<17x17xf32>
    %644 = arith.subf %640, %643 : vector<17x17xf32>
    %645 = math.exp %644 : vector<17x17xf32>
    %cst_312 = arith.constant dense<0.000000e+00> : vector<17xf32>
    %646 = vector.multi_reduction <add>, %645, %cst_312 [1] : vector<17x17xf32> to vector<17xf32>
    %647 = vector.shape_cast %646 : vector<17xf32> to vector<17x1xf32>
    %648 = tpu.reciprocal %647 {approx = true} : vector<17x1xf32> -> vector<17x1xf32>
    %649 = vector.broadcast %648 : vector<17x1xf32> to vector<17x17xf32>
    %650 = arith.mulf %645, %649 : vector<17x17xf32>
    %651 = arith.truncf %650 : vector<17x17xf32> to vector<17x17xbf16>
    %652 = arith.truncf %635 : vector<17x16xf32> to vector<17x16xbf16>
    %cst_313 = arith.constant dense<0.000000e+00> : vector<17x16xf32>
    %653 = tpu.matmul %651, %652, %cst_313 {dimension_numbers = #tpu.dot_dimension_numbers<[1], [0], [0], [1], [0, 0, 1, 1], [], []>} : vector<17x17xbf16>, vector<17x16xbf16>, vector<17x16xf32> -> vector<17x16xf32>
    %654 = arith.truncf %653 : vector<17x16xf32> to vector<17x16xbf16>
    %c15_314 = arith.constant 15 : index
    %c0_315 = arith.constant 0 : index
    %c0_316 = arith.constant 0 : index
    %655 = vector.load %arg3[%c15_314, %c0_315, %c0_316] : memref<16x32x16xbf16, #tpu.memory_space<vmem>>, vector<1x32x16xbf16>
    %656 = vector.shape_cast %655 : vector<1x32x16xbf16> to vector<32x16xbf16>
    %cst_317 = arith.constant dense<0.000000e+00> : vector<17x32xf32>
    %657 = tpu.matmul %654, %656, %cst_317 {dimension_numbers = #tpu.dot_dimension_numbers<[1], [1], [0], [0], [0, 0, 1, 0], [], []>} : vector<17x16xbf16>, vector<32x16xbf16>, vector<17x32xf32> -> vector<17x32xf32>
    %658 = arith.addf %615, %657 : vector<17x32xf32>
    %659 = arith.addf %544, %658 : vector<17x32xf32>
    %660 = vector.broadcast %547 : vector<1x32xf32> to vector<17x32xf32>
    %661 = arith.addf %659, %660 : vector<17x32xf32>
    %cst_318 = arith.constant dense<0.000000e+00> : vector<17xf32>
    %662 = vector.multi_reduction <add>, %661, %cst_318 [1] : vector<17x32xf32> to vector<17xf32>
    %663 = vector.shape_cast %662 : vector<17xf32> to vector<17x1xf32>
    %cst_319 = arith.constant 3.200000e+01 : f32
    %664 = vector.broadcast %cst_319 : f32 to vector<17x1xf32>
    %665 = arith.divf %663, %664 : vector<17x1xf32>
    %666 = vector.broadcast %665 : vector<17x1xf32> to vector<17x32xf32>
    %667 = arith.subf %661, %666 : vector<17x32xf32>
    %668 = arith.mulf %667, %667 : vector<17x32xf32>
    %cst_320 = arith.constant dense<0.000000e+00> : vector<17xf32>
    %669 = vector.multi_reduction <add>, %668, %cst_320 [1] : vector<17x32xf32> to vector<17xf32>
    %670 = vector.shape_cast %669 : vector<17xf32> to vector<17x1xf32>
    %cst_321 = arith.constant 3.200000e+01 : f32
    %671 = vector.broadcast %cst_321 : f32 to vector<17x1xf32>
    %672 = arith.divf %670, %671 : vector<17x1xf32>
    %673 = vector.broadcast %665 : vector<17x1xf32> to vector<17x32xf32>
    %674 = arith.subf %661, %673 : vector<17x32xf32>
    %cst_322 = arith.constant 9.99999997E-7 : f32
    %675 = vector.broadcast %cst_322 : f32 to vector<17x1xf32>
    %676 = arith.addf %672, %675 : vector<17x1xf32>
    %677 = math.rsqrt %676 : vector<17x1xf32>
    %678 = vector.broadcast %677 : vector<17x1xf32> to vector<17x32xf32>
    %679 = arith.mulf %674, %678 : vector<17x32xf32>
    %680 = vector.broadcast %548 : vector<1x32xf32> to vector<17x32xf32>
    %681 = arith.mulf %679, %680 : vector<17x32xf32>
    %682 = vector.broadcast %549 : vector<1x32xf32> to vector<17x32xf32>
    %683 = arith.addf %681, %682 : vector<17x32xf32>
    %684 = arith.truncf %683 : vector<17x32xf32> to vector<17x32xbf16>
    %c1_323 = arith.constant 1 : index
    %c0_324 = arith.constant 0 : index
    %c0_325 = arith.constant 0 : index
    %685 = vector.load %arg5[%c1_323, %c0_324, %c0_325] : memref<2x32x128xbf16, #tpu.memory_space<vmem>>, vector<1x32x128xbf16>
    %686 = vector.shape_cast %685 : vector<1x32x128xbf16> to vector<32x128xbf16>
    %cst_326 = arith.constant dense<0.000000e+00> : vector<17x128xf32>
    %687 = tpu.matmul %684, %686, %cst_326 {dimension_numbers = #tpu.dot_dimension_numbers<[1], [0], [0], [1], [0, 0, 1, 1], [], []>} : vector<17x32xbf16>, vector<32x128xbf16>, vector<17x128xf32> -> vector<17x128xf32>
    %c1_327 = arith.constant 1 : index
    %c0_328 = arith.constant 0 : index
    %c0_329 = arith.constant 0 : index
    %688 = vector.load %arg6[%c1_327, %c0_328, %c0_329] : memref<2x1x128xf32, #tpu.memory_space<vmem>>, vector<1x1x128xf32>
    %689 = vector.shape_cast %688 : vector<1x1x128xf32> to vector<1x128xf32>
    %690 = vector.broadcast %689 : vector<1x128xf32> to vector<17x128xf32>
    %691 = arith.addf %687, %690 : vector<17x128xf32>
    %692 = arith.mulf %691, %691 : vector<17x128xf32>
    %693 = arith.mulf %691, %692 : vector<17x128xf32>
    %cst_330 = arith.constant 4.471500e-02 : f32
    %694 = vector.broadcast %cst_330 : f32 to vector<17x128xf32>
    %695 = arith.mulf %694, %693 : vector<17x128xf32>
    %696 = arith.addf %691, %695 : vector<17x128xf32>
    %cst_331 = arith.constant 0.797884583 : f32
    %697 = vector.broadcast %cst_331 : f32 to vector<17x128xf32>
    %698 = arith.mulf %697, %696 : vector<17x128xf32>
    %699 = math.tanh %698 : vector<17x128xf32>
    %cst_332 = arith.constant 1.000000e+00 : f32
    %700 = vector.broadcast %cst_332 : f32 to vector<17x128xf32>
    %701 = arith.addf %700, %699 : vector<17x128xf32>
    %cst_333 = arith.constant 5.000000e-01 : f32
    %702 = vector.broadcast %cst_333 : f32 to vector<17x128xf32>
    %703 = arith.mulf %702, %701 : vector<17x128xf32>
    %704 = arith.mulf %691, %703 : vector<17x128xf32>
    %705 = arith.truncf %704 : vector<17x128xf32> to vector<17x128xbf16>
    %c1_334 = arith.constant 1 : index
    %c0_335 = arith.constant 0 : index
    %c0_336 = arith.constant 0 : index
    %706 = vector.load %arg7[%c1_334, %c0_335, %c0_336] : memref<2x128x32xbf16, #tpu.memory_space<vmem>>, vector<1x128x32xbf16>
    %707 = vector.shape_cast %706 : vector<1x128x32xbf16> to vector<128x32xbf16>
    %cst_337 = arith.constant dense<0.000000e+00> : vector<17x32xf32>
    %708 = tpu.matmul %705, %707, %cst_337 {dimension_numbers = #tpu.dot_dimension_numbers<[1], [0], [0], [1], [0, 0, 1, 1], [], []>} : vector<17x128xbf16>, vector<128x32xbf16>, vector<17x32xf32> -> vector<17x32xf32>
    %709 = vector.broadcast %550 : vector<1x32xf32> to vector<17x32xf32>
    %710 = arith.addf %708, %709 : vector<17x32xf32>
    %711 = arith.addf %661, %710 : vector<17x32xf32>
    %cst_338 = arith.constant dense<0.000000e+00> : vector<17xf32>
    %712 = vector.multi_reduction <add>, %711, %cst_338 [1] : vector<17x32xf32> to vector<17xf32>
    %713 = vector.shape_cast %712 : vector<17xf32> to vector<17x1xf32>
    %cst_339 = arith.constant 3.200000e+01 : f32
    %714 = vector.broadcast %cst_339 : f32 to vector<17x1xf32>
    %715 = arith.divf %713, %714 : vector<17x1xf32>
    %716 = vector.broadcast %715 : vector<17x1xf32> to vector<17x32xf32>
    %717 = arith.subf %711, %716 : vector<17x32xf32>
    %718 = arith.mulf %717, %717 : vector<17x32xf32>
    %cst_340 = arith.constant dense<0.000000e+00> : vector<17xf32>
    %719 = vector.multi_reduction <add>, %718, %cst_340 [1] : vector<17x32xf32> to vector<17xf32>
    %720 = vector.shape_cast %719 : vector<17xf32> to vector<17x1xf32>
    %cst_341 = arith.constant 3.200000e+01 : f32
    %721 = vector.broadcast %cst_341 : f32 to vector<17x1xf32>
    %722 = arith.divf %720, %721 : vector<17x1xf32>
    %723 = vector.broadcast %715 : vector<17x1xf32> to vector<17x32xf32>
    %724 = arith.subf %711, %723 : vector<17x32xf32>
    %cst_342 = arith.constant 9.99999997E-7 : f32
    %725 = vector.broadcast %cst_342 : f32 to vector<17x1xf32>
    %726 = arith.addf %722, %725 : vector<17x1xf32>
    %727 = math.rsqrt %726 : vector<17x1xf32>
    %728 = vector.broadcast %727 : vector<17x1xf32> to vector<17x32xf32>
    %729 = arith.mulf %724, %728 : vector<17x32xf32>
    %730 = vector.broadcast %2 : vector<1x32xf32> to vector<17x32xf32>
    %731 = arith.mulf %729, %730 : vector<17x32xf32>
    %732 = vector.broadcast %3 : vector<1x32xf32> to vector<17x32xf32>
    %733 = arith.addf %731, %732 : vector<17x32xf32>
    %c1_343 = arith.constant 1 : index
    %c0_344 = arith.constant 0 : index
    %c0_345 = arith.constant 0 : index
    %734 = vector.load %arg9[%c1_343, %c0_344, %c0_345] : memref<2x17x32xf32, #tpu.memory_space<vmem>>, vector<1x17x32xf32>
    %735 = vector.shape_cast %734 : vector<1x17x32xf32> to vector<17x32xf32>
    %736 = vector.shape_cast %733 : vector<17x32xf32> to vector<1x17x32xf32>
    tpu.vector_store %arg9[%c1_343, %c0_344, %c0_345], %736 {strides = array<i32>} : memref<2x17x32xf32, #tpu.memory_space<vmem>>, vector<1x17x32xf32>,
    %cst_346 = arith.constant dense<0.000000e+00> : vector<32xf32>
    %737 = vector.multi_reduction <add>, %733, %cst_346 [0] : vector<17x32xf32> to vector<32xf32>
    %738 = vector.shape_cast %737 : vector<32xf32> to vector<1x32xf32>
    %cst_347 = arith.constant 1.700000e+01 : f32
    %739 = vector.broadcast %cst_347 : f32 to vector<1x32xf32>
    %740 = arith.divf %738, %739 : vector<1x32xf32>
    %c1_348 = arith.constant 1 : index
    %c0_349 = arith.constant 0 : index
    %c0_350 = arith.constant 0 : index
    %741 = vector.load %arg10[%c1_348, %c0_349, %c0_350] : memref<2x1x32xf32, #tpu.memory_space<vmem>>, vector<1x1x32xf32>
    %742 = vector.shape_cast %741 : vector<1x1x32xf32> to vector<1x32xf32>
    %743 = vector.shape_cast %740 : vector<1x32xf32> to vector<1x1x32xf32>
    tpu.vector_store %arg10[%c1_348, %c0_349, %c0_350], %743 {strides = array<i32>} : memref<2x1x32xf32, #tpu.memory_space<vmem>>, vector<1x1x32xf32>,
    return
  }
  func.func @transform_0(%arg0: i32) -> (i32, i32, i32) {
    %c0_i32 = arith.constant 0 : i32
    %c0_i32_0 = arith.constant 0 : i32
    %c0_i32_1 = arith.constant 0 : i32
    return %arg0, %c0_i32, %c0_i32_0 : i32, i32, i32
  }
  func.func @transform_1(%arg0: i32) -> (i32, i32) {
    %c0_i32 = arith.constant 0 : i32
    %c0_i32_0 = arith.constant 0 : i32
    %c0_i32_1 = arith.constant 0 : i32
    return %c0_i32, %c0_i32_0 : i32, i32
  }
  func.func @transform_2(%arg0: i32) -> (i32, i32, i32) {
    %c0_i32 = arith.constant 0 : i32
    %c0_i32_0 = arith.constant 0 : i32
    %c0_i32_1 = arith.constant 0 : i32
    %c0_i32_2 = arith.constant 0 : i32
    return %c0_i32, %c0_i32_0, %c0_i32_1 : i32, i32, i32
  }
  func.func @transform_3(%arg0: i32) -> (i32, i32, i32) {
    %c0_i32 = arith.constant 0 : i32
    %c0_i32_0 = arith.constant 0 : i32
    %c0_i32_1 = arith.constant 0 : i32
    %c0_i32_2 = arith.constant 0 : i32
    return %c0_i32, %c0_i32_0, %c0_i32_1 : i32, i32, i32
  }
  func.func @transform_4(%arg0: i32) -> (i32, i32, i32) {
    %c0_i32 = arith.constant 0 : i32
    %c0_i32_0 = arith.constant 0 : i32
    %c0_i32_1 = arith.constant 0 : i32
    %c0_i32_2 = arith.constant 0 : i32
    return %c0_i32, %c0_i32_0, %c0_i32_1 : i32, i32, i32
  }
  func.func @transform_5(%arg0: i32) -> (i32, i32, i32) {
    %c0_i32 = arith.constant 0 : i32
    %c0_i32_0 = arith.constant 0 : i32
    %c0_i32_1 = arith.constant 0 : i32
    %c0_i32_2 = arith.constant 0 : i32
    return %c0_i32, %c0_i32_0, %c0_i32_1 : i32, i32, i32
  }
  func.func @transform_6(%arg0: i32) -> (i32, i32, i32) {
    %c0_i32 = arith.constant 0 : i32
    %c0_i32_0 = arith.constant 0 : i32
    %c0_i32_1 = arith.constant 0 : i32
    %c0_i32_2 = arith.constant 0 : i32
    return %c0_i32, %c0_i32_0, %c0_i32_1 : i32, i32, i32
  }
  func.func @transform_7(%arg0: i32) -> (i32, i32) {
    %c0_i32 = arith.constant 0 : i32
    %c0_i32_0 = arith.constant 0 : i32
    %c0_i32_1 = arith.constant 0 : i32
    return %c0_i32, %c0_i32_0 : i32, i32
  }
  func.func @transform_8(%arg0: i32) -> (i32, i32, i32) {
    %c0_i32 = arith.constant 0 : i32
    %c0_i32_0 = arith.constant 0 : i32
    %c0_i32_1 = arith.constant 0 : i32
    return %arg0, %c0_i32, %c0_i32_0 : i32, i32, i32
  }
  func.func @transform_9(%arg0: i32) -> (i32, i32, i32) {
    %c0_i32 = arith.constant 0 : i32
    %c0_i32_0 = arith.constant 0 : i32
    %c0_i32_1 = arith.constant 0 : i32
    return %arg0, %c0_i32, %c0_i32_0 : i32, i32, i32
  }
}

</mosaic_0001>

<llo_original>
// kernel: _forward.1
$region0: #{_forward.1}
  #allocation0 [shape = 'u32[]', space=smem, size = 0x4, offset = 0x4, fixed_abs, tag = 'smem constant byte address 0x4 - core index']
  #allocation1 [shape = 'u32[72,128]{1,0:T(1,128)}', space=vmem, size = 0x9000, scoped, tag = 'internal scratch']
  %s0 = inlined_call_operand.vmem [shape: bf16[2,17,48], index: 0, kind: input, shape index: {}]
  %s1 = inlined_call_operand.vmem [shape: bf16[48,32], index: 1, kind: input, shape index: {}]
  %s2 = inlined_call_operand.vmem [shape: bf16[16,32,16], index: 2, kind: input, shape index: {}]
  %s3 = inlined_call_operand.vmem [shape: f32[4,3,16], index: 3, kind: input, shape index: {}]
  %s4 = inlined_call_operand.vmem [shape: bf16[2,32,128], index: 4, kind: input, shape index: {}]
  %s5 = inlined_call_operand.vmem [shape: f32[2,1,128], index: 5, kind: input, shape index: {}]
  %s6 = inlined_call_operand.vmem [shape: bf16[2,128,32], index: 6, kind: input, shape index: {}]
  %s7 = inlined_call_operand.vmem [shape: f32[40,32], index: 7, kind: input, shape index: {}]
  %s8 = inlined_call_operand.vmem [shape: f32[2,17,32], index: 8, kind: output, shape index: {0}]
  %s9 = inlined_call_operand.hbm [shape: f32[2,1,32], index: 9, kind: output, shape index: {1}]
  %10 = xla_tuple %s8, %s9
  %s11 = sld [smem:[#allocation0]]
  $region50: #{_forward.1} parent=0
    _
  %s13 = ssub.s32 1, %s11
  %s14 = scalar_select 0, %s13, %s11
  $region1: #{_forward.1} parent=0
    #allocation2 [shape = 'u8[1024]{0}', space=vmem, size = 0x400, scoped, tag = 'output window, operand 1, single buffered']
    #allocation3 [shape = 's32[1]{0}', space=sflag, size = 0x4, scoped, tag = 'scoped memory for _forward.1']
    %15 = vsyncpa [#allocation3], 0
    // Predicated region
    $region2: #{_forward.1} parent=1 // pred_check
      _
    $region3: #{_forward.1} parent=1 // pred_check_branch
      %17 = sbr.rel (0) target = $region5
    $region4: #{_forward.1} parent=1 // pred_region
      _
    $region5: #{_forward.1} parent=1 // pred_fallthru
      _
    // Predicated region
    $region6: #{_forward.1} parent=1 // pred_check
      _
    $region7: #{_forward.1} parent=1 // pred_check_branch
      %19 = sbr.rel (0) target = $region9
    $region8: #{_forward.1} parent=1 // pred_region
      _
    $region9: #{_forward.1} parent=1 // pred_fallthru
      _
    // Predicated region
    $region10: #{_forward.1} parent=1 // pred_check
      _
    $region11: #{_forward.1} parent=1 // pred_check_branch
      %21 = sbr.rel (0) target = $region13
    $region12: #{_forward.1} parent=1 // pred_region
      _
    $region13: #{_forward.1} parent=1 // pred_fallthru
      _
    // Predicated region
    $region14: #{_forward.1} parent=1 // pred_check
      _
    $region15: #{_forward.1} parent=1 // pred_check_branch
      %23 = sbr.rel (0) target = $region17
    $region16: #{_forward.1} parent=1 // pred_region
      _
    $region17: #{_forward.1} parent=1 // pred_fallthru
      _
    // Predicated region
    $region18: #{_forward.1} parent=1 // pred_check
      _
    $region19: #{_forward.1} parent=1 // pred_check_branch
      %25 = sbr.rel (0) target = $region21
    $region20: #{_forward.1} parent=1 // pred_region
      _
    $region21: #{_forward.1} parent=1 // pred_fallthru
      _
    // Predicated region
    $region22: #{_forward.1} parent=1 // pred_check
      _
    $region23: #{_forward.1} parent=1 // pred_check_branch
      %27 = sbr.rel (0) target = $region25
    $region24: #{_forward.1} parent=1 // pred_region
      _
    $region25: #{_forward.1} parent=1 // pred_fallthru
      _
    // Predicated region
    $region26: #{_forward.1} parent=1 // pred_check
      _
    $region27: #{_forward.1} parent=1 // pred_check_branch
      %29 = sbr.rel (0) target = $region29
    $region28: #{_forward.1} parent=1 // pred_region
      _
    $region29: #{_forward.1} parent=1 // pred_fallthru
      _
    // Predicated region
    $region30: #{_forward.1} parent=1 // pred_check
      _
    $region31: #{_forward.1} parent=1 // pred_check_branch
      %31 = sbr.rel (0) target = $region33
    $region32: #{_forward.1} parent=1 // pred_region
      _
    $region33: #{_forward.1} parent=1 // pred_fallthru
      _
    %v33 = vld [vmem:[%s1] sm:$0xf]
    %v34 = vld [vmem:[%s1 + $0x4] sm:$0xf]
    %v35 = vld [vmem:[%s1 + $0x8] sm:$0xf]
    %v36 = vld [vmem:[%s1 + $0xc] sm:$0xf]
    %v37 = vld [vmem:[%s1 + $0x10] sm:$0xf]
    %v38 = vld [vmem:[%s1 + $0x14] sm:$0xf]
    %v39 = vld [vmem:[%s7] sm:$0xff]
    %v40 = vld [vmem:[%s7 + $0x8] sm:$0xff]
    %v41 = vld [vmem:[%s7 + $0x10] sm:$0x1]
    %v42 = vld [vmem:[%s7 + $0x11] sm:$0x1]
    %v43 = vld [vmem:[%s7 + $0x12] sm:$0x1]
    %v44 = vld [vmem:[%s0] sm:$0xf]
    %v45 = vld [vmem:[%s0 + $0x4] sm:$0xf]
    %v46 = vld [vmem:[%s0 + $0x8] sm:$0x1]
    %v50 = vunpack.c.l.b16 %v44
    %v51 = vunpack.c.l.b16 %v45
    %v52 = vunpack.c.l.b16 %v46
    %v53 = vpack.c.b16 %v51, %v50
    %v54 = vpack.c.b16 %v52, %v52
    %v61 = vunpack.c.l.b16 %v33
    %v62 = vunpack.c.l.b16 %v34
    %v63 = vunpack.c.l.b16 %v35
    %v64 = vunpack.c.l.b16 %v36
    %v65 = vunpack.c.l.b16 %v37
    %v66 = vunpack.c.l.b16 %v38
    %v67 = vpack.c.b16 %v62, %v61
    %v68 = vpack.c.b16 %v64, %v63
    %v69 = vpack.c.b16 %v66, %v65
    %vm73 = vcmask 392192
    %v75 = vsel %vm73, %v53, 0
    %v78 = vsel %vm73, %v54, 0
    %80 = vmatpush.bf16.msra.mxu0 0
    %81 = vmatpush.bf16.msra.mxu0 0
    %82 = vmatpush.bf16.msra.mxu0 0
    %83 = vmatpush.bf16.msra.mxu0 0
    %84 = vmatpush.bf16.msra.mxu0 0
    %85 = vmatpush.bf16.msra.mxu0 %v69
    %86 = vmatpush.bf16.msra.mxu0 %v68
    %87 = vmatpush.bf16.msra.mxu0 %v67
    %88 = vmatmul.bf16.gmra.mxu0 %v75
    %v89 = vpop.f32.mrf.mxu0
    %v90 = vadd.f32 %v39, %v89
    %v91 = vpop.f32.mrf.mxu0
    %v92 = vadd.f32 %v40, %v91
    %93 = vmatmul.bf16.gmra.mxu0 %v78
    %v94 = vpop.f32.mrf.mxu0
    %v95 = vadd.f32 %v41, %v94
    %v96 = vpop.f32.mrf.mxu0
    %97 = vdwg.mxu0
    %v98 = vld [vmem:[%s7 + $0x18] sm:$0x1]
    %v99 = vld [vmem:[%s7 + $0x19] sm:$0x1]
    %v100 = vld [vmem:[%s7 + $0x1a] sm:$0x1]
    %v101 = vld [vmem:[%s7 + $0x1b] sm:$0x1]
    %v102 = vld [vmem:[%s7 + $0x1c] sm:$0x1]
    %v103 = vld [vmem:[%s7 + $0x1d] sm:$0x1]
    %vm104 = vcmask 261120
    %v105 = vsel %vm104, %v90, 0.0
    %106 = vadd.xlane.f32.xlu0 %v105
    %v107 = vpop.xlane.xlu0 %106
    %v108 = vsel %vm104, %v92, 0.0
    %109 = vadd.xlane.f32.xlu0 %v108
    %v110 = vpop.xlane.xlu0 %109
    %vm111 = vcmask 253952
    %v112 = vsel %vm111, %v95, 0.0
    %113 = vadd.xlane.f32.xlu0 %v112
    %v114 = vpop.xlane.xlu0 %113
    %v115 = vrcp.pop 32.0
    %v116 = vmul.f32 32.0, %v115
    %v117 = vsub.f32 1.0, %v116
    %v118 = vmul.f32 %v115, %v117
    %v119 = vadd.f32 %v115, %v118
    %vm120 = vweird.f32 %v115
    %v121 = vsel %vm120, %v115, %v119
    %v122 = vmul.f32 %v107, %v121
    %v123 = vmul.f32 %v110, %v121
    %v124 = vmul.f32 %v114, %v121
    %v125 = vsub.f32 %v90, %v122
    %v126 = vsub.f32 %v92, %v123
    %v127 = vsub.f32 %v95, %v124
    %v128 = vmul.f32 %v125, %v125
    %v129 = vmul.f32 %v126, %v126
    %v130 = vmul.f32 %v127, %v127
    %v131 = vsel %vm104, %v128, 0.0
    %132 = vadd.xlane.f32.xlu0 %v131
    %v133 = vpop.xlane.xlu0 %132
    %v134 = vsel %vm104, %v129, 0.0
    %135 = vadd.xlane.f32.xlu0 %v134
    %v136 = vpop.xlane.xlu0 %135
    %v137 = vsel %vm111, %v130, 0.0
    %138 = vadd.xlane.f32.xlu0 %v137
    %v139 = vpop.xlane.xlu0 %138
    %v140 = vmul.f32 %v133, %v121
    %v141 = vmul.f32 %v136, %v121
    %v142 = vmul.f32 %v139, %v121
    %v143 = vadd.f32 %v140, 1e-06
    %v144 = vadd.f32 %v141, 1e-06
    %v145 = vadd.f32 %v142, 1e-06
    %v146 = vrsqrt.pop %v143
    %v147 = vmul.f32 %v146, %v143
    %v148 = vmul.f32 %v147, %v146
    %v149 = vmul.f32 0.5, %v148
    %v150 = vsub.f32 1.5, %v149
    %v151 = vmul.f32 %v146, %v150
    %vm152 = vweird.f32 %v143
    %vm153 = vweird.f32 %v146
    %vm154 = vmor %vm152, %vm153
    %v155 = vsel %vm154, %v146, %v151
    %v156 = vrsqrt.pop %v144
    %v157 = vmul.f32 %v156, %v144
    %v158 = vmul.f32 %v157, %v156
    %v159 = vmul.f32 0.5, %v158
    %v160 = vsub.f32 1.5, %v159
    %v161 = vmul.f32 %v156, %v160
    %vm162 = vweird.f32 %v144
    %vm163 = vweird.f32 %v156
    %vm164 = vmor %vm162, %vm163
    %v165 = vsel %vm164, %v156, %v161
    %v166 = vrsqrt.pop %v145
    %v167 = vmul.f32 %v166, %v145
    %v168 = vmul.f32 %v167, %v166
    %v169 = vmul.f32 0.5, %v168
    %v170 = vsub.f32 1.5, %v169
    %v171 = vmul.f32 %v166, %v170
    %vm172 = vweird.f32 %v145
    %vm173 = vweird.f32 %v166
    %vm174 = vmor %vm172, %vm173
    %v175 = vsel %vm174, %v166, %v171
    %v176 = vmul.f32 %v125, %v155
    %v177 = vmul.f32 %v126, %v165
    %v178 = vmul.f32 %v127, %v175
    %v179 = vperm.slane %v98, 0
    %v180 = vmul.f32 %v176, %v179
    %v181 = vmul.f32 %v177, %v179
    %v182 = vmul.f32 %v178, %v179
    %v183 = vperm.slane %v99, 0
    %v184 = vadd.f32 %v180, %v183
    %v185 = vadd.f32 %v181, %v183
    %v186 = vadd.f32 %v182, %v183
    %v187 = vpack.c.bf16 %v185, %v184
    %v188 = vpack.c.bf16 %v186, %v186
    %v189 = vld [vmem:[%s3] sm:$0x7]
    %v190 = vld [vmem:[%s2] sm:$0xf]
    %v191 = vld [vmem:[%s2 + $0x4] sm:$0xf]
    %v192 = vld [vmem:[%s2 + $0x8] sm:$0xf]
    %v193 = vld [vmem:[%s2 + $0xc] sm:$0xf]
    %v194 = vperm.slane %v189, 0
    %v199 = vunpack.c.l.b16 %v190
    %v200 = vunpack.c.l.b16 %v191
    %v201 = vunpack.c.l.b16 %v192
    %v202 = vunpack.c.l.b16 %v193
    %v203 = vpack.c.b16 %v200, %v199
    %v204 = vpack.c.b16 %v202, %v201
    %v208 = vsel %vm104, %v187, 0
    %v211 = vsel %vm104, %v188, 0
    %213 = vmatpush.bf16.msra.mxu0 0
    %214 = vmatpush.bf16.msra.mxu0 0
    %215 = vmatpush.bf16.msra.mxu0 0
    %216 = vmatpush.bf16.msra.mxu0 0
    %217 = vmatpush.bf16.msra.mxu0 0
    %218 = vmatpush.bf16.msra.mxu0 0
    %219 = vmatpush.bf16.msra.mxu0 %v204
    %220 = vmatpush.bf16.msra.mxu0 %v203
    %221 = vmatmul.bf16.gmra.mxu0 %v208
    %v222 = vpop.f32.mrf.mxu0
    %v223 = vadd.f32 %v194, %v222
    %v224 = vpop.f32.mrf.mxu0
    %v225 = vadd.f32 %v194, %v224
    %226 = vmatmul.bf16.gmra.mxu0 %v211
    %v227 = vpop.f32.mrf.mxu0
    %v228 = vadd.f32 %v194, %v227
    %v229 = vpop.f32.mrf.mxu0
    %230 = vdwg.mxu0
    %s231 = scalar_lea.vmem %s2, 16
    %v232 = vld [vmem:[%s231] sm:$0xf]
    %v233 = vld [vmem:[%s231 + $0x4] sm:$0xf]
    %v234 = vld [vmem:[%s231 + $0x8] sm:$0xf]
    %v235 = vld [vmem:[%s231 + $0xc] sm:$0xf]
    %v236 = vperm.slane %v189, 1
    %v241 = vunpack.c.l.b16 %v232
    %v242 = vunpack.c.l.b16 %v233
    %v243 = vunpack.c.l.b16 %v234
    %v244 = vunpack.c.l.b16 %v235
    %v245 = vpack.c.b16 %v242, %v241
    %v246 = vpack.c.b16 %v244, %v243
    %249 = vmatpush.bf16.msra.mxu0 0
    %250 = vmatpush.bf16.msra.mxu0 0
    %251 = vmatpush.bf16.msra.mxu0 0
    %252 = vmatpush.bf16.msra.mxu0 0
    %253 = vmatpush.bf16.msra.mxu0 0
    %254 = vmatpush.bf16.msra.mxu0 0
    %255 = vmatpush.bf16.msra.mxu0 %v246
    %256 = vmatpush.bf16.msra.mxu0 %v245
    %257 = vmatmul.bf16.gmra.mxu0 %v208
    %v258 = vpop.f32.mrf.mxu0
    %v259 = vadd.f32 %v236, %v258
    %v260 = vpop.f32.mrf.mxu0
    %v261 = vadd.f32 %v236, %v260
    %262 = vmatmul.bf16.gmra.mxu0 %v211
    %v263 = vpop.f32.mrf.mxu0
    %v264 = vadd.f32 %v236, %v263
    %v265 = vpop.f32.mrf.mxu0
    %266 = vdwg.mxu0
    %s267 = scalar_lea.vmem %s2, 32
    %v268 = vld [vmem:[%s267] sm:$0xf]
    %v269 = vld [vmem:[%s267 + $0x4] sm:$0xf]
    %v270 = vld [vmem:[%s267 + $0x8] sm:$0xf]
    %v271 = vld [vmem:[%s267 + $0xc] sm:$0xf]
    %v272 = vperm.slane %v189, 2
    %v277 = vunpack.c.l.b16 %v268
    %v278 = vunpack.c.l.b16 %v269
    %v279 = vunpack.c.l.b16 %v270
    %v280 = vunpack.c.l.b16 %v271
    %v281 = vpack.c.b16 %v278, %v277
    %v282 = vpack.c.b16 %v280, %v279
    %285 = vmatpush.bf16.msra.mxu0 0
    %286 = vmatpush.bf16.msra.mxu0 0
    %287 = vmatpush.bf16.msra.mxu0 0
    %288 = vmatpush.bf16.msra.mxu0 0
    %289 = vmatpush.bf16.msra.mxu0 0
    %290 = vmatpush.bf16.msra.mxu0 0
    %291 = vmatpush.bf16.msra.mxu0 %v282
    %292 = vmatpush.bf16.msra.mxu0 %v281
    %293 = vmatmul.bf16.gmra.mxu0 %v208
    %v294 = vpop.f32.mrf.mxu0
    %v295 = vadd.f32 %v272, %v294
    %v296 = vpop.f32.mrf.mxu0
    %v297 = vadd.f32 %v272, %v296
    %298 = vmatmul.bf16.gmra.mxu0 %v211
    %v299 = vpop.f32.mrf.mxu0
    %v300 = vadd.f32 %v272, %v299
    %v301 = vpop.f32.mrf.mxu0
    %302 = vdwg.mxu0
    %v303 = vpack.c.bf16 %v225, %v223
    %v304 = vpack.c.bf16 %v228, %v228
    %v305 = vpack.c.bf16 %v261, %v259
    %v306 = vpack.c.bf16 %v264, %v264
    %vm307 = vcmask 130048
    %v309 = vsel %vm307, %v303, 0
    %v312 = vsel %vm307, %v304, 0
    %v315 = vsel %vm307, %v305, 0
    %v318 = vsel %vm307, %v306, 0
    %320 = vmatpush.bf16.xpose.msra.mxu0 0
    %321 = vmatpush.bf16.xpose.msra.mxu0 0
    %322 = vmatpush.bf16.xpose.msra.mxu0 0
    %323 = vmatpush.bf16.xpose.msra.mxu0 0
    %324 = vmatpush.bf16.xpose.msra.mxu0 0
    %325 = vmatpush.bf16.xpose.msra.mxu0 0
    %326 = vmatpush.bf16.xpose.msra.mxu0 %v318
    %327 = vmatpush.bf16.xpose.msra.mxu0 %v315
    %328 = vmatmul.bf16.gmra.mxu0 %v309
    %v329 = vpop.f32.mrf.mxu0
    %v330 = vadd.f32 0.0, %v329
    %v331 = vpop.f32.mrf.mxu0
    %v332 = vadd.f32 0.0, %v331
    %333 = vmatmul.bf16.gmra.mxu0 %v312
    %v334 = vpop.f32.mrf.mxu0
    %v335 = vadd.f32 0.0, %v334
    %v336 = vpop.f32.mrf.mxu0
    %337 = vdwg.mxu0
    %v338 = vmul.f32 %v330, 0.25
    %v339 = vmul.f32 %v332, 0.25
    %v340 = vmul.f32 %v335, 0.25
    %vm341 = vcmask 138240
    %v342 = vsel %vm341, %v338, -inf
    %343 = vmax.xlane.f32.xlu0 %v342
    %v344 = vpop.xlane.xlu0 %343
    %v345 = vsel %vm341, %v339, -inf
    %346 = vmax.xlane.f32.xlu0 %v345
    %v347 = vpop.xlane.xlu0 %346
    %vm348 = vcmask 131072
    %v349 = vsel %vm348, %v340, -inf
    %350 = vmax.xlane.f32.xlu0 %v349
    %v351 = vpop.xlane.xlu0 %350
    %v352 = vsub.f32 %v338, %v344
    %v353 = vsub.f32 %v339, %v347
    %v354 = vsub.f32 %v340, %v351
    %v355 = vmul.f32 %v352, 1.442695
    %v356 = vpow.pop %v355
    %v357 = vmul.f32 %v353, 1.442695
    %v358 = vpow.pop %v357
    %v359 = vmul.f32 %v354, 1.442695
    %v360 = vpow.pop %v359
    %v361 = vsel %vm341, %v356, 0.0
    %362 = vadd.xlane.f32.xlu0 %v361
    %v363 = vpop.xlane.xlu0 %362
    %v364 = vsel %vm341, %v358, 0.0
    %365 = vadd.xlane.f32.xlu0 %v364
    %v366 = vpop.xlane.xlu0 %365
    %v367 = vsel %vm348, %v360, 0.0
    %368 = vadd.xlane.f32.xlu0 %v367
    %v369 = vpop.xlane.xlu0 %368
    %v370 = vrcp.pop %v363
    %v371 = vrcp.pop %v366
    %v372 = vrcp.pop %v369
    %v373 = vmul.f32 %v356, %v370
    %v374 = vmul.f32 %v358, %v371
    %v375 = vmul.f32 %v360, %v372
    %v376 = vpack.c.bf16 %v374, %v373
    %v377 = vpack.c.bf16 %v375, %v375
    %v378 = vpack.c.bf16 %v297, %v295
    %v379 = vpack.c.bf16 %v300, %v300
    %v381 = vsel %vm341, %v376, 0
    %v384 = vsel %vm341, %v377, 0
    %vm386 = vcmask 1040384
    %v387 = vsel 0, 4294967295, 65535
    %v388 = vsel %vm386, %v387, 0
    %v390 = vand.u32 %v379, %v388
    %392 = vmatpush.bf16.msra.mxu0 0
    %393 = vmatpush.bf16.msra.mxu0 0
    %394 = vmatpush.bf16.msra.mxu0 0
    %395 = vmatpush.bf16.msra.mxu0 0
    %396 = vmatpush.bf16.msra.mxu0 0
    %397 = vmatpush.bf16.msra.mxu0 0
    %398 = vmatpush.bf16.msra.mxu0 %v390
    %399 = vmatpush.bf16.msra.mxu0 %v378
    %400 = vmatmul.bf16.gmra.mxu0 %v381
    %v401 = vpop.f32.mrf.mxu0
    %v402 = vadd.f32 0.0, %v401
    %v403 = vpop.f32.mrf.mxu0
    %v404 = vadd.f32 0.0, %v403
    %405 = vmatmul.bf16.gmra.mxu0 %v384
    %v406 = vpop.f32.mrf.mxu0
    %v407 = vadd.f32 0.0, %v406
    %v408 = vpop.f32.mrf.mxu0
    %409 = vdwg.mxu0
    %v410 = vpack.c.bf16 %v404, %v402
    %v411 = vpack.c.bf16 %v407, %v407
    %s412 = scalar_lea.vmem %s2, 48
    %v413 = vld [vmem:[%s412] sm:$0xf]
    %v414 = vld [vmem:[%s412 + $0x4] sm:$0xf]
    %v415 = vld [vmem:[%s412 + $0x8] sm:$0xf]
    %v416 = vld [vmem:[%s412 + $0xc] sm:$0xf]
    %s417 = scalar_lea.vmem %s3, 4
    %v418 = vld [vmem:[%s417] sm:$0x7]
    %s419 = scalar_lea.vmem %s2, 64
    %v420 = vld [vmem:[%s419] sm:$0xf]
    %v421 = vld [vmem:[%s419 + $0x4] sm:$0xf]
    %v422 = vld [vmem:[%s419 + $0x8] sm:$0xf]
    %v423 = vld [vmem:[%s419 + $0xc] sm:$0xf]
    %v424 = vperm.slane %v418, 0
    %v429 = vunpack.c.l.b16 %v420
    %v430 = vunpack.c.l.b16 %v421
    %v431 = vunpack.c.l.b16 %v422
    %v432 = vunpack.c.l.b16 %v423
    %v433 = vpack.c.b16 %v430, %v429
    %v434 = vpack.c.b16 %v432, %v431
    %437 = vmatpush.bf16.msra.mxu0 0
    %438 = vmatpush.bf16.msra.mxu0 0
    %439 = vmatpush.bf16.msra.mxu0 0
    %440 = vmatpush.bf16.msra.mxu0 0
    %441 = vmatpush.bf16.msra.mxu0 0
    %442 = vmatpush.bf16.msra.mxu0 0
    %443 = vmatpush.bf16.msra.mxu0 %v434
    %444 = vmatpush.bf16.msra.mxu0 %v433
    %445 = vmatmul.bf16.gmra.mxu0 %v208
    %v446 = vpop.f32.mrf.mxu0
    %v447 = vadd.f32 %v424, %v446
    %v448 = vpop.f32.mrf.mxu0
    %v449 = vadd.f32 %v424, %v448
    %450 = vmatmul.bf16.gmra.mxu0 %v211
    %v451 = vpop.f32.mrf.mxu0
    %v452 = vadd.f32 %v424, %v451
    %v453 = vpop.f32.mrf.mxu0
    %454 = vdwg.mxu0
    %s455 = scalar_lea.vmem %s2, 80
    %v456 = vld [vmem:[%s455] sm:$0xf]
    %v457 = vld [vmem:[%s455 + $0x4] sm:$0xf]
    %v458 = vld [vmem:[%s455 + $0x8] sm:$0xf]
    %v459 = vld [vmem:[%s455 + $0xc] sm:$0xf]
    %v460 = vperm.slane %v418, 1
    %v465 = vunpack.c.l.b16 %v456
    %v466 = vunpack.c.l.b16 %v457
    %v467 = vunpack.c.l.b16 %v458
    %v468 = vunpack.c.l.b16 %v459
    %v469 = vpack.c.b16 %v466, %v465
    %v470 = vpack.c.b16 %v468, %v467
    %473 = vmatpush.bf16.msra.mxu0 0
    %474 = vmatpush.bf16.msra.mxu0 0
    %475 = vmatpush.bf16.msra.mxu0 0
    %476 = vmatpush.bf16.msra.mxu0 0
    %477 = vmatpush.bf16.msra.mxu0 0
    %478 = vmatpush.bf16.msra.mxu0 0
    %479 = vmatpush.bf16.msra.mxu0 %v470
    %480 = vmatpush.bf16.msra.mxu0 %v469
    %481 = vmatmul.bf16.gmra.mxu0 %v208
    %v482 = vpop.f32.mrf.mxu0
    %v483 = vadd.f32 %v460, %v482
    %v484 = vpop.f32.mrf.mxu0
    %v485 = vadd.f32 %v460, %v484
    %486 = vmatmul.bf16.gmra.mxu0 %v211
    %v487 = vpop.f32.mrf.mxu0
    %v488 = vadd.f32 %v460, %v487
    %v489 = vpop.f32.mrf.mxu0
    %490 = vdwg.mxu0
    %s491 = scalar_lea.vmem %s2, 96
    %v492 = vld [vmem:[%s491] sm:$0xf]
    %v493 = vld [vmem:[%s491 + $0x4] sm:$0xf]
    %v494 = vld [vmem:[%s491 + $0x8] sm:$0xf]
    %v495 = vld [vmem:[%s491 + $0xc] sm:$0xf]
    %v496 = vperm.slane %v418, 2
    %v501 = vunpack.c.l.b16 %v492
    %v502 = vunpack.c.l.b16 %v493
    %v503 = vunpack.c.l.b16 %v494
    %v504 = vunpack.c.l.b16 %v495
    %v505 = vpack.c.b16 %v502, %v501
    %v506 = vpack.c.b16 %v504, %v503
    %509 = vmatpush.bf16.msra.mxu0 0
    %510 = vmatpush.bf16.msra.mxu0 0
    %511 = vmatpush.bf16.msra.mxu0 0
    %512 = vmatpush.bf16.msra.mxu0 0
    %513 = vmatpush.bf16.msra.mxu0 0
    %514 = vmatpush.bf16.msra.mxu0 0
    %515 = vmatpush.bf16.msra.mxu0 %v506
    %516 = vmatpush.bf16.msra.mxu0 %v505
    %517 = vmatmul.bf16.gmra.mxu0 %v208
    %v518 = vpop.f32.mrf.mxu0
    %v519 = vadd.f32 %v496, %v518
    %v520 = vpop.f32.mrf.mxu0
    %v521 = vadd.f32 %v496, %v520
    %522 = vmatmul.bf16.gmra.mxu0 %v211
    %v523 = vpop.f32.mrf.mxu0
    %v524 = vadd.f32 %v496, %v523
    %v525 = vpop.f32.mrf.mxu0
    %526 = vdwg.mxu0
    %v527 = vpack.c.bf16 %v449, %v447
    %v528 = vpack.c.bf16 %v452, %v452
    %v529 = vpack.c.bf16 %v485, %v483
    %v530 = vpack.c.bf16 %v488, %v488
    %v532 = vsel %vm307, %v527, 0
    %v535 = vsel %vm307, %v528, 0
    %v538 = vsel %vm307, %v529, 0
    %v541 = vsel %vm307, %v530, 0
    %543 = vmatpush.bf16.xpose.msra.mxu0 0
    %544 = vmatpush.bf16.xpose.msra.mxu0 0
    %545 = vmatpush.bf16.xpose.msra.mxu0 0
    %546 = vmatpush.bf16.xpose.msra.mxu0 0
    %547 = vmatpush.bf16.xpose.msra.mxu0 0
    %548 = vmatpush.bf16.xpose.msra.mxu0 0
    %549 = vmatpush.bf16.xpose.msra.mxu0 %v541
    %550 = vmatpush.bf16.xpose.msra.mxu0 %v538
    %551 = vmatmul.bf16.gmra.mxu0 %v532
    %v552 = vpop.f32.mrf.mxu0
    %v553 = vadd.f32 0.0, %v552
    %v554 = vpop.f32.mrf.mxu0
    %v555 = vadd.f32 0.0, %v554
    %556 = vmatmul.bf16.gmra.mxu0 %v535
    %v557 = vpop.f32.mrf.mxu0
    %v558 = vadd.f32 0.0, %v557
    %v559 = vpop.f32.mrf.mxu0
    %560 = vdwg.mxu0
    %v561 = vmul.f32 %v553, 0.25
    %v562 = vmul.f32 %v555, 0.25
    %v563 = vmul.f32 %v558, 0.25
    %v564 = vsel %vm341, %v561, -inf
    %565 = vmax.xlane.f32.xlu0 %v564
    %v566 = vpop.xlane.xlu0 %565
    %v567 = vsel %vm341, %v562, -inf
    %568 = vmax.xlane.f32.xlu0 %v567
    %v569 = vpop.xlane.xlu0 %568
    %v570 = vsel %vm348, %v563, -inf
    %571 = vmax.xlane.f32.xlu0 %v570
    %v572 = vpop.xlane.xlu0 %571
    %v573 = vsub.f32 %v561, %v566
    %v574 = vsub.f32 %v562, %v569
    %v575 = vsub.f32 %v563, %v572
    %v576 = vmul.f32 %v573, 1.442695
    %v577 = vpow.pop %v576
    %v578 = vmul.f32 %v574, 1.442695
    %v579 = vpow.pop %v578
    %v580 = vmul.f32 %v575, 1.442695
    %v581 = vpow.pop %v580
    %v582 = vsel %vm341, %v577, 0.0
    %583 = vadd.xlane.f32.xlu0 %v582
    %v584 = vpop.xlane.xlu0 %583
    %v585 = vsel %vm341, %v579, 0.0
    %586 = vadd.xlane.f32.xlu0 %v585
    %v587 = vpop.xlane.xlu0 %586
    %v588 = vsel %vm348, %v581, 0.0
    %589 = vadd.xlane.f32.xlu0 %v588
    %v590 = vpop.xlane.xlu0 %589
    %v591 = vrcp.pop %v584
    %v592 = vrcp.pop %v587
    %v593 = vrcp.pop %v590
    %v594 = vmul.f32 %v577, %v591
    %v595 = vmul.f32 %v579, %v592
    %v596 = vmul.f32 %v581, %v593
    %v597 = vpack.c.bf16 %v595, %v594
    %v598 = vpack.c.bf16 %v596, %v596
    %v599 = vpack.c.bf16 %v521, %v519
    %v600 = vpack.c.bf16 %v524, %v524
    %v602 = vsel %vm341, %v597, 0
    %v605 = vsel %vm341, %v598, 0
    %v608 = vand.u32 %v600, %v388
    %610 = vmatpush.bf16.msra.mxu0 0
    %611 = vmatpush.bf16.msra.mxu0 0
    %612 = vmatpush.bf16.msra.mxu0 0
    %613 = vmatpush.bf16.msra.mxu0 0
    %614 = vmatpush.bf16.msra.mxu0 0
    %615 = vmatpush.bf16.msra.mxu0 0
    %616 = vmatpush.bf16.msra.mxu0 %v608
    %617 = vmatpush.bf16.msra.mxu0 %v599
    %618 = vmatmul.bf16.gmra.mxu0 %v602
    %v619 = vpop.f32.mrf.mxu0
    %v620 = vadd.f32 0.0, %v619
    %v621 = vpop.f32.mrf.mxu0
    %v622 = vadd.f32 0.0, %v621
    %623 = vmatmul.bf16.gmra.mxu0 %v605
    %v624 = vpop.f32.mrf.mxu0
    %v625 = vadd.f32 0.0, %v624
    %v626 = vpop.f32.mrf.mxu0
    %627 = vdwg.mxu0
    %v628 = vpack.c.bf16 %v622, %v620
    %v629 = vpack.c.bf16 %v625, %v625
    %s630 = scalar_lea.vmem %s2, 112
    %v631 = vld [vmem:[%s630] sm:$0xf]
    %v632 = vld [vmem:[%s630 + $0x4] sm:$0xf]
    %v633 = vld [vmem:[%s630 + $0x8] sm:$0xf]
    %v634 = vld [vmem:[%s630 + $0xc] sm:$0xf]
    %v639 = vunpack.c.l.b16 %v631
    %v640 = vunpack.c.l.b16 %v632
    %v641 = vunpack.c.l.b16 %v633
    %v642 = vunpack.c.l.b16 %v634
    %v643 = vpack.c.b16 %v640, %v639
    %v644 = vpack.c.b16 %v642, %v641
    %v646 = vsel %vm307, %v628, 0
    %v649 = vsel %vm307, %v629, 0
    %v652 = vsel %vm307, %v643, 0
    %v655 = vsel %vm307, %v644, 0
    %657 = vmatpush.bf16.xpose.msra.mxu0 0
    %658 = vmatpush.bf16.xpose.msra.mxu0 0
    %659 = vmatpush.bf16.xpose.msra.mxu0 0
    %660 = vmatpush.bf16.xpose.msra.mxu0 0
    %661 = vmatpush.bf16.xpose.msra.mxu0 0
    %662 = vmatpush.bf16.xpose.msra.mxu0 0
    %663 = vmatpush.bf16.xpose.msra.mxu0 %v655
    %664 = vmatpush.bf16.xpose.msra.mxu0 %v652
    %665 = vmatmul.bf16.gmra.mxu0 %v646
    %v666 = vpop.f32.mrf.mxu0
    %v667 = vadd.f32 0.0, %v666
    %v668 = vpop.f32.mrf.mxu0
    %v669 = vadd.f32 0.0, %v668
    %670 = vmatmul.bf16.gmra.mxu0 %v649
    %v671 = vpop.f32.mrf.mxu0
    %v672 = vadd.f32 0.0, %v671
    %v673 = vpop.f32.mrf.mxu0
    %674 = vdwg.mxu0
    %v679 = vunpack.c.l.b16 %v413
    %v680 = vunpack.c.l.b16 %v414
    %v681 = vunpack.c.l.b16 %v415
    %v682 = vunpack.c.l.b16 %v416
    %v683 = vpack.c.b16 %v680, %v679
    %v684 = vpack.c.b16 %v682, %v681
    %v686 = vsel %vm307, %v410, 0
    %v689 = vsel %vm307, %v411, 0
    %v692 = vsel %vm307, %v683, 0
    %v695 = vsel %vm307, %v684, 0
    %697 = vmatpush.bf16.xpose.msra.mxu0 0
    %698 = vmatpush.bf16.xpose.msra.mxu0 0
    %699 = vmatpush.bf16.xpose.msra.mxu0 0
    %700 = vmatpush.bf16.xpose.msra.mxu0 0
    %701 = vmatpush.bf16.xpose.msra.mxu0 0
    %702 = vmatpush.bf16.xpose.msra.mxu0 0
    %703 = vmatpush.bf16.xpose.msra.mxu0 %v695
    %704 = vmatpush.bf16.xpose.msra.mxu0 %v692
    %705 = vmatmul.bf16.gmra.mxu0 %v686
    %v706 = vpop.f32.mrf.mxu0
    %v707 = vadd.f32 %v667, %v706
    %v708 = vpop.f32.mrf.mxu0
    %v709 = vadd.f32 %v669, %v708
    %710 = vmatmul.bf16.gmra.mxu0 %v689
    %v711 = vpop.f32.mrf.mxu0
    %v712 = vadd.f32 %v672, %v711
    %v713 = vpop.f32.mrf.mxu0
    %714 = vdwg.mxu0
    %v715 = vadd.f32 %v90, %v707
    %v716 = vadd.f32 %v92, %v709
    %v717 = vadd.f32 %v95, %v712
    %v718 = vperm.slane %v100, 0
    %v719 = vadd.f32 %v715, %v718
    %v720 = vadd.f32 %v716, %v718
    %v721 = vadd.f32 %v717, %v718
    %v722 = vsel %vm104, %v719, 0.0
    %723 = vadd.xlane.f32.xlu0 %v722
    %v724 = vpop.xlane.xlu0 %723
    %v725 = vsel %vm104, %v720, 0.0
    %726 = vadd.xlane.f32.xlu0 %v725
    %v727 = vpop.xlane.xlu0 %726
    %v728 = vsel %vm111, %v721, 0.0
    %729 = vadd.xlane.f32.xlu0 %v728
    %v730 = vpop.xlane.xlu0 %729
    %v731 = vmul.f32 %v724, %v121
    %v732 = vmul.f32 %v727, %v121
    %v733 = vmul.f32 %v730, %v121
    %v734 = vsub.f32 %v719, %v731
    %v735 = vsub.f32 %v720, %v732
    %v736 = vsub.f32 %v721, %v733
    %v737 = vmul.f32 %v734, %v734
    %v738 = vmul.f32 %v735, %v735
    %v739 = vmul.f32 %v736, %v736
    %v740 = vsel %vm104, %v737, 0.0
    %741 = vadd.xlane.f32.xlu0 %v740
    %v742 = vpop.xlane.xlu0 %741
    %v743 = vsel %vm104, %v738, 0.0
    %744 = vadd.xlane.f32.xlu0 %v743
    %v745 = vpop.xlane.xlu0 %744
    %v746 = vsel %vm111, %v739, 0.0
    %747 = vadd.xlane.f32.xlu0 %v746
    %v748 = vpop.xlane.xlu0 %747
    %v749 = vmul.f32 %v742, %v121
    %v750 = vmul.f32 %v745, %v121
    %v751 = vmul.f32 %v748, %v121
    %v752 = vadd.f32 %v749, 1e-06
    %v753 = vadd.f32 %v750, 1e-06
    %v754 = vadd.f32 %v751, 1e-06
    %v755 = vrsqrt.pop %v752
    %v756 = vmul.f32 %v755, %v752
    %v757 = vmul.f32 %v756, %v755
    %v758 = vmul.f32 0.5, %v757
    %v759 = vsub.f32 1.5, %v758
    %v760 = vmul.f32 %v755, %v759
    %vm761 = vweird.f32 %v752
    %vm762 = vweird.f32 %v755
    %vm763 = vmor %vm761, %vm762
    %v764 = vsel %vm763, %v755, %v760
    %v765 = vrsqrt.pop %v753
    %v766 = vmul.f32 %v765, %v753
    %v767 = vmul.f32 %v766, %v765
    %v768 = vmul.f32 0.5, %v767
    %v769 = vsub.f32 1.5, %v768
    %v770 = vmul.f32 %v765, %v769
    %vm771 = vweird.f32 %v753
    %vm772 = vweird.f32 %v765
    %vm773 = vmor %vm771, %vm772
    %v774 = vsel %vm773, %v765, %v770
    %v775 = vrsqrt.pop %v754
    %v776 = vmul.f32 %v775, %v754
    %v777 = vmul.f32 %v776, %v775
    %v778 = vmul.f32 0.5, %v777
    %v779 = vsub.f32 1.5, %v778
    %v780 = vmul.f32 %v775, %v779
    %vm781 = vweird.f32 %v754
    %vm782 = vweird.f32 %v775
    %vm783 = vmor %vm781, %vm782
    %v784 = vsel %vm783, %v775, %v780
    %v785 = vmul.f32 %v734, %v764
    %v786 = vmul.f32 %v735, %v774
    %v787 = vmul.f32 %v736, %v784
    %v788 = vperm.slane %v101, 0
    %v789 = vmul.f32 %v785, %v788
    %v790 = vmul.f32 %v786, %v788
    %v791 = vmul.f32 %v787, %v788
    %v792 = vperm.slane %v102, 0
    %v793 = vadd.f32 %v789, %v792
    %v794 = vadd.f32 %v790, %v792
    %v795 = vadd.f32 %v791, %v792
    %v796 = vpack.c.bf16 %v794, %v793
    %v797 = vpack.c.bf16 %v795, %v795
    %v798 = vld [vmem:[%s4] sm:$0xf]
    %v799 = vld [vmem:[%s4 + $0x4] sm:$0xf]
    %v800 = vld [vmem:[%s4 + $0x8] sm:$0xf]
    %v801 = vld [vmem:[%s4 + $0xc] sm:$0xf]
    %v802 = vld [vmem:[%s5] sm:$0x1]
    %v804 = vperm.slane %v802, 0
    %v810 = vunpack.c.l.b16 %v798
    %v811 = vunpack.c.l.b16 %v799
    %v812 = vunpack.c.l.b16 %v800
    %v813 = vunpack.c.l.b16 %v801
    %v814 = vpack.c.b16 %v811, %v810
    %v815 = vpack.c.b16 %v813, %v812
    %v819 = vsel %vm104, %v796, 0
    %v822 = vsel %vm104, %v797, 0
    %824 = vmatpush.bf16.msra.mxu0 0
    %825 = vmatpush.bf16.msra.mxu0 0
    %826 = vmatpush.bf16.msra.mxu0 0
    %827 = vmatpush.bf16.msra.mxu0 0
    %828 = vmatpush.bf16.msra.mxu0 0
    %829 = vmatpush.bf16.msra.mxu0 0
    %830 = vmatpush.bf16.msra.mxu0 %v815
    %831 = vmatpush.bf16.msra.mxu0 %v814
    %832 = vmatmul.bf16.gmra.mxu0 %v819
    %v833 = vpop.f32.mrf.mxu0
    %v834 = vadd.f32 %v804, %v833
    %v835 = vpop.f32.mrf.mxu0
    %v836 = vadd.f32 %v804, %v835
    %837 = vmatmul.bf16.gmra.mxu0 %v822
    %v838 = vpop.f32.mrf.mxu0
    %v839 = vadd.f32 %v804, %v838
    %v840 = vpop.f32.mrf.mxu0
    %841 = vdwg.mxu0
    %v842 = vmul.f32 %v834, %v834
    %v843 = vmul.f32 %v836, %v836
    %v844 = vmul.f32 %v839, %v839
    %v845 = vmul.f32 %v834, %v842
    %v846 = vmul.f32 %v836, %v843
    %v847 = vmul.f32 %v839, %v844
    %v848 = vmul.f32 %v845, 0.044715
    %v849 = vmul.f32 %v846, 0.044715
    %v850 = vmul.f32 %v847, 0.044715
    %v851 = vadd.f32 %v834, %v848
    %v852 = vadd.f32 %v836, %v849
    %v853 = vadd.f32 %v839, %v850
    %v854 = vmul.f32 %v851, 0.7978846
    %v855 = vmul.f32 %v852, 0.7978846
    %v856 = vmul.f32 %v853, 0.7978846
    %v857 = vtanh.pop %v854
    %v858 = vtanh.pop %v855
    %v859 = vtanh.pop %v856
    %v860 = vadd.f32 %v857, 1.0
    %v861 = vadd.f32 %v858, 1.0
    %v862 = vadd.f32 %v859, 1.0
    %v863 = vmul.f32 %v860, 0.5
    %v864 = vmul.f32 %v861, 0.5
    %v865 = vmul.f32 %v862, 0.5
    %v866 = vmul.f32 %v834, %v863
    %v867 = vmul.f32 %v836, %v864
    %v868 = vmul.f32 %v839, %v865
    %v869 = vpack.c.bf16 %v867, %v866
    %v870 = vpack.c.bf16 %v868, %v868
    %v871 = vld [vmem:[%s6] sm:$0xf]
    %v872 = vld [vmem:[%s6 + $0x4] sm:$0xf]
    %v873 = vld [vmem:[%s6 + $0x8] sm:$0xf]
    %v874 = vld [vmem:[%s6 + $0xc] sm:$0xf]
    %v875 = vld [vmem:[%s6 + $0x10] sm:$0xf]
    %v876 = vld [vmem:[%s6 + $0x14] sm:$0xf]
    %v877 = vld [vmem:[%s6 + $0x18] sm:$0xf]
    %v878 = vld [vmem:[%s6 + $0x1c] sm:$0xf]
    %v879 = vld [vmem:[%s6 + $0x20] sm:$0xf]
    %v880 = vld [vmem:[%s6 + $0x24] sm:$0xf]
    %v881 = vld [vmem:[%s6 + $0x28] sm:$0xf]
    %v882 = vld [vmem:[%s6 + $0x2c] sm:$0xf]
    %v883 = vld [vmem:[%s6 + $0x30] sm:$0xf]
    %v884 = vld [vmem:[%s6 + $0x34] sm:$0xf]
    %v885 = vld [vmem:[%s6 + $0x38] sm:$0xf]
    %v886 = vld [vmem:[%s6 + $0x3c] sm:$0xf]
    %v887 = vperm.slane %v103, 0
    %v904 = vunpack.c.l.b16 %v871
    %v905 = vunpack.c.l.b16 %v872
    %v906 = vunpack.c.l.b16 %v873
    %v907 = vunpack.c.l.b16 %v874
    %v908 = vunpack.c.l.b16 %v875
    %v909 = vunpack.c.l.b16 %v876
    %v910 = vunpack.c.l.b16 %v877
    %v911 = vunpack.c.l.b16 %v878
    %v912 = vunpack.c.l.b16 %v879
    %v913 = vunpack.c.l.b16 %v880
    %v914 = vunpack.c.l.b16 %v881
    %v915 = vunpack.c.l.b16 %v882
    %v916 = vunpack.c.l.b16 %v883
    %v917 = vunpack.c.l.b16 %v884
    %v918 = vunpack.c.l.b16 %v885
    %v919 = vunpack.c.l.b16 %v886
    %v920 = vpack.c.b16 %v905, %v904
    %v921 = vpack.c.b16 %v907, %v906
    %v922 = vpack.c.b16 %v909, %v908
    %v923 = vpack.c.b16 %v911, %v910
    %v924 = vpack.c.b16 %v913, %v912
    %v925 = vpack.c.b16 %v915, %v914
    %v926 = vpack.c.b16 %v917, %v916
    %v927 = vpack.c.b16 %v919, %v918
    %936 = vmatpush.bf16.msra.mxu0 %v927
    %937 = vmatpush.bf16.msra.mxu0 %v926
    %938 = vmatpush.bf16.msra.mxu0 %v925
    %939 = vmatpush.bf16.msra.mxu0 %v924
    %940 = vmatpush.bf16.msra.mxu0 %v923
    %941 = vmatpush.bf16.msra.mxu0 %v922
    %942 = vmatpush.bf16.msra.mxu0 %v921
    %943 = vmatpush.bf16.msra.mxu0 %v920
    %944 = vmatmul.bf16.gmra.mxu0 %v869
    %v945 = vpop.f32.mrf.mxu0
    %v946 = vadd.f32 %v887, %v945
    %v947 = vpop.f32.mrf.mxu0
    %v948 = vadd.f32 %v887, %v947
    %949 = vmatmul.bf16.gmra.mxu0 %v870
    %v950 = vpop.f32.mrf.mxu0
    %v951 = vadd.f32 %v887, %v950
    %v952 = vpop.f32.mrf.mxu0
    %953 = vdwg.mxu0
    %v954 = vadd.f32 %v719, %v946
    %v955 = vadd.f32 %v720, %v948
    %v956 = vadd.f32 %v721, %v951
    %v957 = vld [vmem:[%s7 + $0x20] sm:$0x1]
    %v958 = vld [vmem:[%s7 + $0x21] sm:$0x1]
    %v959 = vld [vmem:[%s7 + $0x22] sm:$0x1]
    %v960 = vld [vmem:[%s7 + $0x23] sm:$0x1]
    %v961 = vld [vmem:[%s7 + $0x24] sm:$0x1]
    %v962 = vld [vmem:[%s7 + $0x25] sm:$0x1]
    %v963 = vsel %vm104, %v954, 0.0
    %964 = vadd.xlane.f32.xlu0 %v963
    %v965 = vpop.xlane.xlu0 %964
    %v966 = vsel %vm104, %v955, 0.0
    %967 = vadd.xlane.f32.xlu0 %v966
    %v968 = vpop.xlane.xlu0 %967
    %v969 = vsel %vm111, %v956, 0.0
    %970 = vadd.xlane.f32.xlu0 %v969
    %v971 = vpop.xlane.xlu0 %970
    %v972 = vmul.f32 %v965, %v121
    %v973 = vmul.f32 %v968, %v121
    %v974 = vmul.f32 %v971, %v121
    %v975 = vsub.f32 %v954, %v972
    %v976 = vsub.f32 %v955, %v973
    %v977 = vsub.f32 %v956, %v974
    %v978 = vmul.f32 %v975, %v975
    %v979 = vmul.f32 %v976, %v976
    %v980 = vmul.f32 %v977, %v977
    %v981 = vsel %vm104, %v978, 0.0
    %982 = vadd.xlane.f32.xlu0 %v981
    %v983 = vpop.xlane.xlu0 %982
    %v984 = vsel %vm104, %v979, 0.0
    %985 = vadd.xlane.f32.xlu0 %v984
    %v986 = vpop.xlane.xlu0 %985
    %v987 = vsel %vm111, %v980, 0.0
    %988 = vadd.xlane.f32.xlu0 %v987
    %v989 = vpop.xlane.xlu0 %988
    %v990 = vmul.f32 %v983, %v121
    %v991 = vmul.f32 %v986, %v121
    %v992 = vmul.f32 %v989, %v121
    %v993 = vadd.f32 %v990, 1e-06
    %v994 = vadd.f32 %v991, 1e-06
    %v995 = vadd.f32 %v992, 1e-06
    %v996 = vrsqrt.pop %v993
    %v997 = vmul.f32 %v996, %v993
    %v998 = vmul.f32 %v997, %v996
    %v999 = vmul.f32 0.5, %v998
    %v1000 = vsub.f32 1.5, %v999
    %v1001 = vmul.f32 %v996, %v1000
    %vm1002 = vweird.f32 %v993
    %vm1003 = vweird.f32 %v996
    %vm1004 = vmor %vm1002, %vm1003
    %v1005 = vsel %vm1004, %v996, %v1001
    %v1006 = vrsqrt.pop %v994
    %v1007 = vmul.f32 %v1006, %v994
    %v1008 = vmul.f32 %v1007, %v1006
    %v1009 = vmul.f32 0.5, %v1008
    %v1010 = vsub.f32 1.5, %v1009
    %v1011 = vmul.f32 %v1006, %v1010
    %vm1012 = vweird.f32 %v994
    %vm1013 = vweird.f32 %v1006
    %vm1014 = vmor %vm1012, %vm1013
    %v1015 = vsel %vm1014, %v1006, %v1011
    %v1016 = vrsqrt.pop %v995
    %v1017 = vmul.f32 %v1016, %v995
    %v1018 = vmul.f32 %v1017, %v1016
    %v1019 = vmul.f32 0.5, %v1018
    %v1020 = vsub.f32 1.5, %v1019
    %v1021 = vmul.f32 %v1016, %v1020
    %vm1022 = vweird.f32 %v995
    %vm1023 = vweird.f32 %v1016
    %vm1024 = vmor %vm1022, %vm1023
    %v1025 = vsel %vm1024, %v1016, %v1021
    %v1026 = vmul.f32 %v975, %v1005
    %v1027 = vmul.f32 %v976, %v1015
    %v1028 = vmul.f32 %v977, %v1025
    %v1029 = vperm.slane %v957, 0
    %v1030 = vmul.f32 %v1026, %v1029
    %v1031 = vmul.f32 %v1027, %v1029
    %v1032 = vmul.f32 %v1028, %v1029
    %v1033 = vperm.slane %v958, 0
    %v1034 = vadd.f32 %v1030, %v1033
    %v1035 = vadd.f32 %v1031, %v1033
    %v1036 = vadd.f32 %v1032, %v1033
    %v1037 = vpack.c.bf16 %v1035, %v1034
    %v1038 = vpack.c.bf16 %v1036, %v1036
    %s1039 = scalar_lea.vmem %s3, 8
    %v1040 = vld [vmem:[%s1039] sm:$0x7]
    %s1041 = scalar_lea.vmem %s2, 128
    %v1042 = vld [vmem:[%s1041] sm:$0xf]
    %v1043 = vld [vmem:[%s1041 + $0x4] sm:$0xf]
    %v1044 = vld [vmem:[%s1041 + $0x8] sm:$0xf]
    %v1045 = vld [vmem:[%s1041 + $0xc] sm:$0xf]
    %v1046 = vperm.slane %v1040, 0
    %v1051 = vunpack.c.l.b16 %v1042
    %v1052 = vunpack.c.l.b16 %v1043
    %v1053 = vunpack.c.l.b16 %v1044
    %v1054 = vunpack.c.l.b16 %v1045
    %v1055 = vpack.c.b16 %v1052, %v1051
    %v1056 = vpack.c.b16 %v1054, %v1053
    %v1060 = vsel %vm104, %v1037, 0
    %v1063 = vsel %vm104, %v1038, 0
    %1065 = vmatpush.bf16.msra.mxu0 0
    %1066 = vmatpush.bf16.msra.mxu0 0
    %1067 = vmatpush.bf16.msra.mxu0 0
    %1068 = vmatpush.bf16.msra.mxu0 0
    %1069 = vmatpush.bf16.msra.mxu0 0
    %1070 = vmatpush.bf16.msra.mxu0 0
    %1071 = vmatpush.bf16.msra.mxu0 %v1056
    %1072 = vmatpush.bf16.msra.mxu0 %v1055
    %1073 = vmatmul.bf16.gmra.mxu0 %v1060
    %v1074 = vpop.f32.mrf.mxu0
    %v1075 = vadd.f32 %v1046, %v1074
    %v1076 = vpop.f32.mrf.mxu0
    %v1077 = vadd.f32 %v1046, %v1076
    %1078 = vmatmul.bf16.gmra.mxu0 %v1063
    %v1079 = vpop.f32.mrf.mxu0
    %v1080 = vadd.f32 %v1046, %v1079
    %v1081 = vpop.f32.mrf.mxu0
    %1082 = vdwg.mxu0
    %s1083 = scalar_lea.vmem %s2, 144
    %v1084 = vld [vmem:[%s1083] sm:$0xf]
    %v1085 = vld [vmem:[%s1083 + $0x4] sm:$0xf]
    %v1086 = vld [vmem:[%s1083 + $0x8] sm:$0xf]
    %v1087 = vld [vmem:[%s1083 + $0xc] sm:$0xf]
    %v1088 = vperm.slane %v1040, 1
    %v1093 = vunpack.c.l.b16 %v1084
    %v1094 = vunpack.c.l.b16 %v1085
    %v1095 = vunpack.c.l.b16 %v1086
    %v1096 = vunpack.c.l.b16 %v1087
    %v1097 = vpack.c.b16 %v1094, %v1093
    %v1098 = vpack.c.b16 %v1096, %v1095
    %1101 = vmatpush.bf16.msra.mxu0 0
    %1102 = vmatpush.bf16.msra.mxu0 0
    %1103 = vmatpush.bf16.msra.mxu0 0
    %1104 = vmatpush.bf16.msra.mxu0 0
    %1105 = vmatpush.bf16.msra.mxu0 0
    %1106 = vmatpush.bf16.msra.mxu0 0
    %1107 = vmatpush.bf16.msra.mxu0 %v1098
    %1108 = vmatpush.bf16.msra.mxu0 %v1097
    %1109 = vmatmul.bf16.gmra.mxu0 %v1060
    %v1110 = vpop.f32.mrf.mxu0
    %v1111 = vadd.f32 %v1088, %v1110
    %v1112 = vpop.f32.mrf.mxu0
    %v1113 = vadd.f32 %v1088, %v1112
    %1114 = vmatmul.bf16.gmra.mxu0 %v1063
    %v1115 = vpop.f32.mrf.mxu0
    %v1116 = vadd.f32 %v1088, %v1115
    %v1117 = vpop.f32.mrf.mxu0
    %1118 = vdwg.mxu0
    %s1119 = scalar_lea.vmem %s2, 160
    %v1120 = vld [vmem:[%s1119] sm:$0xf]
    %v1121 = vld [vmem:[%s1119 + $0x4] sm:$0xf]
    %v1122 = vld [vmem:[%s1119 + $0x8] sm:$0xf]
    %v1123 = vld [vmem:[%s1119 + $0xc] sm:$0xf]
    %v1124 = vperm.slane %v1040, 2
    %v1129 = vunpack.c.l.b16 %v1120
    %v1130 = vunpack.c.l.b16 %v1121
    %v1131 = vunpack.c.l.b16 %v1122
    %v1132 = vunpack.c.l.b16 %v1123
    %v1133 = vpack.c.b16 %v1130, %v1129
    %v1134 = vpack.c.b16 %v1132, %v1131
    %1137 = vmatpush.bf16.msra.mxu0 0
    %1138 = vmatpush.bf16.msra.mxu0 0
    %1139 = vmatpush.bf16.msra.mxu0 0
    %1140 = vmatpush.bf16.msra.mxu0 0
    %1141 = vmatpush.bf16.msra.mxu0 0
    %1142 = vmatpush.bf16.msra.mxu0 0
    %1143 = vmatpush.bf16.msra.mxu0 %v1134
    %1144 = vmatpush.bf16.msra.mxu0 %v1133
    %1145 = vmatmul.bf16.gmra.mxu0 %v1060
    %v1146 = vpop.f32.mrf.mxu0
    %v1147 = vadd.f32 %v1124, %v1146
    %v1148 = vpop.f32.mrf.mxu0
    %v1149 = vadd.f32 %v1124, %v1148
    %1150 = vmatmul.bf16.gmra.mxu0 %v1063
    %v1151 = vpop.f32.mrf.mxu0
    %v1152 = vadd.f32 %v1124, %v1151
    %v1153 = vpop.f32.mrf.mxu0
    %1154 = vdwg.mxu0
    %v1155 = vpack.c.bf16 %v1077, %v1075
    %v1156 = vpack.c.bf16 %v1080, %v1080
    %v1157 = vpack.c.bf16 %v1113, %v1111
    %v1158 = vpack.c.bf16 %v1116, %v1116
    %v1160 = vsel %vm307, %v1155, 0
    %v1163 = vsel %vm307, %v1156, 0
    %v1166 = vsel %vm307, %v1157, 0
    %v1169 = vsel %vm307, %v1158, 0
    %1171 = vmatpush.bf16.xpose.msra.mxu0 0
    %1172 = vmatpush.bf16.xpose.msra.mxu0 0
    %1173 = vmatpush.bf16.xpose.msra.mxu0 0
    %1174 = vmatpush.bf16.xpose.msra.mxu0 0
    %1175 = vmatpush.bf16.xpose.msra.mxu0 0
    %1176 = vmatpush.bf16.xpose.msra.mxu0 0
    %1177 = vmatpush.bf16.xpose.msra.mxu0 %v1169
    %1178 = vmatpush.bf16.xpose.msra.mxu0 %v1166
    %1179 = vmatmul.bf16.gmra.mxu0 %v1160
    %v1180 = vpop.f32.mrf.mxu0
    %v1181 = vadd.f32 0.0, %v1180
    %v1182 = vpop.f32.mrf.mxu0
    %v1183 = vadd.f32 0.0, %v1182
    %1184 = vmatmul.bf16.gmra.mxu0 %v1163
    %v1185 = vpop.f32.mrf.mxu0
    %v1186 = vadd.f32 0.0, %v1185
    %v1187 = vpop.f32.mrf.mxu0
    %1188 = vdwg.mxu0
    %v1189 = vmul.f32 %v1181, 0.25
    %v1190 = vmul.f32 %v1183, 0.25
    %v1191 = vmul.f32 %v1186, 0.25
    %v1192 = vsel %vm341, %v1189, -inf
    %1193 = vmax.xlane.f32.xlu0 %v1192
    %v1194 = vpop.xlane.xlu0 %1193
    %v1195 = vsel %vm341, %v1190, -inf
    %1196 = vmax.xlane.f32.xlu0 %v1195
    %v1197 = vpop.xlane.xlu0 %1196
    %v1198 = vsel %vm348, %v1191, -inf
    %1199 = vmax.xlane.f32.xlu0 %v1198
    %v1200 = vpop.xlane.xlu0 %1199
    %v1201 = vsub.f32 %v1189, %v1194
    %v1202 = vsub.f32 %v1190, %v1197
    %v1203 = vsub.f32 %v1191, %v1200
    %v1204 = vmul.f32 %v1201, 1.442695
    %v1205 = vpow.pop %v1204
    %v1206 = vmul.f32 %v1202, 1.442695
    %v1207 = vpow.pop %v1206
    %v1208 = vmul.f32 %v1203, 1.442695
    %v1209 = vpow.pop %v1208
    %v1210 = vsel %vm341, %v1205, 0.0
    %1211 = vadd.xlane.f32.xlu0 %v1210
    %v1212 = vpop.xlane.xlu0 %1211
    %v1213 = vsel %vm341, %v1207, 0.0
    %1214 = vadd.xlane.f32.xlu0 %v1213
    %v1215 = vpop.xlane.xlu0 %1214
    %v1216 = vsel %vm348, %v1209, 0.0
    %1217 = vadd.xlane.f32.xlu0 %v1216
    %v1218 = vpop.xlane.xlu0 %1217
    %v1219 = vrcp.pop %v1212
    %v1220 = vrcp.pop %v1215
    %v1221 = vrcp.pop %v1218
    %v1222 = vmul.f32 %v1205, %v1219
    %v1223 = vmul.f32 %v1207, %v1220
    %v1224 = vmul.f32 %v1209, %v1221
    %v1225 = vpack.c.bf16 %v1223, %v1222
    %v1226 = vpack.c.bf16 %v1224, %v1224
    %v1227 = vpack.c.bf16 %v1149, %v1147
    %v1228 = vpack.c.bf16 %v1152, %v1152
    %v1230 = vsel %vm341, %v1225, 0
    %v1233 = vsel %vm341, %v1226, 0
    %v1236 = vand.u32 %v1228, %v388
    %1238 = vmatpush.bf16.msra.mxu0 0
    %1239 = vmatpush.bf16.msra.mxu0 0
    %1240 = vmatpush.bf16.msra.mxu0 0
    %1241 = vmatpush.bf16.msra.mxu0 0
    %1242 = vmatpush.bf16.msra.mxu0 0
    %1243 = vmatpush.bf16.msra.mxu0 0
    %1244 = vmatpush.bf16.msra.mxu0 %v1236
    %1245 = vmatpush.bf16.msra.mxu0 %v1227
    %1246 = vmatmul.bf16.gmra.mxu0 %v1230
    %v1247 = vpop.f32.mrf.mxu0
    %v1248 = vadd.f32 0.0, %v1247
    %v1249 = vpop.f32.mrf.mxu0
    %v1250 = vadd.f32 0.0, %v1249
    %1251 = vmatmul.bf16.gmra.mxu0 %v1233
    %v1252 = vpop.f32.mrf.mxu0
    %v1253 = vadd.f32 0.0, %v1252
    %v1254 = vpop.f32.mrf.mxu0
    %1255 = vdwg.mxu0
    %v1256 = vpack.c.bf16 %v1250, %v1248
    %v1257 = vpack.c.bf16 %v1253, %v1253
    %s1258 = scalar_lea.vmem %s2, 176
    %v1259 = vld [vmem:[%s1258] sm:$0xf]
    %v1260 = vld [vmem:[%s1258 + $0x4] sm:$0xf]
    %v1261 = vld [vmem:[%s1258 + $0x8] sm:$0xf]
    %v1262 = vld [vmem:[%s1258 + $0xc] sm:$0xf]
    %s1263 = scalar_lea.vmem %s3, 12
    %v1264 = vld [vmem:[%s1263] sm:$0x7]
    %s1265 = scalar_lea.vmem %s2, 192
    %v1266 = vld [vmem:[%s1265] sm:$0xf]
    %v1267 = vld [vmem:[%s1265 + $0x4] sm:$0xf]
    %v1268 = vld [vmem:[%s1265 + $0x8] sm:$0xf]
    %v1269 = vld [vmem:[%s1265 + $0xc] sm:$0xf]
    %v1270 = vperm.slane %v1264, 0
    %v1275 = vunpack.c.l.b16 %v1266
    %v1276 = vunpack.c.l.b16 %v1267
    %v1277 = vunpack.c.l.b16 %v1268
    %v1278 = vunpack.c.l.b16 %v1269
    %v1279 = vpack.c.b16 %v1276, %v1275
    %v1280 = vpack.c.b16 %v1278, %v1277
    %1283 = vmatpush.bf16.msra.mxu0 0
    %1284 = vmatpush.bf16.msra.mxu0 0
    %1285 = vmatpush.bf16.msra.mxu0 0
    %1286 = vmatpush.bf16.msra.mxu0 0
    %1287 = vmatpush.bf16.msra.mxu0 0
    %1288 = vmatpush.bf16.msra.mxu0 0
    %1289 = vmatpush.bf16.msra.mxu0 %v1280
    %1290 = vmatpush.bf16.msra.mxu0 %v1279
    %1291 = vmatmul.bf16.gmra.mxu0 %v1060
    %v1292 = vpop.f32.mrf.mxu0
    %v1293 = vadd.f32 %v1270, %v1292
    %v1294 = vpop.f32.mrf.mxu0
    %v1295 = vadd.f32 %v1270, %v1294
    %1296 = vmatmul.bf16.gmra.mxu0 %v1063
    %v1297 = vpop.f32.mrf.mxu0
    %v1298 = vadd.f32 %v1270, %v1297
    %v1299 = vpop.f32.mrf.mxu0
    %1300 = vdwg.mxu0
    %s1301 = scalar_lea.vmem %s2, 208
    %v1302 = vld [vmem:[%s1301] sm:$0xf]
    %v1303 = vld [vmem:[%s1301 + $0x4] sm:$0xf]
    %v1304 = vld [vmem:[%s1301 + $0x8] sm:$0xf]
    %v1305 = vld [vmem:[%s1301 + $0xc] sm:$0xf]
    %v1306 = vperm.slane %v1264, 1
    %v1311 = vunpack.c.l.b16 %v1302
    %v1312 = vunpack.c.l.b16 %v1303
    %v1313 = vunpack.c.l.b16 %v1304
    %v1314 = vunpack.c.l.b16 %v1305
    %v1315 = vpack.c.b16 %v1312, %v1311
    %v1316 = vpack.c.b16 %v1314, %v1313
    %1319 = vmatpush.bf16.msra.mxu0 0
    %1320 = vmatpush.bf16.msra.mxu0 0
    %1321 = vmatpush.bf16.msra.mxu0 0
    %1322 = vmatpush.bf16.msra.mxu0 0
    %1323 = vmatpush.bf16.msra.mxu0 0
    %1324 = vmatpush.bf16.msra.mxu0 0
    %1325 = vmatpush.bf16.msra.mxu0 %v1316
    %1326 = vmatpush.bf16.msra.mxu0 %v1315
    %1327 = vmatmul.bf16.gmra.mxu0 %v1060
    %v1328 = vpop.f32.mrf.mxu0
    %v1329 = vadd.f32 %v1306, %v1328
    %v1330 = vpop.f32.mrf.mxu0
    %v1331 = vadd.f32 %v1306, %v1330
    %1332 = vmatmul.bf16.gmra.mxu0 %v1063
    %v1333 = vpop.f32.mrf.mxu0
    %v1334 = vadd.f32 %v1306, %v1333
    %v1335 = vpop.f32.mrf.mxu0
    %1336 = vdwg.mxu0
    %s1337 = scalar_lea.vmem %s2, 224
    %v1338 = vld [vmem:[%s1337] sm:$0xf]
    %v1339 = vld [vmem:[%s1337 + $0x4] sm:$0xf]
    %v1340 = vld [vmem:[%s1337 + $0x8] sm:$0xf]
    %v1341 = vld [vmem:[%s1337 + $0xc] sm:$0xf]
    %v1342 = vperm.slane %v1264, 2
    %v1347 = vunpack.c.l.b16 %v1338
    %v1348 = vunpack.c.l.b16 %v1339
    %v1349 = vunpack.c.l.b16 %v1340
    %v1350 = vunpack.c.l.b16 %v1341
    %v1351 = vpack.c.b16 %v1348, %v1347
    %v1352 = vpack.c.b16 %v1350, %v1349
    %1355 = vmatpush.bf16.msra.mxu0 0
    %1356 = vmatpush.bf16.msra.mxu0 0
    %1357 = vmatpush.bf16.msra.mxu0 0
    %1358 = vmatpush.bf16.msra.mxu0 0
    %1359 = vmatpush.bf16.msra.mxu0 0
    %1360 = vmatpush.bf16.msra.mxu0 0
    %1361 = vmatpush.bf16.msra.mxu0 %v1352
    %1362 = vmatpush.bf16.msra.mxu0 %v1351
    %1363 = vmatmul.bf16.gmra.mxu0 %v1060
    %v1364 = vpop.f32.mrf.mxu0
    %v1365 = vadd.f32 %v1342, %v1364
    %v1366 = vpop.f32.mrf.mxu0
    %v1367 = vadd.f32 %v1342, %v1366
    %1368 = vmatmul.bf16.gmra.mxu0 %v1063
    %v1369 = vpop.f32.mrf.mxu0
    %v1370 = vadd.f32 %v1342, %v1369
    %v1371 = vpop.f32.mrf.mxu0
    %1372 = vdwg.mxu0
    %v1373 = vpack.c.bf16 %v1295, %v1293
    %v1374 = vpack.c.bf16 %v1298, %v1298
    %v1375 = vpack.c.bf16 %v1331, %v1329
    %v1376 = vpack.c.bf16 %v1334, %v1334
    %v1378 = vsel %vm307, %v1373, 0
    %v1381 = vsel %vm307, %v1374, 0
    %v1384 = vsel %vm307, %v1375, 0
    %v1387 = vsel %vm307, %v1376, 0
    %1389 = vmatpush.bf16.xpose.msra.mxu0 0
    %1390 = vmatpush.bf16.xpose.msra.mxu0 0
    %1391 = vmatpush.bf16.xpose.msra.mxu0 0
    %1392 = vmatpush.bf16.xpose.msra.mxu0 0
    %1393 = vmatpush.bf16.xpose.msra.mxu0 0
    %1394 = vmatpush.bf16.xpose.msra.mxu0 0
    %1395 = vmatpush.bf16.xpose.msra.mxu0 %v1387
    %1396 = vmatpush.bf16.xpose.msra.mxu0 %v1384
    %1397 = vmatmul.bf16.gmra.mxu0 %v1378
    %v1398 = vpop.f32.mrf.mxu0
    %v1399 = vadd.f32 0.0, %v1398
    %v1400 = vpop.f32.mrf.mxu0
    %v1401 = vadd.f32 0.0, %v1400
    %1402 = vmatmul.bf16.gmra.mxu0 %v1381
    %v1403 = vpop.f32.mrf.mxu0
    %v1404 = vadd.f32 0.0, %v1403
    %v1405 = vpop.f32.mrf.mxu0
    %1406 = vdwg.mxu0
    %v1407 = vmul.f32 %v1399, 0.25
    %v1408 = vmul.f32 %v1401, 0.25
    %v1409 = vmul.f32 %v1404, 0.25
    %v1410 = vsel %vm341, %v1407, -inf
    %1411 = vmax.xlane.f32.xlu0 %v1410
    %v1412 = vpop.xlane.xlu0 %1411
    %v1413 = vsel %vm341, %v1408, -inf
    %1414 = vmax.xlane.f32.xlu0 %v1413
    %v1415 = vpop.xlane.xlu0 %1414
    %v1416 = vsel %vm348, %v1409, -inf
    %1417 = vmax.xlane.f32.xlu0 %v1416
    %v1418 = vpop.xlane.xlu0 %1417
    %v1419 = vsub.f32 %v1407, %v1412
    %v1420 = vsub.f32 %v1408, %v1415
    %v1421 = vsub.f32 %v1409, %v1418
    %v1422 = vmul.f32 %v1419, 1.442695
    %v1423 = vpow.pop %v1422
    %v1424 = vmul.f32 %v1420, 1.442695
    %v1425 = vpow.pop %v1424
    %v1426 = vmul.f32 %v1421, 1.442695
    %v1427 = vpow.pop %v1426
    %v1428 = vsel %vm341, %v1423, 0.0
    %1429 = vadd.xlane.f32.xlu0 %v1428
    %v1430 = vpop.xlane.xlu0 %1429
    %v1431 = vsel %vm341, %v1425, 0.0
    %1432 = vadd.xlane.f32.xlu0 %v1431
    %v1433 = vpop.xlane.xlu0 %1432
    %v1434 = vsel %vm348, %v1427, 0.0
    %1435 = vadd.xlane.f32.xlu0 %v1434
    %v1436 = vpop.xlane.xlu0 %1435
    %v1437 = vrcp.pop %v1430
    %v1438 = vrcp.pop %v1433
    %v1439 = vrcp.pop %v1436
    %v1440 = vmul.f32 %v1423, %v1437
    %v1441 = vmul.f32 %v1425, %v1438
    %v1442 = vmul.f32 %v1427, %v1439
    %v1443 = vpack.c.bf16 %v1441, %v1440
    %v1444 = vpack.c.bf16 %v1442, %v1442
    %v1445 = vpack.c.bf16 %v1367, %v1365
    %v1446 = vpack.c.bf16 %v1370, %v1370
    %v1448 = vsel %vm341, %v1443, 0
    %v1451 = vsel %vm341, %v1444, 0
    %v1454 = vand.u32 %v1446, %v388
    %1456 = vmatpush.bf16.msra.mxu0 0
    %1457 = vmatpush.bf16.msra.mxu0 0
    %1458 = vmatpush.bf16.msra.mxu0 0
    %1459 = vmatpush.bf16.msra.mxu0 0
    %1460 = vmatpush.bf16.msra.mxu0 0
    %1461 = vmatpush.bf16.msra.mxu0 0
    %1462 = vmatpush.bf16.msra.mxu0 %v1454
    %1463 = vmatpush.bf16.msra.mxu0 %v1445
    %1464 = vmatmul.bf16.gmra.mxu0 %v1448
    %v1465 = vpop.f32.mrf.mxu0
    %v1466 = vadd.f32 0.0, %v1465
    %v1467 = vpop.f32.mrf.mxu0
    %v1468 = vadd.f32 0.0, %v1467
    %1469 = vmatmul.bf16.gmra.mxu0 %v1451
    %v1470 = vpop.f32.mrf.mxu0
    %v1471 = vadd.f32 0.0, %v1470
    %v1472 = vpop.f32.mrf.mxu0
    %1473 = vdwg.mxu0
    %v1474 = vpack.c.bf16 %v1468, %v1466
    %v1475 = vpack.c.bf16 %v1471, %v1471
    %s1476 = scalar_lea.vmem %s2, 240
    %v1477 = vld [vmem:[%s1476] sm:$0xf]
    %v1478 = vld [vmem:[%s1476 + $0x4] sm:$0xf]
    %v1479 = vld [vmem:[%s1476 + $0x8] sm:$0xf]
    %v1480 = vld [vmem:[%s1476 + $0xc] sm:$0xf]
    %v1485 = vunpack.c.l.b16 %v1477
    %v1486 = vunpack.c.l.b16 %v1478
    %v1487 = vunpack.c.l.b16 %v1479
    %v1488 = vunpack.c.l.b16 %v1480
    %v1489 = vpack.c.b16 %v1486, %v1485
    %v1490 = vpack.c.b16 %v1488, %v1487
    %v1492 = vsel %vm307, %v1474, 0
    %v1495 = vsel %vm307, %v1475, 0
    %v1498 = vsel %vm307, %v1489, 0
    %v1501 = vsel %vm307, %v1490, 0
    %1503 = vmatpush.bf16.xpose.msra.mxu0 0
    %1504 = vmatpush.bf16.xpose.msra.mxu0 0
    %1505 = vmatpush.bf16.xpose.msra.mxu0 0
    %1506 = vmatpush.bf16.xpose.msra.mxu0 0
    %1507 = vmatpush.bf16.xpose.msra.mxu0 0
    %1508 = vmatpush.bf16.xpose.msra.mxu0 0
    %1509 = vmatpush.bf16.xpose.msra.mxu0 %v1501
    %1510 = vmatpush.bf16.xpose.msra.mxu0 %v1498
    %1511 = vmatmul.bf16.gmra.mxu0 %v1492
    %v1512 = vpop.f32.mrf.mxu0
    %v1513 = vadd.f32 0.0, %v1512
    %v1514 = vpop.f32.mrf.mxu0
    %v1515 = vadd.f32 0.0, %v1514
    %1516 = vmatmul.bf16.gmra.mxu0 %v1495
    %v1517 = vpop.f32.mrf.mxu0
    %v1518 = vadd.f32 0.0, %v1517
    %v1519 = vpop.f32.mrf.mxu0
    %1520 = vdwg.mxu0
    %v1525 = vunpack.c.l.b16 %v1259
    %v1526 = vunpack.c.l.b16 %v1260
    %v1527 = vunpack.c.l.b16 %v1261
    %v1528 = vunpack.c.l.b16 %v1262
    %v1529 = vpack.c.b16 %v1526, %v1525
    %v1530 = vpack.c.b16 %v1528, %v1527
    %v1532 = vsel %vm307, %v1256, 0
    %v1535 = vsel %vm307, %v1257, 0
    %v1538 = vsel %vm307, %v1529, 0
    %v1541 = vsel %vm307, %v1530, 0
    %1543 = vmatpush.bf16.xpose.msra.mxu0 0
    %1544 = vmatpush.bf16.xpose.msra.mxu0 0
    %1545 = vmatpush.bf16.xpose.msra.mxu0 0
    %1546 = vmatpush.bf16.xpose.msra.mxu0 0
    %1547 = vmatpush.bf16.xpose.msra.mxu0 0
    %1548 = vmatpush.bf16.xpose.msra.mxu0 0
    %1549 = vmatpush.bf16.xpose.msra.mxu0 %v1541
    %1550 = vmatpush.bf16.xpose.msra.mxu0 %v1538
    %1551 = vmatmul.bf16.gmra.mxu0 %v1532
    %v1552 = vpop.f32.mrf.mxu0
    %v1553 = vadd.f32 %v1513, %v1552
    %v1554 = vpop.f32.mrf.mxu0
    %v1555 = vadd.f32 %v1515, %v1554
    %1556 = vmatmul.bf16.gmra.mxu0 %v1535
    %v1557 = vpop.f32.mrf.mxu0
    %v1558 = vadd.f32 %v1518, %v1557
    %v1559 = vpop.f32.mrf.mxu0
    %1560 = vdwg.mxu0
    %v1561 = vadd.f32 %v954, %v1553
    %v1562 = vadd.f32 %v955, %v1555
    %v1563 = vadd.f32 %v956, %v1558
    %v1564 = vperm.slane %v959, 0
    %v1565 = vadd.f32 %v1561, %v1564
    %v1566 = vadd.f32 %v1562, %v1564
    %v1567 = vadd.f32 %v1563, %v1564
    %v1568 = vsel %vm104, %v1565, 0.0
    %1569 = vadd.xlane.f32.xlu0 %v1568
    %v1570 = vpop.xlane.xlu0 %1569
    %v1571 = vsel %vm104, %v1566, 0.0
    %1572 = vadd.xlane.f32.xlu0 %v1571
    %v1573 = vpop.xlane.xlu0 %1572
    %v1574 = vsel %vm111, %v1567, 0.0
    %1575 = vadd.xlane.f32.xlu0 %v1574
    %v1576 = vpop.xlane.xlu0 %1575
    %v1577 = vmul.f32 %v1570, %v121
    %v1578 = vmul.f32 %v1573, %v121
    %v1579 = vmul.f32 %v1576, %v121
    %v1580 = vsub.f32 %v1565, %v1577
    %v1581 = vsub.f32 %v1566, %v1578
    %v1582 = vsub.f32 %v1567, %v1579
    %v1583 = vmul.f32 %v1580, %v1580
    %v1584 = vmul.f32 %v1581, %v1581
    %v1585 = vmul.f32 %v1582, %v1582
    %v1586 = vsel %vm104, %v1583, 0.0
    %1587 = vadd.xlane.f32.xlu0 %v1586
    %v1588 = vpop.xlane.xlu0 %1587
    %v1589 = vsel %vm104, %v1584, 0.0
    %1590 = vadd.xlane.f32.xlu0 %v1589
    %v1591 = vpop.xlane.xlu0 %1590
    %v1592 = vsel %vm111, %v1585, 0.0
    %1593 = vadd.xlane.f32.xlu0 %v1592
    %v1594 = vpop.xlane.xlu0 %1593
    %v1595 = vmul.f32 %v1588, %v121
    %v1596 = vmul.f32 %v1591, %v121
    %v1597 = vmul.f32 %v1594, %v121
    %v1598 = vadd.f32 %v1595, 1e-06
    %v1599 = vadd.f32 %v1596, 1e-06
    %v1600 = vadd.f32 %v1597, 1e-06
    %v1601 = vrsqrt.pop %v1598
    %v1602 = vmul.f32 %v1601, %v1598
    %v1603 = vmul.f32 %v1602, %v1601
    %v1604 = vmul.f32 0.5, %v1603
    %v1605 = vsub.f32 1.5, %v1604
    %v1606 = vmul.f32 %v1601, %v1605
    %vm1607 = vweird.f32 %v1598
    %vm1608 = vweird.f32 %v1601
    %vm1609 = vmor %vm1607, %vm1608
    %v1610 = vsel %vm1609, %v1601, %v1606
    %v1611 = vrsqrt.pop %v1599
    %v1612 = vmul.f32 %v1611, %v1599
    %v1613 = vmul.f32 %v1612, %v1611
    %v1614 = vmul.f32 0.5, %v1613
    %v1615 = vsub.f32 1.5, %v1614
    %v1616 = vmul.f32 %v1611, %v1615
    %vm1617 = vweird.f32 %v1599
    %vm1618 = vweird.f32 %v1611
    %vm1619 = vmor %vm1617, %vm1618
    %v1620 = vsel %vm1619, %v1611, %v1616
    %v1621 = vrsqrt.pop %v1600
    %v1622 = vmul.f32 %v1621, %v1600
    %v1623 = vmul.f32 %v1622, %v1621
    %v1624 = vmul.f32 0.5, %v1623
    %v1625 = vsub.f32 1.5, %v1624
    %v1626 = vmul.f32 %v1621, %v1625
    %vm1627 = vweird.f32 %v1600
    %vm1628 = vweird.f32 %v1621
    %vm1629 = vmor %vm1627, %vm1628
    %v1630 = vsel %vm1629, %v1621, %v1626
    %v1631 = vmul.f32 %v1580, %v1610
    %v1632 = vmul.f32 %v1581, %v1620
    %v1633 = vmul.f32 %v1582, %v1630
    %v1634 = vperm.slane %v960, 0
    %v1635 = vmul.f32 %v1631, %v1634
    %v1636 = vmul.f32 %v1632, %v1634
    %v1637 = vmul.f32 %v1633, %v1634
    %v1638 = vperm.slane %v961, 0
    %v1639 = vadd.f32 %v1635, %v1638
    %v1640 = vadd.f32 %v1636, %v1638
    %v1641 = vadd.f32 %v1637, %v1638
    %v1642 = vpack.c.bf16 %v1640, %v1639
    %v1643 = vpack.c.bf16 %v1641, %v1641
    %s1644 = scalar_lea.vmem %s4, 16
    %v1645 = vld [vmem:[%s1644] sm:$0xf]
    %v1646 = vld [vmem:[%s1644 + $0x4] sm:$0xf]
    %v1647 = vld [vmem:[%s1644 + $0x8] sm:$0xf]
    %v1648 = vld [vmem:[%s1644 + $0xc] sm:$0xf]
    %s1649 = scalar_lea.vmem %s5, 1
    %v1650 = vld [vmem:[%s1649] sm:$0x1]
    %v1652 = vperm.slane %v1650, 0
    %v1658 = vunpack.c.l.b16 %v1645
    %v1659 = vunpack.c.l.b16 %v1646
    %v1660 = vunpack.c.l.b16 %v1647
    %v1661 = vunpack.c.l.b16 %v1648
    %v1662 = vpack.c.b16 %v1659, %v1658
    %v1663 = vpack.c.b16 %v1661, %v1660
    %v1667 = vsel %vm104, %v1642, 0
    %v1670 = vsel %vm104, %v1643, 0
    %1672 = vmatpush.bf16.msra.mxu0 0
    %1673 = vmatpush.bf16.msra.mxu0 0
    %1674 = vmatpush.bf16.msra.mxu0 0
    %1675 = vmatpush.bf16.msra.mxu0 0
    %1676 = vmatpush.bf16.msra.mxu0 0
    %1677 = vmatpush.bf16.msra.mxu0 0
    %1678 = vmatpush.bf16.msra.mxu0 %v1663
    %1679 = vmatpush.bf16.msra.mxu0 %v1662
    %1680 = vmatmul.bf16.gmra.mxu0 %v1667
    %v1681 = vpop.f32.mrf.mxu0
    %v1682 = vadd.f32 %v1652, %v1681
    %v1683 = vpop.f32.mrf.mxu0
    %v1684 = vadd.f32 %v1652, %v1683
    %1685 = vmatmul.bf16.gmra.mxu0 %v1670
    %v1686 = vpop.f32.mrf.mxu0
    %v1687 = vadd.f32 %v1652, %v1686
    %v1688 = vpop.f32.mrf.mxu0
    %1689 = vdwg.mxu0
    %v1690 = vmul.f32 %v1682, %v1682
    %v1691 = vmul.f32 %v1684, %v1684
    %v1692 = vmul.f32 %v1687, %v1687
    %v1693 = vmul.f32 %v1682, %v1690
    %v1694 = vmul.f32 %v1684, %v1691
    %v1695 = vmul.f32 %v1687, %v1692
    %v1696 = vmul.f32 %v1693, 0.044715
    %v1697 = vmul.f32 %v1694, 0.044715
    %v1698 = vmul.f32 %v1695, 0.044715
    %v1699 = vadd.f32 %v1682, %v1696
    %v1700 = vadd.f32 %v1684, %v1697
    %v1701 = vadd.f32 %v1687, %v1698
    %v1702 = vmul.f32 %v1699, 0.7978846
    %v1703 = vmul.f32 %v1700, 0.7978846
    %v1704 = vmul.f32 %v1701, 0.7978846
    %v1705 = vtanh.pop %v1702
    %v1706 = vtanh.pop %v1703
    %v1707 = vtanh.pop %v1704
    %v1708 = vadd.f32 %v1705, 1.0
    %v1709 = vadd.f32 %v1706, 1.0
    %v1710 = vadd.f32 %v1707, 1.0
    %v1711 = vmul.f32 %v1708, 0.5
    %v1712 = vmul.f32 %v1709, 0.5
    %v1713 = vmul.f32 %v1710, 0.5
    %v1714 = vmul.f32 %v1682, %v1711
    %v1715 = vmul.f32 %v1684, %v1712
    %v1716 = vmul.f32 %v1687, %v1713
    %v1717 = vpack.c.bf16 %v1715, %v1714
    %v1718 = vpack.c.bf16 %v1716, %v1716
    %s1719 = scalar_lea.vmem %s6, 64
    %v1720 = vld [vmem:[%s1719] sm:$0xf]
    %v1721 = vld [vmem:[%s1719 + $0x4] sm:$0xf]
    %v1722 = vld [vmem:[%s1719 + $0x8] sm:$0xf]
    %v1723 = vld [vmem:[%s1719 + $0xc] sm:$0xf]
    %v1724 = vld [vmem:[%s1719 + $0x10] sm:$0xf]
    %v1725 = vld [vmem:[%s1719 + $0x14] sm:$0xf]
    %v1726 = vld [vmem:[%s1719 + $0x18] sm:$0xf]
    %v1727 = vld [vmem:[%s1719 + $0x1c] sm:$0xf]
    %v1728 = vld [vmem:[%s1719 + $0x20] sm:$0xf]
    %v1729 = vld [vmem:[%s1719 + $0x24] sm:$0xf]
    %v1730 = vld [vmem:[%s1719 + $0x28] sm:$0xf]
    %v1731 = vld [vmem:[%s1719 + $0x2c] sm:$0xf]
    %v1732 = vld [vmem:[%s1719 + $0x30] sm:$0xf]
    %v1733 = vld [vmem:[%s1719 + $0x34] sm:$0xf]
    %v1734 = vld [vmem:[%s1719 + $0x38] sm:$0xf]
    %v1735 = vld [vmem:[%s1719 + $0x3c] sm:$0xf]
    %v1736 = vperm.slane %v962, 0
    %v1753 = vunpack.c.l.b16 %v1720
    %v1754 = vunpack.c.l.b16 %v1721
    %v1755 = vunpack.c.l.b16 %v1722
    %v1756 = vunpack.c.l.b16 %v1723
    %v1757 = vunpack.c.l.b16 %v1724
    %v1758 = vunpack.c.l.b16 %v1725
    %v1759 = vunpack.c.l.b16 %v1726
    %v1760 = vunpack.c.l.b16 %v1727
    %v1761 = vunpack.c.l.b16 %v1728
    %v1762 = vunpack.c.l.b16 %v1729
    %v1763 = vunpack.c.l.b16 %v1730
    %v1764 = vunpack.c.l.b16 %v1731
    %v1765 = vunpack.c.l.b16 %v1732
    %v1766 = vunpack.c.l.b16 %v1733
    %v1767 = vunpack.c.l.b16 %v1734
    %v1768 = vunpack.c.l.b16 %v1735
    %v1769 = vpack.c.b16 %v1754, %v1753
    %v1770 = vpack.c.b16 %v1756, %v1755
    %v1771 = vpack.c.b16 %v1758, %v1757
    %v1772 = vpack.c.b16 %v1760, %v1759
    %v1773 = vpack.c.b16 %v1762, %v1761
    %v1774 = vpack.c.b16 %v1764, %v1763
    %v1775 = vpack.c.b16 %v1766, %v1765
    %v1776 = vpack.c.b16 %v1768, %v1767
    %1785 = vmatpush.bf16.msra.mxu0 %v1776
    %1786 = vmatpush.bf16.msra.mxu0 %v1775
    %1787 = vmatpush.bf16.msra.mxu0 %v1774
    %1788 = vmatpush.bf16.msra.mxu0 %v1773
    %1789 = vmatpush.bf16.msra.mxu0 %v1772
    %1790 = vmatpush.bf16.msra.mxu0 %v1771
    %1791 = vmatpush.bf16.msra.mxu0 %v1770
    %1792 = vmatpush.bf16.msra.mxu0 %v1769
    %1793 = vmatmul.bf16.gmra.mxu0 %v1717
    %v1794 = vpop.f32.mrf.mxu0
    %v1795 = vadd.f32 %v1736, %v1794
    %v1796 = vpop.f32.mrf.mxu0
    %v1797 = vadd.f32 %v1736, %v1796
    %1798 = vmatmul.bf16.gmra.mxu0 %v1718
    %v1799 = vpop.f32.mrf.mxu0
    %v1800 = vadd.f32 %v1736, %v1799
    %v1801 = vpop.f32.mrf.mxu0
    %1802 = vdwg.mxu0
    %v1803 = vadd.f32 %v1565, %v1795
    %v1804 = vadd.f32 %v1566, %v1797
    %v1805 = vadd.f32 %v1567, %v1800
    %v1806 = vsel %vm104, %v1803, 0.0
    %1807 = vadd.xlane.f32.xlu0 %v1806
    %v1808 = vpop.xlane.xlu0 %1807
    %v1809 = vsel %vm104, %v1804, 0.0
    %1810 = vadd.xlane.f32.xlu0 %v1809
    %v1811 = vpop.xlane.xlu0 %1810
    %v1812 = vsel %vm111, %v1805, 0.0
    %1813 = vadd.xlane.f32.xlu0 %v1812
    %v1814 = vpop.xlane.xlu0 %1813
    %v1815 = vmul.f32 %v1808, %v121
    %v1816 = vmul.f32 %v1811, %v121
    %v1817 = vmul.f32 %v1814, %v121
    %v1818 = vsub.f32 %v1803, %v1815
    %v1819 = vsub.f32 %v1804, %v1816
    %v1820 = vsub.f32 %v1805, %v1817
    %v1821 = vmul.f32 %v1818, %v1818
    %v1822 = vmul.f32 %v1819, %v1819
    %v1823 = vmul.f32 %v1820, %v1820
    %v1824 = vsel %vm104, %v1821, 0.0
    %1825 = vadd.xlane.f32.xlu0 %v1824
    %v1826 = vpop.xlane.xlu0 %1825
    %v1827 = vsel %vm104, %v1822, 0.0
    %1828 = vadd.xlane.f32.xlu0 %v1827
    %v1829 = vpop.xlane.xlu0 %1828
    %v1830 = vsel %vm111, %v1823, 0.0
    %1831 = vadd.xlane.f32.xlu0 %v1830
    %v1832 = vpop.xlane.xlu0 %1831
    %v1833 = vmul.f32 %v1826, %v121
    %v1834 = vmul.f32 %v1829, %v121
    %v1835 = vmul.f32 %v1832, %v121
    %v1836 = vadd.f32 %v1833, 1e-06
    %v1837 = vadd.f32 %v1834, 1e-06
    %v1838 = vadd.f32 %v1835, 1e-06
    %v1839 = vrsqrt.pop %v1836
    %v1840 = vmul.f32 %v1839, %v1836
    %v1841 = vmul.f32 %v1840, %v1839
    %v1842 = vmul.f32 0.5, %v1841
    %v1843 = vsub.f32 1.5, %v1842
    %v1844 = vmul.f32 %v1839, %v1843
    %vm1845 = vweird.f32 %v1836
    %vm1846 = vweird.f32 %v1839
    %vm1847 = vmor %vm1845, %vm1846
    %v1848 = vsel %vm1847, %v1839, %v1844
    %v1849 = vrsqrt.pop %v1837
    %v1850 = vmul.f32 %v1849, %v1837
    %v1851 = vmul.f32 %v1850, %v1849
    %v1852 = vmul.f32 0.5, %v1851
    %v1853 = vsub.f32 1.5, %v1852
    %v1854 = vmul.f32 %v1849, %v1853
    %vm1855 = vweird.f32 %v1837
    %vm1856 = vweird.f32 %v1849
    %vm1857 = vmor %vm1855, %vm1856
    %v1858 = vsel %vm1857, %v1849, %v1854
    %v1859 = vrsqrt.pop %v1838
    %v1860 = vmul.f32 %v1859, %v1838
    %v1861 = vmul.f32 %v1860, %v1859
    %v1862 = vmul.f32 0.5, %v1861
    %v1863 = vsub.f32 1.5, %v1862
    %v1864 = vmul.f32 %v1859, %v1863
    %vm1865 = vweird.f32 %v1838
    %vm1866 = vweird.f32 %v1859
    %vm1867 = vmor %vm1865, %vm1866
    %v1868 = vsel %vm1867, %v1859, %v1864
    %v1869 = vmul.f32 %v1818, %v1848
    %v1870 = vmul.f32 %v1819, %v1858
    %v1871 = vmul.f32 %v1820, %v1868
    %v1872 = vperm.slane %v42, 0
    %v1873 = vmul.f32 %v1869, %v1872
    %v1874 = vmul.f32 %v1870, %v1872
    %v1875 = vmul.f32 %v1871, %v1872
    %v1876 = vperm.slane %v43, 0
    %v1877 = vadd.f32 %v1873, %v1876
    %v1878 = vadd.f32 %v1874, %v1876
    %v1879 = vadd.f32 %v1875, %v1876
    %1880 = vst.msk [vmem:[%s8] sm:$0xff] %vm104, %v1877
    %1881 = vst.msk [vmem:[%s8 + $0x8] sm:$0xff] %vm104, %v1878
    %1882 = vst.msk [vmem:[%s8 + $0x10] sm:$0x1] %vm111, %v1879
    %v1883 = vsel %vm104, %v1877, 0.0
    %v1884 = vsel %vm104, %v1878, 0.0
    %v1885 = vadd.f32 %v1883, %v1884
    %v1886 = vsel %vm111, %v1879, 0.0
    %v1887 = vadd.f32 %v1885, %v1886
    %v1888 = vrot.slane %v1887, 4
    %v1889 = vadd.f32 %v1887, %v1888
    %v1890 = vrot.slane %v1889, 2
    %v1891 = vadd.f32 %v1889, %v1890
    %v1892 = vrot.slane %v1891, 1
    %v1893 = vadd.f32 %v1891, %v1892
    %v1894 = vrcp.pop 17.0
    %v1895 = vmul.f32 17.0, %v1894
    %v1896 = vsub.f32 1.0, %v1895
    %v1897 = vmul.f32 %v1894, %v1896
    %v1898 = vadd.f32 %v1894, %v1897
    %vm1899 = vweird.f32 %v1894
    %v1900 = vsel %vm1899, %v1894, %v1898
    %v1901 = vmul.f32 %v1893, %v1900
    %1902 = vst.msk [vmem:[#allocation2] sm:$0x1] %vm111, %v1901
    %s1903 = scalar_lea.vmem %s0, 12
    %v1904 = vld [vmem:[%s1903] sm:$0xf]
    %v1905 = vld [vmem:[%s1903 + $0x4] sm:$0xf]
    %v1906 = vld [vmem:[%s1903 + $0x8] sm:$0x1]
    %v1910 = vunpack.c.l.b16 %v1904
    %v1911 = vunpack.c.l.b16 %v1905
    %v1912 = vunpack.c.l.b16 %v1906
    %v1913 = vpack.c.b16 %v1911, %v1910
    %v1914 = vpack.c.b16 %v1912, %v1912
    %v1916 = vsel %vm73, %v1913, 0
    %v1919 = vsel %vm73, %v1914, 0
    %1921 = vmatpush.bf16.msra.mxu0 0
    %1922 = vmatpush.bf16.msra.mxu0 0
    %1923 = vmatpush.bf16.msra.mxu0 0
    %1924 = vmatpush.bf16.msra.mxu0 0
    %1925 = vmatpush.bf16.msra.mxu0 0
    %1926 = vmatpush.bf16.msra.mxu0 %v69
    %1927 = vmatpush.bf16.msra.mxu0 %v68
    %1928 = vmatpush.bf16.msra.mxu0 %v67
    %1929 = vmatmul.bf16.gmra.mxu0 %v1916
    %v1930 = vpop.f32.mrf.mxu0
    %v1931 = vadd.f32 %v39, %v1930
    %v1932 = vpop.f32.mrf.mxu0
    %v1933 = vadd.f32 %v40, %v1932
    %1934 = vmatmul.bf16.gmra.mxu0 %v1919
    %v1935 = vpop.f32.mrf.mxu0
    %v1936 = vadd.f32 %v41, %v1935
    %v1937 = vpop.f32.mrf.mxu0
    %1938 = vdwg.mxu0
    %v1939 = vld [vmem:[%s7 + $0x18] sm:$0x1]
    %v1940 = vld [vmem:[%s7 + $0x19] sm:$0x1]
    %v1941 = vld [vmem:[%s7 + $0x1a] sm:$0x1]
    %v1942 = vld [vmem:[%s7 + $0x1b] sm:$0x1]
    %v1943 = vld [vmem:[%s7 + $0x1c] sm:$0x1]
    %v1944 = vld [vmem:[%s7 + $0x1d] sm:$0x1]
    %v1945 = vsel %vm104, %v1931, 0.0
    %1946 = vadd.xlane.f32.xlu0 %v1945
    %v1947 = vpop.xlane.xlu0 %1946
    %v1948 = vsel %vm104, %v1933, 0.0
    %1949 = vadd.xlane.f32.xlu0 %v1948
    %v1950 = vpop.xlane.xlu0 %1949
    %v1951 = vsel %vm111, %v1936, 0.0
    %1952 = vadd.xlane.f32.xlu0 %v1951
    %v1953 = vpop.xlane.xlu0 %1952
    %v1954 = vmul.f32 %v1947, %v121
    %v1955 = vmul.f32 %v1950, %v121
    %v1956 = vmul.f32 %v1953, %v121
    %v1957 = vsub.f32 %v1931, %v1954
    %v1958 = vsub.f32 %v1933, %v1955
    %v1959 = vsub.f32 %v1936, %v1956
    %v1960 = vmul.f32 %v1957, %v1957
    %v1961 = vmul.f32 %v1958, %v1958
    %v1962 = vmul.f32 %v1959, %v1959
    %v1963 = vsel %vm104, %v1960, 0.0
    %1964 = vadd.xlane.f32.xlu0 %v1963
    %v1965 = vpop.xlane.xlu0 %1964
    %v1966 = vsel %vm104, %v1961, 0.0
    %1967 = vadd.xlane.f32.xlu0 %v1966
    %v1968 = vpop.xlane.xlu0 %1967
    %v1969 = vsel %vm111, %v1962, 0.0
    %1970 = vadd.xlane.f32.xlu0 %v1969
    %v1971 = vpop.xlane.xlu0 %1970
    %v1972 = vmul.f32 %v1965, %v121
    %v1973 = vmul.f32 %v1968, %v121
    %v1974 = vmul.f32 %v1971, %v121
    %v1975 = vadd.f32 %v1972, 1e-06
    %v1976 = vadd.f32 %v1973, 1e-06
    %v1977 = vadd.f32 %v1974, 1e-06
    %v1978 = vrsqrt.pop %v1975
    %v1979 = vmul.f32 %v1978, %v1975
    %v1980 = vmul.f32 %v1979, %v1978
    %v1981 = vmul.f32 0.5, %v1980
    %v1982 = vsub.f32 1.5, %v1981
    %v1983 = vmul.f32 %v1978, %v1982
    %vm1984 = vweird.f32 %v1975
    %vm1985 = vweird.f32 %v1978
    %vm1986 = vmor %vm1984, %vm1985
    %v1987 = vsel %vm1986, %v1978, %v1983
    %v1988 = vrsqrt.pop %v1976
    %v1989 = vmul.f32 %v1988, %v1976
    %v1990 = vmul.f32 %v1989, %v1988
    %v1991 = vmul.f32 0.5, %v1990
    %v1992 = vsub.f32 1.5, %v1991
    %v1993 = vmul.f32 %v1988, %v1992
    %vm1994 = vweird.f32 %v1976
    %vm1995 = vweird.f32 %v1988
    %vm1996 = vmor %vm1994, %vm1995
    %v1997 = vsel %vm1996, %v1988, %v1993
    %v1998 = vrsqrt.pop %v1977
    %v1999 = vmul.f32 %v1998, %v1977
    %v2000 = vmul.f32 %v1999, %v1998
    %v2001 = vmul.f32 0.5, %v2000
    %v2002 = vsub.f32 1.5, %v2001
    %v2003 = vmul.f32 %v1998, %v2002
    %vm2004 = vweird.f32 %v1977
    %vm2005 = vweird.f32 %v1998
    %vm2006 = vmor %vm2004, %vm2005
    %v2007 = vsel %vm2006, %v1998, %v2003
    %v2008 = vmul.f32 %v1957, %v1987
    %v2009 = vmul.f32 %v1958, %v1997
    %v2010 = vmul.f32 %v1959, %v2007
    %v2011 = vperm.slane %v1939, 0
    %v2012 = vmul.f32 %v2008, %v2011
    %v2013 = vmul.f32 %v2009, %v2011
    %v2014 = vmul.f32 %v2010, %v2011
    %v2015 = vperm.slane %v1940, 0
    %v2016 = vadd.f32 %v2012, %v2015
    %v2017 = vadd.f32 %v2013, %v2015
    %v2018 = vadd.f32 %v2014, %v2015
    %v2019 = vpack.c.bf16 %v2017, %v2016
    %v2020 = vpack.c.bf16 %v2018, %v2018
    %v2021 = vld [vmem:[%s3] sm:$0x7]
    %v2022 = vld [vmem:[%s2] sm:$0xf]
    %v2023 = vld [vmem:[%s2 + $0x4] sm:$0xf]
    %v2024 = vld [vmem:[%s2 + $0x8] sm:$0xf]
    %v2025 = vld [vmem:[%s2 + $0xc] sm:$0xf]
    %v2026 = vperm.slane %v2021, 0
    %v2031 = vunpack.c.l.b16 %v2022
    %v2032 = vunpack.c.l.b16 %v2023
    %v2033 = vunpack.c.l.b16 %v2024
    %v2034 = vunpack.c.l.b16 %v2025
    %v2035 = vpack.c.b16 %v2032, %v2031
    %v2036 = vpack.c.b16 %v2034, %v2033
    %v2040 = vsel %vm104, %v2019, 0
    %v2043 = vsel %vm104, %v2020, 0
    %2045 = vmatpush.bf16.msra.mxu0 0
    %2046 = vmatpush.bf16.msra.mxu0 0
    %2047 = vmatpush.bf16.msra.mxu0 0
    %2048 = vmatpush.bf16.msra.mxu0 0
    %2049 = vmatpush.bf16.msra.mxu0 0
    %2050 = vmatpush.bf16.msra.mxu0 0
    %2051 = vmatpush.bf16.msra.mxu0 %v2036
    %2052 = vmatpush.bf16.msra.mxu0 %v2035
    %2053 = vmatmul.bf16.gmra.mxu0 %v2040
    %v2054 = vpop.f32.mrf.mxu0
    %v2055 = vadd.f32 %v2026, %v2054
    %v2056 = vpop.f32.mrf.mxu0
    %v2057 = vadd.f32 %v2026, %v2056
    %2058 = vmatmul.bf16.gmra.mxu0 %v2043
    %v2059 = vpop.f32.mrf.mxu0
    %v2060 = vadd.f32 %v2026, %v2059
    %v2061 = vpop.f32.mrf.mxu0
    %2062 = vdwg.mxu0
    %v2063 = vld [vmem:[%s231] sm:$0xf]
    %v2064 = vld [vmem:[%s231 + $0x4] sm:$0xf]
    %v2065 = vld [vmem:[%s231 + $0x8] sm:$0xf]
    %v2066 = vld [vmem:[%s231 + $0xc] sm:$0xf]
    %v2067 = vperm.slane %v2021, 1
    %v2072 = vunpack.c.l.b16 %v2063
    %v2073 = vunpack.c.l.b16 %v2064
    %v2074 = vunpack.c.l.b16 %v2065
    %v2075 = vunpack.c.l.b16 %v2066
    %v2076 = vpack.c.b16 %v2073, %v2072
    %v2077 = vpack.c.b16 %v2075, %v2074
    %2080 = vmatpush.bf16.msra.mxu0 0
    %2081 = vmatpush.bf16.msra.mxu0 0
    %2082 = vmatpush.bf16.msra.mxu0 0
    %2083 = vmatpush.bf16.msra.mxu0 0
    %2084 = vmatpush.bf16.msra.mxu0 0
    %2085 = vmatpush.bf16.msra.mxu0 0
    %2086 = vmatpush.bf16.msra.mxu0 %v2077
    %2087 = vmatpush.bf16.msra.mxu0 %v2076
    %2088 = vmatmul.bf16.gmra.mxu0 %v2040
    %v2089 = vpop.f32.mrf.mxu0
    %v2090 = vadd.f32 %v2067, %v2089
    %v2091 = vpop.f32.mrf.mxu0
    %v2092 = vadd.f32 %v2067, %v2091
    %2093 = vmatmul.bf16.gmra.mxu0 %v2043
    %v2094 = vpop.f32.mrf.mxu0
    %v2095 = vadd.f32 %v2067, %v2094
    %v2096 = vpop.f32.mrf.mxu0
    %2097 = vdwg.mxu0
    %v2098 = vld [vmem:[%s267] sm:$0xf]
    %v2099 = vld [vmem:[%s267 + $0x4] sm:$0xf]
    %v2100 = vld [vmem:[%s267 + $0x8] sm:$0xf]
    %v2101 = vld [vmem:[%s267 + $0xc] sm:$0xf]
    %v2102 = vperm.slane %v2021, 2
    %v2107 = vunpack.c.l.b16 %v2098
    %v2108 = vunpack.c.l.b16 %v2099
    %v2109 = vunpack.c.l.b16 %v2100
    %v2110 = vunpack.c.l.b16 %v2101
    %v2111 = vpack.c.b16 %v2108, %v2107
    %v2112 = vpack.c.b16 %v2110, %v2109
    %2115 = vmatpush.bf16.msra.mxu0 0
    %2116 = vmatpush.bf16.msra.mxu0 0
    %2117 = vmatpush.bf16.msra.mxu0 0
    %2118 = vmatpush.bf16.msra.mxu0 0
    %2119 = vmatpush.bf16.msra.mxu0 0
    %2120 = vmatpush.bf16.msra.mxu0 0
    %2121 = vmatpush.bf16.msra.mxu0 %v2112
    %2122 = vmatpush.bf16.msra.mxu0 %v2111
    %2123 = vmatmul.bf16.gmra.mxu0 %v2040
    %v2124 = vpop.f32.mrf.mxu0
    %v2125 = vadd.f32 %v2102, %v2124
    %v2126 = vpop.f32.mrf.mxu0
    %v2127 = vadd.f32 %v2102, %v2126
    %2128 = vmatmul.bf16.gmra.mxu0 %v2043
    %v2129 = vpop.f32.mrf.mxu0
    %v2130 = vadd.f32 %v2102, %v2129
    %v2131 = vpop.f32.mrf.mxu0
    %2132 = vdwg.mxu0
    %v2133 = vpack.c.bf16 %v2057, %v2055
    %v2134 = vpack.c.bf16 %v2060, %v2060
    %v2135 = vpack.c.bf16 %v2092, %v2090
    %v2136 = vpack.c.bf16 %v2095, %v2095
    %v2138 = vsel %vm307, %v2133, 0
    %v2141 = vsel %vm307, %v2134, 0
    %v2144 = vsel %vm307, %v2135, 0
    %v2147 = vsel %vm307, %v2136, 0
    %2149 = vmatpush.bf16.xpose.msra.mxu0 0
    %2150 = vmatpush.bf16.xpose.msra.mxu0 0
    %2151 = vmatpush.bf16.xpose.msra.mxu0 0
    %2152 = vmatpush.bf16.xpose.msra.mxu0 0
    %2153 = vmatpush.bf16.xpose.msra.mxu0 0
    %2154 = vmatpush.bf16.xpose.msra.mxu0 0
    %2155 = vmatpush.bf16.xpose.msra.mxu0 %v2147
    %2156 = vmatpush.bf16.xpose.msra.mxu0 %v2144
    %2157 = vmatmul.bf16.gmra.mxu0 %v2138
    %v2158 = vpop.f32.mrf.mxu0
    %v2159 = vadd.f32 0.0, %v2158
    %v2160 = vpop.f32.mrf.mxu0
    %v2161 = vadd.f32 0.0, %v2160
    %2162 = vmatmul.bf16.gmra.mxu0 %v2141
    %v2163 = vpop.f32.mrf.mxu0
    %v2164 = vadd.f32 0.0, %v2163
    %v2165 = vpop.f32.mrf.mxu0
    %2166 = vdwg.mxu0
    %v2167 = vmul.f32 %v2159, 0.25
    %v2168 = vmul.f32 %v2161, 0.25
    %v2169 = vmul.f32 %v2164, 0.25
    %v2170 = vsel %vm341, %v2167, -inf
    %2171 = vmax.xlane.f32.xlu0 %v2170
    %v2172 = vpop.xlane.xlu0 %2171
    %v2173 = vsel %vm341, %v2168, -inf
    %2174 = vmax.xlane.f32.xlu0 %v2173
    %v2175 = vpop.xlane.xlu0 %2174
    %v2176 = vsel %vm348, %v2169, -inf
    %2177 = vmax.xlane.f32.xlu0 %v2176
    %v2178 = vpop.xlane.xlu0 %2177
    %v2179 = vsub.f32 %v2167, %v2172
    %v2180 = vsub.f32 %v2168, %v2175
    %v2181 = vsub.f32 %v2169, %v2178
    %v2182 = vmul.f32 %v2179, 1.442695
    %v2183 = vpow.pop %v2182
    %v2184 = vmul.f32 %v2180, 1.442695
    %v2185 = vpow.pop %v2184
    %v2186 = vmul.f32 %v2181, 1.442695
    %v2187 = vpow.pop %v2186
    %v2188 = vsel %vm341, %v2183, 0.0
    %2189 = vadd.xlane.f32.xlu0 %v2188
    %v2190 = vpop.xlane.xlu0 %2189
    %v2191 = vsel %vm341, %v2185, 0.0
    %2192 = vadd.xlane.f32.xlu0 %v2191
    %v2193 = vpop.xlane.xlu0 %2192
    %v2194 = vsel %vm348, %v2187, 0.0
    %2195 = vadd.xlane.f32.xlu0 %v2194
    %v2196 = vpop.xlane.xlu0 %2195
    %v2197 = vrcp.pop %v2190
    %v2198 = vrcp.pop %v2193
    %v2199 = vrcp.pop %v2196
    %v2200 = vmul.f32 %v2183, %v2197
    %v2201 = vmul.f32 %v2185, %v2198
    %v2202 = vmul.f32 %v2187, %v2199
    %v2203 = vpack.c.bf16 %v2201, %v2200
    %v2204 = vpack.c.bf16 %v2202, %v2202
    %v2205 = vpack.c.bf16 %v2127, %v2125
    %v2206 = vpack.c.bf16 %v2130, %v2130
    %v2208 = vsel %vm341, %v2203, 0
    %v2211 = vsel %vm341, %v2204, 0
    %v2214 = vand.u32 %v2206, %v388
    %2216 = vmatpush.bf16.msra.mxu0 0
    %2217 = vmatpush.bf16.msra.mxu0 0
    %2218 = vmatpush.bf16.msra.mxu0 0
    %2219 = vmatpush.bf16.msra.mxu0 0
    %2220 = vmatpush.bf16.msra.mxu0 0
    %2221 = vmatpush.bf16.msra.mxu0 0
    %2222 = vmatpush.bf16.msra.mxu0 %v2214
    %2223 = vmatpush.bf16.msra.mxu0 %v2205
    %2224 = vmatmul.bf16.gmra.mxu0 %v2208
    %v2225 = vpop.f32.mrf.mxu0
    %v2226 = vadd.f32 0.0, %v2225
    %v2227 = vpop.f32.mrf.mxu0
    %v2228 = vadd.f32 0.0, %v2227
    %2229 = vmatmul.bf16.gmra.mxu0 %v2211
    %v2230 = vpop.f32.mrf.mxu0
    %v2231 = vadd.f32 0.0, %v2230
    %v2232 = vpop.f32.mrf.mxu0
    %2233 = vdwg.mxu0
    %v2234 = vpack.c.bf16 %v2228, %v2226
    %v2235 = vpack.c.bf16 %v2231, %v2231
    %v2236 = vld [vmem:[%s412] sm:$0xf]
    %v2237 = vld [vmem:[%s412 + $0x4] sm:$0xf]
    %v2238 = vld [vmem:[%s412 + $0x8] sm:$0xf]
    %v2239 = vld [vmem:[%s412 + $0xc] sm:$0xf]
    %v2240 = vld [vmem:[%s417] sm:$0x7]
    %v2241 = vld [vmem:[%s419] sm:$0xf]
    %v2242 = vld [vmem:[%s419 + $0x4] sm:$0xf]
    %v2243 = vld [vmem:[%s419 + $0x8] sm:$0xf]
    %v2244 = vld [vmem:[%s419 + $0xc] sm:$0xf]
    %v2245 = vperm.slane %v2240, 0
    %v2250 = vunpack.c.l.b16 %v2241
    %v2251 = vunpack.c.l.b16 %v2242
    %v2252 = vunpack.c.l.b16 %v2243
    %v2253 = vunpack.c.l.b16 %v2244
    %v2254 = vpack.c.b16 %v2251, %v2250
    %v2255 = vpack.c.b16 %v2253, %v2252
    %2258 = vmatpush.bf16.msra.mxu0 0
    %2259 = vmatpush.bf16.msra.mxu0 0
    %2260 = vmatpush.bf16.msra.mxu0 0
    %2261 = vmatpush.bf16.msra.mxu0 0
    %2262 = vmatpush.bf16.msra.mxu0 0
    %2263 = vmatpush.bf16.msra.mxu0 0
    %2264 = vmatpush.bf16.msra.mxu0 %v2255
    %2265 = vmatpush.bf16.msra.mxu0 %v2254
    %2266 = vmatmul.bf16.gmra.mxu0 %v2040
    %v2267 = vpop.f32.mrf.mxu0
    %v2268 = vadd.f32 %v2245, %v2267
    %v2269 = vpop.f32.mrf.mxu0
    %v2270 = vadd.f32 %v2245, %v2269
    %2271 = vmatmul.bf16.gmra.mxu0 %v2043
    %v2272 = vpop.f32.mrf.mxu0
    %v2273 = vadd.f32 %v2245, %v2272
    %v2274 = vpop.f32.mrf.mxu0
    %2275 = vdwg.mxu0
    %v2276 = vld [vmem:[%s455] sm:$0xf]
    %v2277 = vld [vmem:[%s455 + $0x4] sm:$0xf]
    %v2278 = vld [vmem:[%s455 + $0x8] sm:$0xf]
    %v2279 = vld [vmem:[%s455 + $0xc] sm:$0xf]
    %v2280 = vperm.slane %v2240, 1
    %v2285 = vunpack.c.l.b16 %v2276
    %v2286 = vunpack.c.l.b16 %v2277
    %v2287 = vunpack.c.l.b16 %v2278
    %v2288 = vunpack.c.l.b16 %v2279
    %v2289 = vpack.c.b16 %v2286, %v2285
    %v2290 = vpack.c.b16 %v2288, %v2287
    %2293 = vmatpush.bf16.msra.mxu0 0
    %2294 = vmatpush.bf16.msra.mxu0 0
    %2295 = vmatpush.bf16.msra.mxu0 0
    %2296 = vmatpush.bf16.msra.mxu0 0
    %2297 = vmatpush.bf16.msra.mxu0 0
    %2298 = vmatpush.bf16.msra.mxu0 0
    %2299 = vmatpush.bf16.msra.mxu0 %v2290
    %2300 = vmatpush.bf16.msra.mxu0 %v2289
    %2301 = vmatmul.bf16.gmra.mxu0 %v2040
    %v2302 = vpop.f32.mrf.mxu0
    %v2303 = vadd.f32 %v2280, %v2302
    %v2304 = vpop.f32.mrf.mxu0
    %v2305 = vadd.f32 %v2280, %v2304
    %2306 = vmatmul.bf16.gmra.mxu0 %v2043
    %v2307 = vpop.f32.mrf.mxu0
    %v2308 = vadd.f32 %v2280, %v2307
    %v2309 = vpop.f32.mrf.mxu0
    %2310 = vdwg.mxu0
    %v2311 = vld [vmem:[%s491] sm:$0xf]
    %v2312 = vld [vmem:[%s491 + $0x4] sm:$0xf]
    %v2313 = vld [vmem:[%s491 + $0x8] sm:$0xf]
    %v2314 = vld [vmem:[%s491 + $0xc] sm:$0xf]
    %v2315 = vperm.slane %v2240, 2
    %v2320 = vunpack.c.l.b16 %v2311
    %v2321 = vunpack.c.l.b16 %v2312
    %v2322 = vunpack.c.l.b16 %v2313
    %v2323 = vunpack.c.l.b16 %v2314
    %v2324 = vpack.c.b16 %v2321, %v2320
    %v2325 = vpack.c.b16 %v2323, %v2322
    %2328 = vmatpush.bf16.msra.mxu0 0
    %2329 = vmatpush.bf16.msra.mxu0 0
    %2330 = vmatpush.bf16.msra.mxu0 0
    %2331 = vmatpush.bf16.msra.mxu0 0
    %2332 = vmatpush.bf16.msra.mxu0 0
    %2333 = vmatpush.bf16.msra.mxu0 0
    %2334 = vmatpush.bf16.msra.mxu0 %v2325
    %2335 = vmatpush.bf16.msra.mxu0 %v2324
    %2336 = vmatmul.bf16.gmra.mxu0 %v2040
    %v2337 = vpop.f32.mrf.mxu0
    %v2338 = vadd.f32 %v2315, %v2337
    %v2339 = vpop.f32.mrf.mxu0
    %v2340 = vadd.f32 %v2315, %v2339
    %2341 = vmatmul.bf16.gmra.mxu0 %v2043
    %v2342 = vpop.f32.mrf.mxu0
    %v2343 = vadd.f32 %v2315, %v2342
    %v2344 = vpop.f32.mrf.mxu0
    %2345 = vdwg.mxu0
    %v2346 = vpack.c.bf16 %v2270, %v2268
    %v2347 = vpack.c.bf16 %v2273, %v2273
    %v2348 = vpack.c.bf16 %v2305, %v2303
    %v2349 = vpack.c.bf16 %v2308, %v2308
    %v2351 = vsel %vm307, %v2346, 0
    %v2354 = vsel %vm307, %v2347, 0
    %v2357 = vsel %vm307, %v2348, 0
    %v2360 = vsel %vm307, %v2349, 0
    %2362 = vmatpush.bf16.xpose.msra.mxu0 0
    %2363 = vmatpush.bf16.xpose.msra.mxu0 0
    %2364 = vmatpush.bf16.xpose.msra.mxu0 0
    %2365 = vmatpush.bf16.xpose.msra.mxu0 0
    %2366 = vmatpush.bf16.xpose.msra.mxu0 0
    %2367 = vmatpush.bf16.xpose.msra.mxu0 0
    %2368 = vmatpush.bf16.xpose.msra.mxu0 %v2360
    %2369 = vmatpush.bf16.xpose.msra.mxu0 %v2357
    %2370 = vmatmul.bf16.gmra.mxu0 %v2351
    %v2371 = vpop.f32.mrf.mxu0
    %v2372 = vadd.f32 0.0, %v2371
    %v2373 = vpop.f32.mrf.mxu0
    %v2374 = vadd.f32 0.0, %v2373
    %2375 = vmatmul.bf16.gmra.mxu0 %v2354
    %v2376 = vpop.f32.mrf.mxu0
    %v2377 = vadd.f32 0.0, %v2376
    %v2378 = vpop.f32.mrf.mxu0
    %2379 = vdwg.mxu0
    %v2380 = vmul.f32 %v2372, 0.25
    %v2381 = vmul.f32 %v2374, 0.25
    %v2382 = vmul.f32 %v2377, 0.25
    %v2383 = vsel %vm341, %v2380, -inf
    %2384 = vmax.xlane.f32.xlu0 %v2383
    %v2385 = vpop.xlane.xlu0 %2384
    %v2386 = vsel %vm341, %v2381, -inf
    %2387 = vmax.xlane.f32.xlu0 %v2386
    %v2388 = vpop.xlane.xlu0 %2387
    %v2389 = vsel %vm348, %v2382, -inf
    %2390 = vmax.xlane.f32.xlu0 %v2389
    %v2391 = vpop.xlane.xlu0 %2390
    %v2392 = vsub.f32 %v2380, %v2385
    %v2393 = vsub.f32 %v2381, %v2388
    %v2394 = vsub.f32 %v2382, %v2391
    %v2395 = vmul.f32 %v2392, 1.442695
    %v2396 = vpow.pop %v2395
    %v2397 = vmul.f32 %v2393, 1.442695
    %v2398 = vpow.pop %v2397
    %v2399 = vmul.f32 %v2394, 1.442695
    %v2400 = vpow.pop %v2399
    %v2401 = vsel %vm341, %v2396, 0.0
    %2402 = vadd.xlane.f32.xlu0 %v2401
    %v2403 = vpop.xlane.xlu0 %2402
    %v2404 = vsel %vm341, %v2398, 0.0
    %2405 = vadd.xlane.f32.xlu0 %v2404
    %v2406 = vpop.xlane.xlu0 %2405
    %v2407 = vsel %vm348, %v2400, 0.0
    %2408 = vadd.xlane.f32.xlu0 %v2407
    %v2409 = vpop.xlane.xlu0 %2408
    %v2410 = vrcp.pop %v2403
    %v2411 = vrcp.pop %v2406
    %v2412 = vrcp.pop %v2409
    %v2413 = vmul.f32 %v2396, %v2410
    %v2414 = vmul.f32 %v2398, %v2411
    %v2415 = vmul.f32 %v2400, %v2412
    %v2416 = vpack.c.bf16 %v2414, %v2413
    %v2417 = vpack.c.bf16 %v2415, %v2415
    %v2418 = vpack.c.bf16 %v2340, %v2338
    %v2419 = vpack.c.bf16 %v2343, %v2343
    %v2421 = vsel %vm341, %v2416, 0
    %v2424 = vsel %vm341, %v2417, 0
    %v2427 = vand.u32 %v2419, %v388
    %2429 = vmatpush.bf16.msra.mxu0 0
    %2430 = vmatpush.bf16.msra.mxu0 0
    %2431 = vmatpush.bf16.msra.mxu0 0
    %2432 = vmatpush.bf16.msra.mxu0 0
    %2433 = vmatpush.bf16.msra.mxu0 0
    %2434 = vmatpush.bf16.msra.mxu0 0
    %2435 = vmatpush.bf16.msra.mxu0 %v2427
    %2436 = vmatpush.bf16.msra.mxu0 %v2418
    %2437 = vmatmul.bf16.gmra.mxu0 %v2421
    %v2438 = vpop.f32.mrf.mxu0
    %v2439 = vadd.f32 0.0, %v2438
    %v2440 = vpop.f32.mrf.mxu0
    %v2441 = vadd.f32 0.0, %v2440
    %2442 = vmatmul.bf16.gmra.mxu0 %v2424
    %v2443 = vpop.f32.mrf.mxu0
    %v2444 = vadd.f32 0.0, %v2443
    %v2445 = vpop.f32.mrf.mxu0
    %2446 = vdwg.mxu0
    %v2447 = vpack.c.bf16 %v2441, %v2439
    %v2448 = vpack.c.bf16 %v2444, %v2444
    %v2449 = vld [vmem:[%s630] sm:$0xf]
    %v2450 = vld [vmem:[%s630 + $0x4] sm:$0xf]
    %v2451 = vld [vmem:[%s630 + $0x8] sm:$0xf]
    %v2452 = vld [vmem:[%s630 + $0xc] sm:$0xf]
    %v2457 = vunpack.c.l.b16 %v2449
    %v2458 = vunpack.c.l.b16 %v2450
    %v2459 = vunpack.c.l.b16 %v2451
    %v2460 = vunpack.c.l.b16 %v2452
    %v2461 = vpack.c.b16 %v2458, %v2457
    %v2462 = vpack.c.b16 %v2460, %v2459
    %v2464 = vsel %vm307, %v2447, 0
    %v2467 = vsel %vm307, %v2448, 0
    %v2470 = vsel %vm307, %v2461, 0
    %v2473 = vsel %vm307, %v2462, 0
    %2475 = vmatpush.bf16.xpose.msra.mxu0 0
    %2476 = vmatpush.bf16.xpose.msra.mxu0 0
    %2477 = vmatpush.bf16.xpose.msra.mxu0 0
    %2478 = vmatpush.bf16.xpose.msra.mxu0 0
    %2479 = vmatpush.bf16.xpose.msra.mxu0 0
    %2480 = vmatpush.bf16.xpose.msra.mxu0 0
    %2481 = vmatpush.bf16.xpose.msra.mxu0 %v2473
    %2482 = vmatpush.bf16.xpose.msra.mxu0 %v2470
    %2483 = vmatmul.bf16.gmra.mxu0 %v2464
    %v2484 = vpop.f32.mrf.mxu0
    %v2485 = vadd.f32 0.0, %v2484
    %v2486 = vpop.f32.mrf.mxu0
    %v2487 = vadd.f32 0.0, %v2486
    %2488 = vmatmul.bf16.gmra.mxu0 %v2467
    %v2489 = vpop.f32.mrf.mxu0
    %v2490 = vadd.f32 0.0, %v2489
    %v2491 = vpop.f32.mrf.mxu0
    %2492 = vdwg.mxu0
    %v2497 = vunpack.c.l.b16 %v2236
    %v2498 = vunpack.c.l.b16 %v2237
    %v2499 = vunpack.c.l.b16 %v2238
    %v2500 = vunpack.c.l.b16 %v2239
    %v2501 = vpack.c.b16 %v2498, %v2497
    %v2502 = vpack.c.b16 %v2500, %v2499
    %v2504 = vsel %vm307, %v2234, 0
    %v2507 = vsel %vm307, %v2235, 0
    %v2510 = vsel %vm307, %v2501, 0
    %v2513 = vsel %vm307, %v2502, 0
    %2515 = vmatpush.bf16.xpose.msra.mxu0 0
    %2516 = vmatpush.bf16.xpose.msra.mxu0 0
    %2517 = vmatpush.bf16.xpose.msra.mxu0 0
    %2518 = vmatpush.bf16.xpose.msra.mxu0 0
    %2519 = vmatpush.bf16.xpose.msra.mxu0 0
    %2520 = vmatpush.bf16.xpose.msra.mxu0 0
    %2521 = vmatpush.bf16.xpose.msra.mxu0 %v2513
    %2522 = vmatpush.bf16.xpose.msra.mxu0 %v2510
    %2523 = vmatmul.bf16.gmra.mxu0 %v2504
    %v2524 = vpop.f32.mrf.mxu0
    %v2525 = vadd.f32 %v2485, %v2524
    %v2526 = vpop.f32.mrf.mxu0
    %v2527 = vadd.f32 %v2487, %v2526
    %2528 = vmatmul.bf16.gmra.mxu0 %v2507
    %v2529 = vpop.f32.mrf.mxu0
    %v2530 = vadd.f32 %v2490, %v2529
    %v2531 = vpop.f32.mrf.mxu0
    %2532 = vdwg.mxu0
    %v2533 = vadd.f32 %v1931, %v2525
    %v2534 = vadd.f32 %v1933, %v2527
    %v2535 = vadd.f32 %v1936, %v2530
    %v2536 = vperm.slane %v1941, 0
    %v2537 = vadd.f32 %v2533, %v2536
    %v2538 = vadd.f32 %v2534, %v2536
    %v2539 = vadd.f32 %v2535, %v2536
    %v2540 = vsel %vm104, %v2537, 0.0
    %2541 = vadd.xlane.f32.xlu0 %v2540
    %v2542 = vpop.xlane.xlu0 %2541
    %v2543 = vsel %vm104, %v2538, 0.0
    %2544 = vadd.xlane.f32.xlu0 %v2543
    %v2545 = vpop.xlane.xlu0 %2544
    %v2546 = vsel %vm111, %v2539, 0.0
    %2547 = vadd.xlane.f32.xlu0 %v2546
    %v2548 = vpop.xlane.xlu0 %2547
    %v2549 = vmul.f32 %v2542, %v121
    %v2550 = vmul.f32 %v2545, %v121
    %v2551 = vmul.f32 %v2548, %v121
    %v2552 = vsub.f32 %v2537, %v2549
    %v2553 = vsub.f32 %v2538, %v2550
    %v2554 = vsub.f32 %v2539, %v2551
    %v2555 = vmul.f32 %v2552, %v2552
    %v2556 = vmul.f32 %v2553, %v2553
    %v2557 = vmul.f32 %v2554, %v2554
    %v2558 = vsel %vm104, %v2555, 0.0
    %2559 = vadd.xlane.f32.xlu0 %v2558
    %v2560 = vpop.xlane.xlu0 %2559
    %v2561 = vsel %vm104, %v2556, 0.0
    %2562 = vadd.xlane.f32.xlu0 %v2561
    %v2563 = vpop.xlane.xlu0 %2562
    %v2564 = vsel %vm111, %v2557, 0.0
    %2565 = vadd.xlane.f32.xlu0 %v2564
    %v2566 = vpop.xlane.xlu0 %2565
    %v2567 = vmul.f32 %v2560, %v121
    %v2568 = vmul.f32 %v2563, %v121
    %v2569 = vmul.f32 %v2566, %v121
    %v2570 = vadd.f32 %v2567, 1e-06
    %v2571 = vadd.f32 %v2568, 1e-06
    %v2572 = vadd.f32 %v2569, 1e-06
    %v2573 = vrsqrt.pop %v2570
    %v2574 = vmul.f32 %v2573, %v2570
    %v2575 = vmul.f32 %v2574, %v2573
    %v2576 = vmul.f32 0.5, %v2575
    %v2577 = vsub.f32 1.5, %v2576
    %v2578 = vmul.f32 %v2573, %v2577
    %vm2579 = vweird.f32 %v2570
    %vm2580 = vweird.f32 %v2573
    %vm2581 = vmor %vm2579, %vm2580
    %v2582 = vsel %vm2581, %v2573, %v2578
    %v2583 = vrsqrt.pop %v2571
    %v2584 = vmul.f32 %v2583, %v2571
    %v2585 = vmul.f32 %v2584, %v2583
    %v2586 = vmul.f32 0.5, %v2585
    %v2587 = vsub.f32 1.5, %v2586
    %v2588 = vmul.f32 %v2583, %v2587
    %vm2589 = vweird.f32 %v2571
    %vm2590 = vweird.f32 %v2583
    %vm2591 = vmor %vm2589, %vm2590
    %v2592 = vsel %vm2591, %v2583, %v2588
    %v2593 = vrsqrt.pop %v2572
    %v2594 = vmul.f32 %v2593, %v2572
    %v2595 = vmul.f32 %v2594, %v2593
    %v2596 = vmul.f32 0.5, %v2595
    %v2597 = vsub.f32 1.5, %v2596
    %v2598 = vmul.f32 %v2593, %v2597
    %vm2599 = vweird.f32 %v2572
    %vm2600 = vweird.f32 %v2593
    %vm2601 = vmor %vm2599, %vm2600
    %v2602 = vsel %vm2601, %v2593, %v2598
    %v2603 = vmul.f32 %v2552, %v2582
    %v2604 = vmul.f32 %v2553, %v2592
    %v2605 = vmul.f32 %v2554, %v2602
    %v2606 = vperm.slane %v1942, 0
    %v2607 = vmul.f32 %v2603, %v2606
    %v2608 = vmul.f32 %v2604, %v2606
    %v2609 = vmul.f32 %v2605, %v2606
    %v2610 = vperm.slane %v1943, 0
    %v2611 = vadd.f32 %v2607, %v2610
    %v2612 = vadd.f32 %v2608, %v2610
    %v2613 = vadd.f32 %v2609, %v2610
    %v2614 = vpack.c.bf16 %v2612, %v2611
    %v2615 = vpack.c.bf16 %v2613, %v2613
    %v2616 = vld [vmem:[%s4] sm:$0xf]
    %v2617 = vld [vmem:[%s4 + $0x4] sm:$0xf]
    %v2618 = vld [vmem:[%s4 + $0x8] sm:$0xf]
    %v2619 = vld [vmem:[%s4 + $0xc] sm:$0xf]
    %v2620 = vld [vmem:[%s5] sm:$0x1]
    %v2622 = vperm.slane %v2620, 0
    %v2628 = vunpack.c.l.b16 %v2616
    %v2629 = vunpack.c.l.b16 %v2617
    %v2630 = vunpack.c.l.b16 %v2618
    %v2631 = vunpack.c.l.b16 %v2619
    %v2632 = vpack.c.b16 %v2629, %v2628
    %v2633 = vpack.c.b16 %v2631, %v2630
    %v2637 = vsel %vm104, %v2614, 0
    %v2640 = vsel %vm104, %v2615, 0
    %2642 = vmatpush.bf16.msra.mxu0 0
    %2643 = vmatpush.bf16.msra.mxu0 0
    %2644 = vmatpush.bf16.msra.mxu0 0
    %2645 = vmatpush.bf16.msra.mxu0 0
    %2646 = vmatpush.bf16.msra.mxu0 0
    %2647 = vmatpush.bf16.msra.mxu0 0
    %2648 = vmatpush.bf16.msra.mxu0 %v2633
    %2649 = vmatpush.bf16.msra.mxu0 %v2632
    %2650 = vmatmul.bf16.gmra.mxu0 %v2637
    %v2651 = vpop.f32.mrf.mxu0
    %v2652 = vadd.f32 %v2622, %v2651
    %v2653 = vpop.f32.mrf.mxu0
    %v2654 = vadd.f32 %v2622, %v2653
    %2655 = vmatmul.bf16.gmra.mxu0 %v2640
    %v2656 = vpop.f32.mrf.mxu0
    %v2657 = vadd.f32 %v2622, %v2656
    %v2658 = vpop.f32.mrf.mxu0
    %2659 = vdwg.mxu0
    %v2660 = vmul.f32 %v2652, %v2652
    %v2661 = vmul.f32 %v2654, %v2654
    %v2662 = vmul.f32 %v2657, %v2657
    %v2663 = vmul.f32 %v2652, %v2660
    %v2664 = vmul.f32 %v2654, %v2661
    %v2665 = vmul.f32 %v2657, %v2662
    %v2666 = vmul.f32 %v2663, 0.044715
    %v2667 = vmul.f32 %v2664, 0.044715
    %v2668 = vmul.f32 %v2665, 0.044715
    %v2669 = vadd.f32 %v2652, %v2666
    %v2670 = vadd.f32 %v2654, %v2667
    %v2671 = vadd.f32 %v2657, %v2668
    %v2672 = vmul.f32 %v2669, 0.7978846
    %v2673 = vmul.f32 %v2670, 0.7978846
    %v2674 = vmul.f32 %v2671, 0.7978846
    %v2675 = vtanh.pop %v2672
    %v2676 = vtanh.pop %v2673
    %v2677 = vtanh.pop %v2674
    %v2678 = vadd.f32 %v2675, 1.0
    %v2679 = vadd.f32 %v2676, 1.0
    %v2680 = vadd.f32 %v2677, 1.0
    %v2681 = vmul.f32 %v2678, 0.5
    %v2682 = vmul.f32 %v2679, 0.5
    %v2683 = vmul.f32 %v2680, 0.5
    %v2684 = vmul.f32 %v2652, %v2681
    %v2685 = vmul.f32 %v2654, %v2682
    %v2686 = vmul.f32 %v2657, %v2683
    %v2687 = vpack.c.bf16 %v2685, %v2684
    %v2688 = vpack.c.bf16 %v2686, %v2686
    %v2689 = vld [vmem:[%s6] sm:$0xf]
    %v2690 = vld [vmem:[%s6 + $0x4] sm:$0xf]
    %v2691 = vld [vmem:[%s6 + $0x8] sm:$0xf]
    %v2692 = vld [vmem:[%s6 + $0xc] sm:$0xf]
    %v2693 = vld [vmem:[%s6 + $0x10] sm:$0xf]
    %v2694 = vld [vmem:[%s6 + $0x14] sm:$0xf]
    %v2695 = vld [vmem:[%s6 + $0x18] sm:$0xf]
    %v2696 = vld [vmem:[%s6 + $0x1c] sm:$0xf]
    %v2697 = vld [vmem:[%s6 + $0x20] sm:$0xf]
    %v2698 = vld [vmem:[%s6 + $0x24] sm:$0xf]
    %v2699 = vld [vmem:[%s6 + $0x28] sm:$0xf]
    %v2700 = vld [vmem:[%s6 + $0x2c] sm:$0xf]
    %v2701 = vld [vmem:[%s6 + $0x30] sm:$0xf]
    %v2702 = vld [vmem:[%s6 + $0x34] sm:$0xf]
    %v2703 = vld [vmem:[%s6 + $0x38] sm:$0xf]
    %v2704 = vld [vmem:[%s6 + $0x3c] sm:$0xf]
    %v2705 = vperm.slane %v1944, 0
    %v2722 = vunpack.c.l.b16 %v2689
    %v2723 = vunpack.c.l.b16 %v2690
    %v2724 = vunpack.c.l.b16 %v2691
    %v2725 = vunpack.c.l.b16 %v2692
    %v2726 = vunpack.c.l.b16 %v2693
    %v2727 = vunpack.c.l.b16 %v2694
    %v2728 = vunpack.c.l.b16 %v2695
    %v2729 = vunpack.c.l.b16 %v2696
    %v2730 = vunpack.c.l.b16 %v2697
    %v2731 = vunpack.c.l.b16 %v2698
    %v2732 = vunpack.c.l.b16 %v2699
    %v2733 = vunpack.c.l.b16 %v2700
    %v2734 = vunpack.c.l.b16 %v2701
    %v2735 = vunpack.c.l.b16 %v2702
    %v2736 = vunpack.c.l.b16 %v2703
    %v2737 = vunpack.c.l.b16 %v2704
    %v2738 = vpack.c.b16 %v2723, %v2722
    %v2739 = vpack.c.b16 %v2725, %v2724
    %v2740 = vpack.c.b16 %v2727, %v2726
    %v2741 = vpack.c.b16 %v2729, %v2728
    %v2742 = vpack.c.b16 %v2731, %v2730
    %v2743 = vpack.c.b16 %v2733, %v2732
    %v2744 = vpack.c.b16 %v2735, %v2734
    %v2745 = vpack.c.b16 %v2737, %v2736
    %2754 = vmatpush.bf16.msra.mxu0 %v2745
    %2755 = vmatpush.bf16.msra.mxu0 %v2744
    %2756 = vmatpush.bf16.msra.mxu0 %v2743
    %2757 = vmatpush.bf16.msra.mxu0 %v2742
    %2758 = vmatpush.bf16.msra.mxu0 %v2741
    %2759 = vmatpush.bf16.msra.mxu0 %v2740
    %2760 = vmatpush.bf16.msra.mxu0 %v2739
    %2761 = vmatpush.bf16.msra.mxu0 %v2738
    %2762 = vmatmul.bf16.gmra.mxu0 %v2687
    %v2763 = vpop.f32.mrf.mxu0
    %v2764 = vadd.f32 %v2705, %v2763
    %v2765 = vpop.f32.mrf.mxu0
    %v2766 = vadd.f32 %v2705, %v2765
    %2767 = vmatmul.bf16.gmra.mxu0 %v2688
    %v2768 = vpop.f32.mrf.mxu0
    %v2769 = vadd.f32 %v2705, %v2768
    %v2770 = vpop.f32.mrf.mxu0
    %2771 = vdwg.mxu0
    %v2772 = vadd.f32 %v2537, %v2764
    %v2773 = vadd.f32 %v2538, %v2766
    %v2774 = vadd.f32 %v2539, %v2769
    %v2775 = vld [vmem:[%s7 + $0x20] sm:$0x1]
    %v2776 = vld [vmem:[%s7 + $0x21] sm:$0x1]
    %v2777 = vld [vmem:[%s7 + $0x22] sm:$0x1]
    %v2778 = vld [vmem:[%s7 + $0x23] sm:$0x1]
    %v2779 = vld [vmem:[%s7 + $0x24] sm:$0x1]
    %v2780 = vld [vmem:[%s7 + $0x25] sm:$0x1]
    %v2781 = vsel %vm104, %v2772, 0.0
    %2782 = vadd.xlane.f32.xlu0 %v2781
    %v2783 = vpop.xlane.xlu0 %2782
    %v2784 = vsel %vm104, %v2773, 0.0
    %2785 = vadd.xlane.f32.xlu0 %v2784
    %v2786 = vpop.xlane.xlu0 %2785
    %v2787 = vsel %vm111, %v2774, 0.0
    %2788 = vadd.xlane.f32.xlu0 %v2787
    %v2789 = vpop.xlane.xlu0 %2788
    %v2790 = vmul.f32 %v2783, %v121
    %v2791 = vmul.f32 %v2786, %v121
    %v2792 = vmul.f32 %v2789, %v121
    %v2793 = vsub.f32 %v2772, %v2790
    %v2794 = vsub.f32 %v2773, %v2791
    %v2795 = vsub.f32 %v2774, %v2792
    %v2796 = vmul.f32 %v2793, %v2793
    %v2797 = vmul.f32 %v2794, %v2794
    %v2798 = vmul.f32 %v2795, %v2795
    %v2799 = vsel %vm104, %v2796, 0.0
    %2800 = vadd.xlane.f32.xlu0 %v2799
    %v2801 = vpop.xlane.xlu0 %2800
    %v2802 = vsel %vm104, %v2797, 0.0
    %2803 = vadd.xlane.f32.xlu0 %v2802
    %v2804 = vpop.xlane.xlu0 %2803
    %v2805 = vsel %vm111, %v2798, 0.0
    %2806 = vadd.xlane.f32.xlu0 %v2805
    %v2807 = vpop.xlane.xlu0 %2806
    %v2808 = vmul.f32 %v2801, %v121
    %v2809 = vmul.f32 %v2804, %v121
    %v2810 = vmul.f32 %v2807, %v121
    %v2811 = vadd.f32 %v2808, 1e-06
    %v2812 = vadd.f32 %v2809, 1e-06
    %v2813 = vadd.f32 %v2810, 1e-06
    %v2814 = vrsqrt.pop %v2811
    %v2815 = vmul.f32 %v2814, %v2811
    %v2816 = vmul.f32 %v2815, %v2814
    %v2817 = vmul.f32 0.5, %v2816
    %v2818 = vsub.f32 1.5, %v2817
    %v2819 = vmul.f32 %v2814, %v2818
    %vm2820 = vweird.f32 %v2811
    %vm2821 = vweird.f32 %v2814
    %vm2822 = vmor %vm2820, %vm2821
    %v2823 = vsel %vm2822, %v2814, %v2819
    %v2824 = vrsqrt.pop %v2812
    %v2825 = vmul.f32 %v2824, %v2812
    %v2826 = vmul.f32 %v2825, %v2824
    %v2827 = vmul.f32 0.5, %v2826
    %v2828 = vsub.f32 1.5, %v2827
    %v2829 = vmul.f32 %v2824, %v2828
    %vm2830 = vweird.f32 %v2812
    %vm2831 = vweird.f32 %v2824
    %vm2832 = vmor %vm2830, %vm2831
    %v2833 = vsel %vm2832, %v2824, %v2829
    %v2834 = vrsqrt.pop %v2813
    %v2835 = vmul.f32 %v2834, %v2813
    %v2836 = vmul.f32 %v2835, %v2834
    %v2837 = vmul.f32 0.5, %v2836
    %v2838 = vsub.f32 1.5, %v2837
    %v2839 = vmul.f32 %v2834, %v2838
    %vm2840 = vweird.f32 %v2813
    %vm2841 = vweird.f32 %v2834
    %vm2842 = vmor %vm2840, %vm2841
    %v2843 = vsel %vm2842, %v2834, %v2839
    %v2844 = vmul.f32 %v2793, %v2823
    %v2845 = vmul.f32 %v2794, %v2833
    %v2846 = vmul.f32 %v2795, %v2843
    %v2847 = vperm.slane %v2775, 0
    %v2848 = vmul.f32 %v2844, %v2847
    %v2849 = vmul.f32 %v2845, %v2847
    %v2850 = vmul.f32 %v2846, %v2847
    %v2851 = vperm.slane %v2776, 0
    %v2852 = vadd.f32 %v2848, %v2851
    %v2853 = vadd.f32 %v2849, %v2851
    %v2854 = vadd.f32 %v2850, %v2851
    %v2855 = vpack.c.bf16 %v2853, %v2852
    %v2856 = vpack.c.bf16 %v2854, %v2854
    %v2857 = vld [vmem:[%s1039] sm:$0x7]
    %v2858 = vld [vmem:[%s1041] sm:$0xf]
    %v2859 = vld [vmem:[%s1041 + $0x4] sm:$0xf]
    %v2860 = vld [vmem:[%s1041 + $0x8] sm:$0xf]
    %v2861 = vld [vmem:[%s1041 + $0xc] sm:$0xf]
    %v2862 = vperm.slane %v2857, 0
    %v2867 = vunpack.c.l.b16 %v2858
    %v2868 = vunpack.c.l.b16 %v2859
    %v2869 = vunpack.c.l.b16 %v2860
    %v2870 = vunpack.c.l.b16 %v2861
    %v2871 = vpack.c.b16 %v2868, %v2867
    %v2872 = vpack.c.b16 %v2870, %v2869
    %v2876 = vsel %vm104, %v2855, 0
    %v2879 = vsel %vm104, %v2856, 0
    %2881 = vmatpush.bf16.msra.mxu0 0
    %2882 = vmatpush.bf16.msra.mxu0 0
    %2883 = vmatpush.bf16.msra.mxu0 0
    %2884 = vmatpush.bf16.msra.mxu0 0
    %2885 = vmatpush.bf16.msra.mxu0 0
    %2886 = vmatpush.bf16.msra.mxu0 0
    %2887 = vmatpush.bf16.msra.mxu0 %v2872
    %2888 = vmatpush.bf16.msra.mxu0 %v2871
    %2889 = vmatmul.bf16.gmra.mxu0 %v2876
    %v2890 = vpop.f32.mrf.mxu0
    %v2891 = vadd.f32 %v2862, %v2890
    %v2892 = vpop.f32.mrf.mxu0
    %v2893 = vadd.f32 %v2862, %v2892
    %2894 = vmatmul.bf16.gmra.mxu0 %v2879
    %v2895 = vpop.f32.mrf.mxu0
    %v2896 = vadd.f32 %v2862, %v2895
    %v2897 = vpop.f32.mrf.mxu0
    %2898 = vdwg.mxu0
    %v2899 = vld [vmem:[%s1083] sm:$0xf]
    %v2900 = vld [vmem:[%s1083 + $0x4] sm:$0xf]
    %v2901 = vld [vmem:[%s1083 + $0x8] sm:$0xf]
    %v2902 = vld [vmem:[%s1083 + $0xc] sm:$0xf]
    %v2903 = vperm.slane %v2857, 1
    %v2908 = vunpack.c.l.b16 %v2899
    %v2909 = vunpack.c.l.b16 %v2900
    %v2910 = vunpack.c.l.b16 %v2901
    %v2911 = vunpack.c.l.b16 %v2902
    %v2912 = vpack.c.b16 %v2909, %v2908
    %v2913 = vpack.c.b16 %v2911, %v2910
    %2916 = vmatpush.bf16.msra.mxu0 0
    %2917 = vmatpush.bf16.msra.mxu0 0
    %2918 = vmatpush.bf16.msra.mxu0 0
    %2919 = vmatpush.bf16.msra.mxu0 0
    %2920 = vmatpush.bf16.msra.mxu0 0
    %2921 = vmatpush.bf16.msra.mxu0 0
    %2922 = vmatpush.bf16.msra.mxu0 %v2913
    %2923 = vmatpush.bf16.msra.mxu0 %v2912
    %2924 = vmatmul.bf16.gmra.mxu0 %v2876
    %v2925 = vpop.f32.mrf.mxu0
    %v2926 = vadd.f32 %v2903, %v2925
    %v2927 = vpop.f32.mrf.mxu0
    %v2928 = vadd.f32 %v2903, %v2927
    %2929 = vmatmul.bf16.gmra.mxu0 %v2879
    %v2930 = vpop.f32.mrf.mxu0
    %v2931 = vadd.f32 %v2903, %v2930
    %v2932 = vpop.f32.mrf.mxu0
    %2933 = vdwg.mxu0
    %v2934 = vld [vmem:[%s1119] sm:$0xf]
    %v2935 = vld [vmem:[%s1119 + $0x4] sm:$0xf]
    %v2936 = vld [vmem:[%s1119 + $0x8] sm:$0xf]
    %v2937 = vld [vmem:[%s1119 + $0xc] sm:$0xf]
    %v2938 = vperm.slane %v2857, 2
    %v2943 = vunpack.c.l.b16 %v2934
    %v2944 = vunpack.c.l.b16 %v2935
    %v2945 = vunpack.c.l.b16 %v2936
    %v2946 = vunpack.c.l.b16 %v2937
    %v2947 = vpack.c.b16 %v2944, %v2943
    %v2948 = vpack.c.b16 %v2946, %v2945
    %2951 = vmatpush.bf16.msra.mxu0 0
    %2952 = vmatpush.bf16.msra.mxu0 0
    %2953 = vmatpush.bf16.msra.mxu0 0
    %2954 = vmatpush.bf16.msra.mxu0 0
    %2955 = vmatpush.bf16.msra.mxu0 0
    %2956 = vmatpush.bf16.msra.mxu0 0
    %2957 = vmatpush.bf16.msra.mxu0 %v2948
    %2958 = vmatpush.bf16.msra.mxu0 %v2947
    %2959 = vmatmul.bf16.gmra.mxu0 %v2876
    %v2960 = vpop.f32.mrf.mxu0
    %v2961 = vadd.f32 %v2938, %v2960
    %v2962 = vpop.f32.mrf.mxu0
    %v2963 = vadd.f32 %v2938, %v2962
    %2964 = vmatmul.bf16.gmra.mxu0 %v2879
    %v2965 = vpop.f32.mrf.mxu0
    %v2966 = vadd.f32 %v2938, %v2965
    %v2967 = vpop.f32.mrf.mxu0
    %2968 = vdwg.mxu0
    %v2969 = vpack.c.bf16 %v2893, %v2891
    %v2970 = vpack.c.bf16 %v2896, %v2896
    %v2971 = vpack.c.bf16 %v2928, %v2926
    %v2972 = vpack.c.bf16 %v2931, %v2931
    %v2974 = vsel %vm307, %v2969, 0
    %v2977 = vsel %vm307, %v2970, 0
    %v2980 = vsel %vm307, %v2971, 0
    %v2983 = vsel %vm307, %v2972, 0
    %2985 = vmatpush.bf16.xpose.msra.mxu0 0
    %2986 = vmatpush.bf16.xpose.msra.mxu0 0
    %2987 = vmatpush.bf16.xpose.msra.mxu0 0
    %2988 = vmatpush.bf16.xpose.msra.mxu0 0
    %2989 = vmatpush.bf16.xpose.msra.mxu0 0
    %2990 = vmatpush.bf16.xpose.msra.mxu0 0
    %2991 = vmatpush.bf16.xpose.msra.mxu0 %v2983
    %2992 = vmatpush.bf16.xpose.msra.mxu0 %v2980
    %2993 = vmatmul.bf16.gmra.mxu0 %v2974
    %v2994 = vpop.f32.mrf.mxu0
    %v2995 = vadd.f32 0.0, %v2994
    %v2996 = vpop.f32.mrf.mxu0
    %v2997 = vadd.f32 0.0, %v2996
    %2998 = vmatmul.bf16.gmra.mxu0 %v2977
    %v2999 = vpop.f32.mrf.mxu0
    %v3000 = vadd.f32 0.0, %v2999
    %v3001 = vpop.f32.mrf.mxu0
    %3002 = vdwg.mxu0
    %v3003 = vmul.f32 %v2995, 0.25
    %v3004 = vmul.f32 %v2997, 0.25
    %v3005 = vmul.f32 %v3000, 0.25
    %v3006 = vsel %vm341, %v3003, -inf
    %3007 = vmax.xlane.f32.xlu0 %v3006
    %v3008 = vpop.xlane.xlu0 %3007
    %v3009 = vsel %vm341, %v3004, -inf
    %3010 = vmax.xlane.f32.xlu0 %v3009
    %v3011 = vpop.xlane.xlu0 %3010
    %v3012 = vsel %vm348, %v3005, -inf
    %3013 = vmax.xlane.f32.xlu0 %v3012
    %v3014 = vpop.xlane.xlu0 %3013
    %v3015 = vsub.f32 %v3003, %v3008
    %v3016 = vsub.f32 %v3004, %v3011
    %v3017 = vsub.f32 %v3005, %v3014
    %v3018 = vmul.f32 %v3015, 1.442695
    %v3019 = vpow.pop %v3018
    %v3020 = vmul.f32 %v3016, 1.442695
    %v3021 = vpow.pop %v3020
    %v3022 = vmul.f32 %v3017, 1.442695
    %v3023 = vpow.pop %v3022
    %v3024 = vsel %vm341, %v3019, 0.0
    %3025 = vadd.xlane.f32.xlu0 %v3024
    %v3026 = vpop.xlane.xlu0 %3025
    %v3027 = vsel %vm341, %v3021, 0.0
    %3028 = vadd.xlane.f32.xlu0 %v3027
    %v3029 = vpop.xlane.xlu0 %3028
    %v3030 = vsel %vm348, %v3023, 0.0
    %3031 = vadd.xlane.f32.xlu0 %v3030
    %v3032 = vpop.xlane.xlu0 %3031
    %v3033 = vrcp.pop %v3026
    %v3034 = vrcp.pop %v3029
    %v3035 = vrcp.pop %v3032
    %v3036 = vmul.f32 %v3019, %v3033
    %v3037 = vmul.f32 %v3021, %v3034
    %v3038 = vmul.f32 %v3023, %v3035
    %v3039 = vpack.c.bf16 %v3037, %v3036
    %v3040 = vpack.c.bf16 %v3038, %v3038
    %v3041 = vpack.c.bf16 %v2963, %v2961
    %v3042 = vpack.c.bf16 %v2966, %v2966
    %v3044 = vsel %vm341, %v3039, 0
    %v3047 = vsel %vm341, %v3040, 0
    %v3050 = vand.u32 %v3042, %v388
    %3052 = vmatpush.bf16.msra.mxu0 0
    %3053 = vmatpush.bf16.msra.mxu0 0
    %3054 = vmatpush.bf16.msra.mxu0 0
    %3055 = vmatpush.bf16.msra.mxu0 0
    %3056 = vmatpush.bf16.msra.mxu0 0
    %3057 = vmatpush.bf16.msra.mxu0 0
    %3058 = vmatpush.bf16.msra.mxu0 %v3050
    %3059 = vmatpush.bf16.msra.mxu0 %v3041
    %3060 = vmatmul.bf16.gmra.mxu0 %v3044
    %v3061 = vpop.f32.mrf.mxu0
    %v3062 = vadd.f32 0.0, %v3061
    %v3063 = vpop.f32.mrf.mxu0
    %v3064 = vadd.f32 0.0, %v3063
    %3065 = vmatmul.bf16.gmra.mxu0 %v3047
    %v3066 = vpop.f32.mrf.mxu0
    %v3067 = vadd.f32 0.0, %v3066
    %v3068 = vpop.f32.mrf.mxu0
    %3069 = vdwg.mxu0
    %v3070 = vpack.c.bf16 %v3064, %v3062
    %v3071 = vpack.c.bf16 %v3067, %v3067
    %v3072 = vld [vmem:[%s1258] sm:$0xf]
    %v3073 = vld [vmem:[%s1258 + $0x4] sm:$0xf]
    %v3074 = vld [vmem:[%s1258 + $0x8] sm:$0xf]
    %v3075 = vld [vmem:[%s1258 + $0xc] sm:$0xf]
    %v3076 = vld [vmem:[%s1263] sm:$0x7]
    %v3077 = vld [vmem:[%s1265] sm:$0xf]
    %v3078 = vld [vmem:[%s1265 + $0x4] sm:$0xf]
    %v3079 = vld [vmem:[%s1265 + $0x8] sm:$0xf]
    %v3080 = vld [vmem:[%s1265 + $0xc] sm:$0xf]
    %v3081 = vperm.slane %v3076, 0
    %v3086 = vunpack.c.l.b16 %v3077
    %v3087 = vunpack.c.l.b16 %v3078
    %v3088 = vunpack.c.l.b16 %v3079
    %v3089 = vunpack.c.l.b16 %v3080
    %v3090 = vpack.c.b16 %v3087, %v3086
    %v3091 = vpack.c.b16 %v3089, %v3088
    %3094 = vmatpush.bf16.msra.mxu0 0
    %3095 = vmatpush.bf16.msra.mxu0 0
    %3096 = vmatpush.bf16.msra.mxu0 0
    %3097 = vmatpush.bf16.msra.mxu0 0
    %3098 = vmatpush.bf16.msra.mxu0 0
    %3099 = vmatpush.bf16.msra.mxu0 0
    %3100 = vmatpush.bf16.msra.mxu0 %v3091
    %3101 = vmatpush.bf16.msra.mxu0 %v3090
    %3102 = vmatmul.bf16.gmra.mxu0 %v2876
    %v3103 = vpop.f32.mrf.mxu0
    %v3104 = vadd.f32 %v3081, %v3103
    %v3105 = vpop.f32.mrf.mxu0
    %v3106 = vadd.f32 %v3081, %v3105
    %3107 = vmatmul.bf16.gmra.mxu0 %v2879
    %v3108 = vpop.f32.mrf.mxu0
    %v3109 = vadd.f32 %v3081, %v3108
    %v3110 = vpop.f32.mrf.mxu0
    %3111 = vdwg.mxu0
    %v3112 = vld [vmem:[%s1301] sm:$0xf]
    %v3113 = vld [vmem:[%s1301 + $0x4] sm:$0xf]
    %v3114 = vld [vmem:[%s1301 + $0x8] sm:$0xf]
    %v3115 = vld [vmem:[%s1301 + $0xc] sm:$0xf]
    %v3116 = vperm.slane %v3076, 1
    %v3121 = vunpack.c.l.b16 %v3112
    %v3122 = vunpack.c.l.b16 %v3113
    %v3123 = vunpack.c.l.b16 %v3114
    %v3124 = vunpack.c.l.b16 %v3115
    %v3125 = vpack.c.b16 %v3122, %v3121
    %v3126 = vpack.c.b16 %v3124, %v3123
    %3129 = vmatpush.bf16.msra.mxu0 0
    %3130 = vmatpush.bf16.msra.mxu0 0
    %3131 = vmatpush.bf16.msra.mxu0 0
    %3132 = vmatpush.bf16.msra.mxu0 0
    %3133 = vmatpush.bf16.msra.mxu0 0
    %3134 = vmatpush.bf16.msra.mxu0 0
    %3135 = vmatpush.bf16.msra.mxu0 %v3126
    %3136 = vmatpush.bf16.msra.mxu0 %v3125
    %3137 = vmatmul.bf16.gmra.mxu0 %v2876
    %v3138 = vpop.f32.mrf.mxu0
    %v3139 = vadd.f32 %v3116, %v3138
    %v3140 = vpop.f32.mrf.mxu0
    %v3141 = vadd.f32 %v3116, %v3140
    %3142 = vmatmul.bf16.gmra.mxu0 %v2879
    %v3143 = vpop.f32.mrf.mxu0
    %v3144 = vadd.f32 %v3116, %v3143
    %v3145 = vpop.f32.mrf.mxu0
    %3146 = vdwg.mxu0
    %v3147 = vld [vmem:[%s1337] sm:$0xf]
    %v3148 = vld [vmem:[%s1337 + $0x4] sm:$0xf]
    %v3149 = vld [vmem:[%s1337 + $0x8] sm:$0xf]
    %v3150 = vld [vmem:[%s1337 + $0xc] sm:$0xf]
    %v3151 = vperm.slane %v3076, 2
    %v3156 = vunpack.c.l.b16 %v3147
    %v3157 = vunpack.c.l.b16 %v3148
    %v3158 = vunpack.c.l.b16 %v3149
    %v3159 = vunpack.c.l.b16 %v3150
    %v3160 = vpack.c.b16 %v3157, %v3156
    %v3161 = vpack.c.b16 %v3159, %v3158
    %3164 = vmatpush.bf16.msra.mxu0 0
    %3165 = vmatpush.bf16.msra.mxu0 0
    %3166 = vmatpush.bf16.msra.mxu0 0
    %3167 = vmatpush.bf16.msra.mxu0 0
    %3168 = vmatpush.bf16.msra.mxu0 0
    %3169 = vmatpush.bf16.msra.mxu0 0
    %3170 = vmatpush.bf16.msra.mxu0 %v3161
    %3171 = vmatpush.bf16.msra.mxu0 %v3160
    %3172 = vmatmul.bf16.gmra.mxu0 %v2876
    %v3173 = vpop.f32.mrf.mxu0
    %v3174 = vadd.f32 %v3151, %v3173
    %v3175 = vpop.f32.mrf.mxu0
    %v3176 = vadd.f32 %v3151, %v3175
    %3177 = vmatmul.bf16.gmra.mxu0 %v2879
    %v3178 = vpop.f32.mrf.mxu0
    %v3179 = vadd.f32 %v3151, %v3178
    %v3180 = vpop.f32.mrf.mxu0
    %3181 = vdwg.mxu0
    %v3182 = vpack.c.bf16 %v3106, %v3104
    %v3183 = vpack.c.bf16 %v3109, %v3109
    %v3184 = vpack.c.bf16 %v3141, %v3139
    %v3185 = vpack.c.bf16 %v3144, %v3144
    %v3187 = vsel %vm307, %v3182, 0
    %v3190 = vsel %vm307, %v3183, 0
    %v3193 = vsel %vm307, %v3184, 0
    %v3196 = vsel %vm307, %v3185, 0
    %3198 = vmatpush.bf16.xpose.msra.mxu0 0
    %3199 = vmatpush.bf16.xpose.msra.mxu0 0
    %3200 = vmatpush.bf16.xpose.msra.mxu0 0
    %3201 = vmatpush.bf16.xpose.msra.mxu0 0
    %3202 = vmatpush.bf16.xpose.msra.mxu0 0
    %3203 = vmatpush.bf16.xpose.msra.mxu0 0
    %3204 = vmatpush.bf16.xpose.msra.mxu0 %v3196
    %3205 = vmatpush.bf16.xpose.msra.mxu0 %v3193
    %3206 = vmatmul.bf16.gmra.mxu0 %v3187
    %v3207 = vpop.f32.mrf.mxu0
    %v3208 = vadd.f32 0.0, %v3207
    %v3209 = vpop.f32.mrf.mxu0
    %v3210 = vadd.f32 0.0, %v3209
    %3211 = vmatmul.bf16.gmra.mxu0 %v3190
    %v3212 = vpop.f32.mrf.mxu0
    %v3213 = vadd.f32 0.0, %v3212
    %v3214 = vpop.f32.mrf.mxu0
    %3215 = vdwg.mxu0
    %v3216 = vmul.f32 %v3208, 0.25
    %v3217 = vmul.f32 %v3210, 0.25
    %v3218 = vmul.f32 %v3213, 0.25
    %v3219 = vsel %vm341, %v3216, -inf
    %3220 = vmax.xlane.f32.xlu0 %v3219
    %v3221 = vpop.xlane.xlu0 %3220
    %v3222 = vsel %vm341, %v3217, -inf
    %3223 = vmax.xlane.f32.xlu0 %v3222
    %v3224 = vpop.xlane.xlu0 %3223
    %v3225 = vsel %vm348, %v3218, -inf
    %3226 = vmax.xlane.f32.xlu0 %v3225
    %v3227 = vpop.xlane.xlu0 %3226
    %v3228 = vsub.f32 %v3216, %v3221
    %v3229 = vsub.f32 %v3217, %v3224
    %v3230 = vsub.f32 %v3218, %v3227
    %v3231 = vmul.f32 %v3228, 1.442695
    %v3232 = vpow.pop %v3231
    %v3233 = vmul.f32 %v3229, 1.442695
    %v3234 = vpow.pop %v3233
    %v3235 = vmul.f32 %v3230, 1.442695
    %v3236 = vpow.pop %v3235
    %v3237 = vsel %vm341, %v3232, 0.0
    %3238 = vadd.xlane.f32.xlu0 %v3237
    %v3239 = vpop.xlane.xlu0 %3238
    %v3240 = vsel %vm341, %v3234, 0.0
    %3241 = vadd.xlane.f32.xlu0 %v3240
    %v3242 = vpop.xlane.xlu0 %3241
    %v3243 = vsel %vm348, %v3236, 0.0
    %3244 = vadd.xlane.f32.xlu0 %v3243
    %v3245 = vpop.xlane.xlu0 %3244
    %v3246 = vrcp.pop %v3239
    %v3247 = vrcp.pop %v3242
    %v3248 = vrcp.pop %v3245
    %v3249 = vmul.f32 %v3232, %v3246
    %v3250 = vmul.f32 %v3234, %v3247
    %v3251 = vmul.f32 %v3236, %v3248
    %v3252 = vpack.c.bf16 %v3250, %v3249
    %v3253 = vpack.c.bf16 %v3251, %v3251
    %v3254 = vpack.c.bf16 %v3176, %v3174
    %v3255 = vpack.c.bf16 %v3179, %v3179
    %v3257 = vsel %vm341, %v3252, 0
    %v3260 = vsel %vm341, %v3253, 0
    %v3263 = vand.u32 %v3255, %v388
    %3265 = vmatpush.bf16.msra.mxu0 0
    %3266 = vmatpush.bf16.msra.mxu0 0
    %3267 = vmatpush.bf16.msra.mxu0 0
    %3268 = vmatpush.bf16.msra.mxu0 0
    %3269 = vmatpush.bf16.msra.mxu0 0
    %3270 = vmatpush.bf16.msra.mxu0 0
    %3271 = vmatpush.bf16.msra.mxu0 %v3263
    %3272 = vmatpush.bf16.msra.mxu0 %v3254
    %3273 = vmatmul.bf16.gmra.mxu0 %v3257
    %v3274 = vpop.f32.mrf.mxu0
    %v3275 = vadd.f32 0.0, %v3274
    %v3276 = vpop.f32.mrf.mxu0
    %v3277 = vadd.f32 0.0, %v3276
    %3278 = vmatmul.bf16.gmra.mxu0 %v3260
    %v3279 = vpop.f32.mrf.mxu0
    %v3280 = vadd.f32 0.0, %v3279
    %v3281 = vpop.f32.mrf.mxu0
    %3282 = vdwg.mxu0
    %v3283 = vpack.c.bf16 %v3277, %v3275
    %v3284 = vpack.c.bf16 %v3280, %v3280
    %v3285 = vld [vmem:[%s1476] sm:$0xf]
    %v3286 = vld [vmem:[%s1476 + $0x4] sm:$0xf]
    %v3287 = vld [vmem:[%s1476 + $0x8] sm:$0xf]
    %v3288 = vld [vmem:[%s1476 + $0xc] sm:$0xf]
    %v3293 = vunpack.c.l.b16 %v3285
    %v3294 = vunpack.c.l.b16 %v3286
    %v3295 = vunpack.c.l.b16 %v3287
    %v3296 = vunpack.c.l.b16 %v3288
    %v3297 = vpack.c.b16 %v3294, %v3293
    %v3298 = vpack.c.b16 %v3296, %v3295
    %v3300 = vsel %vm307, %v3283, 0
    %v3303 = vsel %vm307, %v3284, 0
    %v3306 = vsel %vm307, %v3297, 0
    %v3309 = vsel %vm307, %v3298, 0
    %3311 = vmatpush.bf16.xpose.msra.mxu0 0
    %3312 = vmatpush.bf16.xpose.msra.mxu0 0
    %3313 = vmatpush.bf16.xpose.msra.mxu0 0
    %3314 = vmatpush.bf16.xpose.msra.mxu0 0
    %3315 = vmatpush.bf16.xpose.msra.mxu0 0
    %3316 = vmatpush.bf16.xpose.msra.mxu0 0
    %3317 = vmatpush.bf16.xpose.msra.mxu0 %v3309
    %3318 = vmatpush.bf16.xpose.msra.mxu0 %v3306
    %3319 = vmatmul.bf16.gmra.mxu0 %v3300
    %v3320 = vpop.f32.mrf.mxu0
    %v3321 = vadd.f32 0.0, %v3320
    %v3322 = vpop.f32.mrf.mxu0
    %v3323 = vadd.f32 0.0, %v3322
    %3324 = vmatmul.bf16.gmra.mxu0 %v3303
    %v3325 = vpop.f32.mrf.mxu0
    %v3326 = vadd.f32 0.0, %v3325
    %v3327 = vpop.f32.mrf.mxu0
    %3328 = vdwg.mxu0
    %v3333 = vunpack.c.l.b16 %v3072
    %v3334 = vunpack.c.l.b16 %v3073
    %v3335 = vunpack.c.l.b16 %v3074
    %v3336 = vunpack.c.l.b16 %v3075
    %v3337 = vpack.c.b16 %v3334, %v3333
    %v3338 = vpack.c.b16 %v3336, %v3335
    %v3340 = vsel %vm307, %v3070, 0
    %v3343 = vsel %vm307, %v3071, 0
    %v3346 = vsel %vm307, %v3337, 0
    %v3349 = vsel %vm307, %v3338, 0
    %3351 = vmatpush.bf16.xpose.msra.mxu0 0
    %3352 = vmatpush.bf16.xpose.msra.mxu0 0
    %3353 = vmatpush.bf16.xpose.msra.mxu0 0
    %3354 = vmatpush.bf16.xpose.msra.mxu0 0
    %3355 = vmatpush.bf16.xpose.msra.mxu0 0
    %3356 = vmatpush.bf16.xpose.msra.mxu0 0
    %3357 = vmatpush.bf16.xpose.msra.mxu0 %v3349
    %3358 = vmatpush.bf16.xpose.msra.mxu0 %v3346
    %3359 = vmatmul.bf16.gmra.mxu0 %v3340
    %v3360 = vpop.f32.mrf.mxu0
    %v3361 = vadd.f32 %v3321, %v3360
    %v3362 = vpop.f32.mrf.mxu0
    %v3363 = vadd.f32 %v3323, %v3362
    %3364 = vmatmul.bf16.gmra.mxu0 %v3343
    %v3365 = vpop.f32.mrf.mxu0
    %v3366 = vadd.f32 %v3326, %v3365
    %v3367 = vpop.f32.mrf.mxu0
    %3368 = vdwg.mxu0
    %v3369 = vadd.f32 %v2772, %v3361
    %v3370 = vadd.f32 %v2773, %v3363
    %v3371 = vadd.f32 %v2774, %v3366
    %v3372 = vperm.slane %v2777, 0
    %v3373 = vadd.f32 %v3369, %v3372
    %v3374 = vadd.f32 %v3370, %v3372
    %v3375 = vadd.f32 %v3371, %v3372
    %v3376 = vsel %vm104, %v3373, 0.0
    %3377 = vadd.xlane.f32.xlu0 %v3376
    %v3378 = vpop.xlane.xlu0 %3377
    %v3379 = vsel %vm104, %v3374, 0.0
    %3380 = vadd.xlane.f32.xlu0 %v3379
    %v3381 = vpop.xlane.xlu0 %3380
    %v3382 = vsel %vm111, %v3375, 0.0
    %3383 = vadd.xlane.f32.xlu0 %v3382
    %v3384 = vpop.xlane.xlu0 %3383
    %v3385 = vmul.f32 %v3378, %v121
    %v3386 = vmul.f32 %v3381, %v121
    %v3387 = vmul.f32 %v3384, %v121
    %v3388 = vsub.f32 %v3373, %v3385
    %v3389 = vsub.f32 %v3374, %v3386
    %v3390 = vsub.f32 %v3375, %v3387
    %v3391 = vmul.f32 %v3388, %v3388
    %v3392 = vmul.f32 %v3389, %v3389
    %v3393 = vmul.f32 %v3390, %v3390
    %v3394 = vsel %vm104, %v3391, 0.0
    %3395 = vadd.xlane.f32.xlu0 %v3394
    %v3396 = vpop.xlane.xlu0 %3395
    %v3397 = vsel %vm104, %v3392, 0.0
    %3398 = vadd.xlane.f32.xlu0 %v3397
    %v3399 = vpop.xlane.xlu0 %3398
    %v3400 = vsel %vm111, %v3393, 0.0
    %3401 = vadd.xlane.f32.xlu0 %v3400
    %v3402 = vpop.xlane.xlu0 %3401
    %v3403 = vmul.f32 %v3396, %v121
    %v3404 = vmul.f32 %v3399, %v121
    %v3405 = vmul.f32 %v3402, %v121
    %v3406 = vadd.f32 %v3403, 1e-06
    %v3407 = vadd.f32 %v3404, 1e-06
    %v3408 = vadd.f32 %v3405, 1e-06
    %v3409 = vrsqrt.pop %v3406
    %v3410 = vmul.f32 %v3409, %v3406
    %v3411 = vmul.f32 %v3410, %v3409
    %v3412 = vmul.f32 0.5, %v3411
    %v3413 = vsub.f32 1.5, %v3412
    %v3414 = vmul.f32 %v3409, %v3413
    %vm3415 = vweird.f32 %v3406
    %vm3416 = vweird.f32 %v3409
    %vm3417 = vmor %vm3415, %vm3416
    %v3418 = vsel %vm3417, %v3409, %v3414
    %v3419 = vrsqrt.pop %v3407
    %v3420 = vmul.f32 %v3419, %v3407
    %v3421 = vmul.f32 %v3420, %v3419
    %v3422 = vmul.f32 0.5, %v3421
    %v3423 = vsub.f32 1.5, %v3422
    %v3424 = vmul.f32 %v3419, %v3423
    %vm3425 = vweird.f32 %v3407
    %vm3426 = vweird.f32 %v3419
    %vm3427 = vmor %vm3425, %vm3426
    %v3428 = vsel %vm3427, %v3419, %v3424
    %v3429 = vrsqrt.pop %v3408
    %v3430 = vmul.f32 %v3429, %v3408
    %v3431 = vmul.f32 %v3430, %v3429
    %v3432 = vmul.f32 0.5, %v3431
    %v3433 = vsub.f32 1.5, %v3432
    %v3434 = vmul.f32 %v3429, %v3433
    %vm3435 = vweird.f32 %v3408
    %vm3436 = vweird.f32 %v3429
    %vm3437 = vmor %vm3435, %vm3436
    %v3438 = vsel %vm3437, %v3429, %v3434
    %v3439 = vmul.f32 %v3388, %v3418
    %v3440 = vmul.f32 %v3389, %v3428
    %v3441 = vmul.f32 %v3390, %v3438
    %v3442 = vperm.slane %v2778, 0
    %v3443 = vmul.f32 %v3439, %v3442
    %v3444 = vmul.f32 %v3440, %v3442
    %v3445 = vmul.f32 %v3441, %v3442
    %v3446 = vperm.slane %v2779, 0
    %v3447 = vadd.f32 %v3443, %v3446
    %v3448 = vadd.f32 %v3444, %v3446
    %v3449 = vadd.f32 %v3445, %v3446
    %v3450 = vpack.c.bf16 %v3448, %v3447
    %v3451 = vpack.c.bf16 %v3449, %v3449
    %v3452 = vld [vmem:[%s1644] sm:$0xf]
    %v3453 = vld [vmem:[%s1644 + $0x4] sm:$0xf]
    %v3454 = vld [vmem:[%s1644 + $0x8] sm:$0xf]
    %v3455 = vld [vmem:[%s1644 + $0xc] sm:$0xf]
    %v3456 = vld [vmem:[%s1649] sm:$0x1]
    %v3458 = vperm.slane %v3456, 0
    %v3464 = vunpack.c.l.b16 %v3452
    %v3465 = vunpack.c.l.b16 %v3453
    %v3466 = vunpack.c.l.b16 %v3454
    %v3467 = vunpack.c.l.b16 %v3455
    %v3468 = vpack.c.b16 %v3465, %v3464
    %v3469 = vpack.c.b16 %v3467, %v3466
    %v3473 = vsel %vm104, %v3450, 0
    %v3476 = vsel %vm104, %v3451, 0
    %3478 = vmatpush.bf16.msra.mxu0 0
    %3479 = vmatpush.bf16.msra.mxu0 0
    %3480 = vmatpush.bf16.msra.mxu0 0
    %3481 = vmatpush.bf16.msra.mxu0 0
    %3482 = vmatpush.bf16.msra.mxu0 0
    %3483 = vmatpush.bf16.msra.mxu0 0
    %3484 = vmatpush.bf16.msra.mxu0 %v3469
    %3485 = vmatpush.bf16.msra.mxu0 %v3468
    %3486 = vmatmul.bf16.gmra.mxu0 %v3473
    %v3487 = vpop.f32.mrf.mxu0
    %v3488 = vadd.f32 %v3458, %v3487
    %v3489 = vpop.f32.mrf.mxu0
    %v3490 = vadd.f32 %v3458, %v3489
    %3491 = vmatmul.bf16.gmra.mxu0 %v3476
    %v3492 = vpop.f32.mrf.mxu0
    %v3493 = vadd.f32 %v3458, %v3492
    %v3494 = vpop.f32.mrf.mxu0
    %3495 = vdwg.mxu0
    %v3496 = vmul.f32 %v3488, %v3488
    %v3497 = vmul.f32 %v3490, %v3490
    %v3498 = vmul.f32 %v3493, %v3493
    %v3499 = vmul.f32 %v3488, %v3496
    %v3500 = vmul.f32 %v3490, %v3497
    %v3501 = vmul.f32 %v3493, %v3498
    %v3502 = vmul.f32 %v3499, 0.044715
    %v3503 = vmul.f32 %v3500, 0.044715
    %v3504 = vmul.f32 %v3501, 0.044715
    %v3505 = vadd.f32 %v3488, %v3502
    %v3506 = vadd.f32 %v3490, %v3503
    %v3507 = vadd.f32 %v3493, %v3504
    %v3508 = vmul.f32 %v3505, 0.7978846
    %v3509 = vmul.f32 %v3506, 0.7978846
    %v3510 = vmul.f32 %v3507, 0.7978846
    %v3511 = vtanh.pop %v3508
    %v3512 = vtanh.pop %v3509
    %v3513 = vtanh.pop %v3510
    %v3514 = vadd.f32 %v3511, 1.0
    %v3515 = vadd.f32 %v3512, 1.0
    %v3516 = vadd.f32 %v3513, 1.0
    %v3517 = vmul.f32 %v3514, 0.5
    %v3518 = vmul.f32 %v3515, 0.5
    %v3519 = vmul.f32 %v3516, 0.5
    %v3520 = vmul.f32 %v3488, %v3517
    %v3521 = vmul.f32 %v3490, %v3518
    %v3522 = vmul.f32 %v3493, %v3519
    %v3523 = vpack.c.bf16 %v3521, %v3520
    %v3524 = vpack.c.bf16 %v3522, %v3522
    %v3525 = vld [vmem:[%s1719] sm:$0xf]
    %v3526 = vld [vmem:[%s1719 + $0x4] sm:$0xf]
    %v3527 = vld [vmem:[%s1719 + $0x8] sm:$0xf]
    %v3528 = vld [vmem:[%s1719 + $0xc] sm:$0xf]
    %v3529 = vld [vmem:[%s1719 + $0x10] sm:$0xf]
    %v3530 = vld [vmem:[%s1719 + $0x14] sm:$0xf]
    %v3531 = vld [vmem:[%s1719 + $0x18] sm:$0xf]
    %v3532 = vld [vmem:[%s1719 + $0x1c] sm:$0xf]
    %v3533 = vld [vmem:[%s1719 + $0x20] sm:$0xf]
    %v3534 = vld [vmem:[%s1719 + $0x24] sm:$0xf]
    %v3535 = vld [vmem:[%s1719 + $0x28] sm:$0xf]
    %v3536 = vld [vmem:[%s1719 + $0x2c] sm:$0xf]
    %v3537 = vld [vmem:[%s1719 + $0x30] sm:$0xf]
    %v3538 = vld [vmem:[%s1719 + $0x34] sm:$0xf]
    %v3539 = vld [vmem:[%s1719 + $0x38] sm:$0xf]
    %v3540 = vld [vmem:[%s1719 + $0x3c] sm:$0xf]
    %v3541 = vperm.slane %v2780, 0
    %v3558 = vunpack.c.l.b16 %v3525
    %v3559 = vunpack.c.l.b16 %v3526
    %v3560 = vunpack.c.l.b16 %v3527
    %v3561 = vunpack.c.l.b16 %v3528
    %v3562 = vunpack.c.l.b16 %v3529
    %v3563 = vunpack.c.l.b16 %v3530
    %v3564 = vunpack.c.l.b16 %v3531
    %v3565 = vunpack.c.l.b16 %v3532
    %v3566 = vunpack.c.l.b16 %v3533
    %v3567 = vunpack.c.l.b16 %v3534
    %v3568 = vunpack.c.l.b16 %v3535
    %v3569 = vunpack.c.l.b16 %v3536
    %v3570 = vunpack.c.l.b16 %v3537
    %v3571 = vunpack.c.l.b16 %v3538
    %v3572 = vunpack.c.l.b16 %v3539
    %v3573 = vunpack.c.l.b16 %v3540
    %v3574 = vpack.c.b16 %v3559, %v3558
    %v3575 = vpack.c.b16 %v3561, %v3560
    %v3576 = vpack.c.b16 %v3563, %v3562
    %v3577 = vpack.c.b16 %v3565, %v3564
    %v3578 = vpack.c.b16 %v3567, %v3566
    %v3579 = vpack.c.b16 %v3569, %v3568
    %v3580 = vpack.c.b16 %v3571, %v3570
    %v3581 = vpack.c.b16 %v3573, %v3572
    %3590 = vmatpush.bf16.msra.mxu0 %v3581
    %3591 = vmatpush.bf16.msra.mxu0 %v3580
    %3592 = vmatpush.bf16.msra.mxu0 %v3579
    %3593 = vmatpush.bf16.msra.mxu0 %v3578
    %3594 = vmatpush.bf16.msra.mxu0 %v3577
    %3595 = vmatpush.bf16.msra.mxu0 %v3576
    %3596 = vmatpush.bf16.msra.mxu0 %v3575
    %3597 = vmatpush.bf16.msra.mxu0 %v3574
    %3598 = vmatmul.bf16.gmra.mxu0 %v3523
    %v3599 = vpop.f32.mrf.mxu0
    %v3600 = vadd.f32 %v3541, %v3599
    %v3601 = vpop.f32.mrf.mxu0
    %v3602 = vadd.f32 %v3541, %v3601
    %3603 = vmatmul.bf16.gmra.mxu0 %v3524
    %v3604 = vpop.f32.mrf.mxu0
    %v3605 = vadd.f32 %v3541, %v3604
    %v3606 = vpop.f32.mrf.mxu0
    %3607 = vdwg.mxu0
    %v3608 = vadd.f32 %v3373, %v3600
    %v3609 = vadd.f32 %v3374, %v3602
    %v3610 = vadd.f32 %v3375, %v3605
    %v3611 = vsel %vm104, %v3608, 0.0
    %3612 = vadd.xlane.f32.xlu0 %v3611
    %v3613 = vpop.xlane.xlu0 %3612
    %v3614 = vsel %vm104, %v3609, 0.0
    %3615 = vadd.xlane.f32.xlu0 %v3614
    %v3616 = vpop.xlane.xlu0 %3615
    %v3617 = vsel %vm111, %v3610, 0.0
    %3618 = vadd.xlane.f32.xlu0 %v3617
    %v3619 = vpop.xlane.xlu0 %3618
    %v3620 = vmul.f32 %v3613, %v121
    %v3621 = vmul.f32 %v3616, %v121
    %v3622 = vmul.f32 %v3619, %v121
    %v3623 = vsub.f32 %v3608, %v3620
    %v3624 = vsub.f32 %v3609, %v3621
    %v3625 = vsub.f32 %v3610, %v3622
    %v3626 = vmul.f32 %v3623, %v3623
    %v3627 = vmul.f32 %v3624, %v3624
    %v3628 = vmul.f32 %v3625, %v3625
    %v3629 = vsel %vm104, %v3626, 0.0
    %3630 = vadd.xlane.f32.xlu0 %v3629
    %v3631 = vpop.xlane.xlu0 %3630
    %v3632 = vsel %vm104, %v3627, 0.0
    %3633 = vadd.xlane.f32.xlu0 %v3632
    %v3634 = vpop.xlane.xlu0 %3633
    %v3635 = vsel %vm111, %v3628, 0.0
    %3636 = vadd.xlane.f32.xlu0 %v3635
    %v3637 = vpop.xlane.xlu0 %3636
    %v3638 = vmul.f32 %v3631, %v121
    %v3639 = vmul.f32 %v3634, %v121
    %v3640 = vmul.f32 %v3637, %v121
    %v3641 = vadd.f32 %v3638, 1e-06
    %v3642 = vadd.f32 %v3639, 1e-06
    %v3643 = vadd.f32 %v3640, 1e-06
    %v3644 = vrsqrt.pop %v3641
    %v3645 = vmul.f32 %v3644, %v3641
    %v3646 = vmul.f32 %v3645, %v3644
    %v3647 = vmul.f32 0.5, %v3646
    %v3648 = vsub.f32 1.5, %v3647
    %v3649 = vmul.f32 %v3644, %v3648
    %vm3650 = vweird.f32 %v3641
    %vm3651 = vweird.f32 %v3644
    %vm3652 = vmor %vm3650, %vm3651
    %v3653 = vsel %vm3652, %v3644, %v3649
    %v3654 = vrsqrt.pop %v3642
    %v3655 = vmul.f32 %v3654, %v3642
    %v3656 = vmul.f32 %v3655, %v3654
    %v3657 = vmul.f32 0.5, %v3656
    %v3658 = vsub.f32 1.5, %v3657
    %v3659 = vmul.f32 %v3654, %v3658
    %vm3660 = vweird.f32 %v3642
    %vm3661 = vweird.f32 %v3654
    %vm3662 = vmor %vm3660, %vm3661
    %v3663 = vsel %vm3662, %v3654, %v3659
    %v3664 = vrsqrt.pop %v3643
    %v3665 = vmul.f32 %v3664, %v3643
    %v3666 = vmul.f32 %v3665, %v3664
    %v3667 = vmul.f32 0.5, %v3666
    %v3668 = vsub.f32 1.5, %v3667
    %v3669 = vmul.f32 %v3664, %v3668
    %vm3670 = vweird.f32 %v3643
    %vm3671 = vweird.f32 %v3664
    %vm3672 = vmor %vm3670, %vm3671
    %v3673 = vsel %vm3672, %v3664, %v3669
    %v3674 = vmul.f32 %v3623, %v3653
    %v3675 = vmul.f32 %v3624, %v3663
    %v3676 = vmul.f32 %v3625, %v3673
    %v3677 = vmul.f32 %v3674, %v1872
    %v3678 = vmul.f32 %v3675, %v1872
    %v3679 = vmul.f32 %v3676, %v1872
    %v3680 = vadd.f32 %v3677, %v1876
    %v3681 = vadd.f32 %v3678, %v1876
    %v3682 = vadd.f32 %v3679, %v1876
    %s3683 = scalar_lea.vmem %s8, 24
    %3684 = vst.msk [vmem:[%s3683] sm:$0xff] %vm104, %v3680
    %3685 = vst.msk [vmem:[%s3683 + $0x8] sm:$0xff] %vm104, %v3681
    %3686 = vst.msk [vmem:[%s3683 + $0x10] sm:$0x1] %vm111, %v3682
    %v3687 = vsel %vm104, %v3680, 0.0
    %v3688 = vsel %vm104, %v3681, 0.0
    %v3689 = vadd.f32 %v3687, %v3688
    %v3690 = vsel %vm111, %v3682, 0.0
    %v3691 = vadd.f32 %v3689, %v3690
    %v3692 = vrot.slane %v3691, 4
    %v3693 = vadd.f32 %v3691, %v3692
    %v3694 = vrot.slane %v3693, 2
    %v3695 = vadd.f32 %v3693, %v3694
    %v3696 = vrot.slane %v3695, 1
    %v3697 = vadd.f32 %v3695, %v3696
    %v3698 = vmul.f32 %v3697, %v1900
    %s3699 = scalar_lea.vmem [#allocation2], 1
    %3700 = vst.msk [vmem:[%s3699] sm:$0x1] %vm111, %v3698
    // Predicated region
    $region34: #{_forward.1} parent=1 // pred_check
      _
    $region35: #{_forward.1} parent=1 // pred_check_branch
      %3702 = sbr.rel (0) target = $region37
    $region36: #{_forward.1} parent=1 // pred_region
      _
    $region37: #{_forward.1} parent=1 // pred_fallthru
      _
    // Predicated region
    $region38: #{_forward.1} parent=1 // pred_check
      _
    $region39: #{_forward.1} parent=1 // pred_check_branch
      %3704 = sbr.rel (0) target = $region41
    $region40: #{_forward.1} parent=1 // pred_region
      %3706 = vsyncadd [#allocation3], 0
      %s3707 = sshll.u32 [#allocation2], 4
      %s3708 = int_to_ptr.vmem [resolvable:$true] %s3707
      %s3709 = sshll.u32 %s9, 4
      %s3710 = int_to_ptr.hbm [resolvable:$true] %s3709
      %3715 = dma.vmem_to_hbm [thread:$0]  %s3708, 32, %s3710, [#allocation3], 16, 16, 1
    $region41: #{_forward.1} parent=1 // pred_fallthru
      _
    // Predicated region
    $region42: #{_forward.1} parent=1 // pred_check
      _
    $region43: #{_forward.1} parent=1 // pred_check_branch
      %3717 = sbr.rel (0) target = $region45
    $region44: #{_forward.1} parent=1 // pred_region
      _
    $region45: #{_forward.1} parent=1 // pred_fallthru
      _
    // Predicated region
    $region46: #{_forward.1} parent=1 // pred_check
      _
    $region47: #{_forward.1} parent=1 // pred_check_branch
      %3719 = sbr.rel (0) target = $region49
    $region48: #{_forward.1} parent=1 // pred_region
      %3721 = dma.done [#allocation3], 32
    $region49: #{_forward.1} parent=1 // pred_fallthru
      _
    %3722 = vsyncpa [#allocation3], 1

</llo_original>
